<compile_context>
chip_gen: v5e
topology: v5e:2x2
jax: 0.10.0
libtpu: 0.0.40
codegen_flags: <defaults>
</compile_context>

<pallas_src>
import functools
import math

import jax
import jax.numpy as jnp
from jax.experimental import pallas as pl
from jax.experimental.pallas import tpu as pltpu


# ----------------------------- in-kernel helpers -----------------------------

def _softmax(s):
    # f32 math; exp + reciprocal go to the EUP slot.
    m = jnp.max(s, axis=-1, keepdims=True)
    e = jnp.exp(s - m)
    return e * pl.reciprocal(jnp.sum(e, axis=-1, keepdims=True), approx=True)


def _layernorm(x, g, b, eps=1e-12):
    # BertLayerNorm (TF-style: epsilon inside the sqrt); f32 math, rsqrt on EUP.
    u = jnp.mean(x, axis=-1, keepdims=True)
    d = x - u
    s = jnp.mean(d * d, axis=-1, keepdims=True)
    return g * (d * jax.lax.rsqrt(s + eps)) + b


def _gelu(x):
    # TODO(synk): reference BERT gelu is erf-based; tanh approximation used for
    # guaranteed Mosaic lowering (max abs error ~1e-3).
    c = math.sqrt(2.0 / math.pi)
    return 0.5 * x * (1.0 + jnp.tanh(c * (x + 0.044715 * x * x * x)))


def _mha_context(q3, k3, v3, mask_full, num_heads, head_size):
    """Batched multi-head attention context.

    q3:(bt,Sq,H) k3,v3:(bt,Sk,H) bf16 (1/sqrt(head_size) already folded into q),
    mask_full:(bt,Sq,Sk) additive f32 (materialized once, outside the head loop).
    Returns bf16 (bt*Sq, H) context == concat_h(softmax(q_h k_h^T + mask) v_h),
    ready for one full-contraction (K=H) output-projection matmul.
    """
    bt, sq, H = q3.shape
    ctx_parts = []
    for h in range(num_heads):
        lo = h * head_size
        hi = lo + head_size
        # dot_general with rhs contracting dim = last: no explicit transpose.
        s = jnp.einsum('bqd,bkd->bqk', q3[:, :, lo:hi], k3[:, :, lo:hi],
                       preferred_element_type=jnp.float32) + mask_full
        p = _softmax(s).astype(jnp.bfloat16)
        ctx_parts.append(jnp.einsum('bqk,bkd->bqd', p, v3[:, :, lo:hi],
                                    preferred_element_type=jnp.float32))
    # One-time lane-axis concat; per-head score/prob tensors die immediately.
    ctx = ctx_parts[0] if num_heads == 1 else jnp.concatenate(ctx_parts, axis=-1)
    return ctx.reshape(bt * sq, H).astype(jnp.bfloat16)


# ----------------------------- BertLayer kernel ------------------------------

def bert_layer_kernel(x_ref, mask_ref,
                      wq, bq, wk, bk, wv, bv, wo, bo, g1, be1,
                      wi, bi_, wo2, bo2, g2, be2,
                      out_ref, *, num_heads, head_size):
    bt, S, H = x_ref.shape
    x = x_ref[...].astype(jnp.float32).reshape(bt * S, H)     # residual path, f32
    xb = x.astype(jnp.bfloat16)
    scale = 1.0 / math.sqrt(head_size)

    q = ((jnp.dot(xb, wq[...], preferred_element_type=jnp.float32) + bq[...])
         * scale).astype(jnp.bfloat16).reshape(bt, S, H)
    k = (jnp.dot(xb, wk[...], preferred_element_type=jnp.float32)
         + bk[...]).astype(jnp.bfloat16).reshape(bt, S, H)
    v = (jnp.dot(xb, wv[...], preferred_element_type=jnp.float32)
         + bv[...]).astype(jnp.bfloat16).reshape(bt, S, H)

    # Additive mask materialized once (JAX does not CSE broadcast_in_dim).
    mask_full = jnp.broadcast_to(
        mask_ref[...].astype(jnp.float32).reshape(bt, 1, S), (bt, S, S))

    ctx = _mha_context(q, k, v, mask_full, num_heads, head_size)   # (bt*S, H) bf16
    attn = jnp.dot(ctx, wo[...], preferred_element_type=jnp.float32) + bo[...]
    y = _layernorm(attn + x, g1[...], be1[...])               # BertSelfOutput

    inter = _gelu(jnp.dot(y.astype(jnp.bfloat16), wi[...],
                          preferred_element_type=jnp.float32) + bi_[...])
    z = jnp.dot(inter.astype(jnp.bfloat16), wo2[...],
                preferred_element_type=jnp.float32) + bo2[...]
    out = _layernorm(z + y, g2[...], be2[...])                # BertOutput

    out_ref[...] = out.reshape(bt, S, H).astype(out_ref.dtype)


# ------------------------- BertConnectionLayer kernel ------------------------

def connection_kernel(vx_ref, vmask_ref, tx_ref, tmask_ref,
                      q1w, q1b, k1w, k1b, v1w, v1b,
                      q2w, q2b, k2w, k2b, v2w, v2b,
                      d1w, d1b, ln1g, ln1b, d2w, d2b, ln2g, ln2b,
                      viw, vib, vow, vob, vlg, vlb,
                      tiw, tib, tow, tob, tlg, tlb,
                      v_out_ref, t_out_ref, *, bi_heads, bi_head_size):
    bt, R, Hv = vx_ref.shape
    _, S, Ht = tx_ref.shape
    biH = bi_heads * bi_head_size
    vx = vx_ref[...].astype(jnp.float32).reshape(bt * R, Hv)   # image residual
    tx = tx_ref[...].astype(jnp.float32).reshape(bt * S, Ht)   # text residual
    vxb = vx.astype(jnp.bfloat16)
    txb = tx.astype(jnp.bfloat16)
    scale = 1.0 / math.sqrt(bi_head_size)

    # ---- BertBiAttention projections (scale folded into queries) ----
    q1 = ((jnp.dot(vxb, q1w[...], preferred_element_type=jnp.float32) + q1b[...])
          * scale).astype(jnp.bfloat16).reshape(bt, R, biH)
    k1 = (jnp.dot(vxb, k1w[...], preferred_element_type=jnp.float32)
          + k1b[...]).astype(jnp.bfloat16).reshape(bt, R, biH)
    v1 = (jnp.dot(vxb, v1w[...], preferred_element_type=jnp.float32)
          + v1b[...]).astype(jnp.bfloat16).reshape(bt, R, biH)
    q2 = ((jnp.dot(txb, q2w[...], preferred_element_type=jnp.float32) + q2b[...])
          * scale).astype(jnp.bfloat16).reshape(bt, S, biH)
    k2 = (jnp.dot(txb, k2w[...], preferred_element_type=jnp.float32)
          + k2b[...]).astype(jnp.bfloat16).reshape(bt, S, biH)
    v2 = (jnp.dot(txb, v2w[...], preferred_element_type=jnp.float32)
          + v2b[...]).astype(jnp.bfloat16).reshape(bt, S, biH)

    # Additive masks materialized once (outside the unrolled head loops).
    vmask_full = jnp.broadcast_to(
        vmask_ref[...].astype(jnp.float32).reshape(bt, 1, R), (bt, S, R))
    tmask_full = jnp.broadcast_to(
        tmask_ref[...].astype(jnp.float32).reshape(bt, 1, S), (bt, R, S))

    # context_layer1: text queries over image keys/values   -> (bt*S, biH)
    ctx1 = _mha_context(q2, k1, v1, vmask_full, bi_heads, bi_head_size)
    # context_layer2: image queries over text keys/values   -> (bt*R, biH)
    ctx2 = _mha_context(q1, k2, v2, tmask_full, bi_heads, bi_head_size)

    # ---- BertBiOutput (argument swap exactly as in BertConnectionLayer.forward)
    a1 = jnp.dot(ctx2, d1w[...], preferred_element_type=jnp.float32) + d1b[...]
    a2 = jnp.dot(ctx1, d2w[...], preferred_element_type=jnp.float32) + d2b[...]
    a1 = _layernorm(a1 + vx, ln1g[...], ln1b[...])     # (bt*R, Hv) image stream
    a2 = _layernorm(a2 + tx, ln2g[...], ln2b[...])     # (bt*S, Ht) text stream

    # ---- v_intermediate / v_output ----
    vi = _gelu(jnp.dot(a1.astype(jnp.bfloat16), viw[...],
                       preferred_element_type=jnp.float32) + vib[...])
    v_out = _layernorm(jnp.dot(vi.astype(jnp.bfloat16), vow[...],
                               preferred_element_type=jnp.float32)
                       + vob[...] + a1, vlg[...], vlb[...])
    # ---- t_intermediate / t_output ----
    ti = _gelu(jnp.dot(a2.astype(jnp.bfloat16), tiw[...],
                       preferred_element_type=jnp.float32) + tib[...])
    t_out = _layernorm(jnp.dot(ti.astype(jnp.bfloat16), tow[...],
                               preferred_element_type=jnp.float32)
                       + tob[...] + a2, tlg[...], tlb[...])

    v_out_ref[...] = v_out.reshape(bt, R, Hv).astype(v_out_ref.dtype)
    t_out_ref[...] = t_out.reshape(bt, S, Ht).astype(t_out_ref.dtype)


# ------------------------------- wrappers -------------------------------------

@functools.lru_cache(maxsize=None)
def _tpu_vmem_capacity():
    try:
        return int(pltpu.get_tpu_info().vmem_capacity_bytes)
    except Exception:
        return 64 << 20          # conservative default (v7x per-TensorCore)


def _pick_block_batch(batch, seq):
    """Largest batch sub-block giving ~target MXU rows per grid step; prefers an
    even grid length (balances v7x's two TensorCores) and >=2 steps overall.
    Target rows: 512 on 128-MiB-VMEM chips (v5e/v6e), 256 on v7x (64 MiB)."""
    target_rows = 512 if _tpu_vmem_capacity() >= (96 << 20) else 256
    cap = max(1, target_rows // max(seq, 1))
    divs = [d for d in range(1, batch + 1) if batch % d == 0]
    good = [d for d in divs if d <= cap and batch // d >= 2]
    if not good:
        good = [d for d in divs if d <= cap] or [1]
    return max(good, key=lambda d: ((batch // d) % 2 == 0, d))


def _weight_spec(arr, single_buffer):
    nd = arr.ndim
    imap = lambda b, _nd=nd: (0,) * _nd
    if single_buffer:
        # Grid-invariant weights: 1-deep pipeline halves their VMEM footprint.
        return pl.BlockSpec(arr.shape, imap, pipeline_mode=pl.Buffered(1))
    return pl.BlockSpec(arr.shape, imap)


def _vmem_limit(act_block_bytes, weight_bytes, scratch_bytes, weight_buffers):
    # Input/output blocks are double-buffered by the pipeline; weights counted
    # once when single-buffered, twice only on the double-buffered fallback.
    est = 2 * act_block_bytes + weight_buffers * weight_bytes + scratch_bytes + (4 << 20)
    cap = max(_tpu_vmem_capacity() - (8 << 20), 32 << 20)     # Mosaic headroom
    return int(min(max(est, 32 << 20), cap))


_HAS_BUFFERED = hasattr(pl, "Buffered")
_BUFFERED_OK = None   # resolved by a single probe on the first pallas_call


def _pallas_apply(build, args):
    """build(single_buffer) -> pallas_call callable.

    Weight single-buffering (pl.Buffered(1)) is probed exactly once; on the
    fallback the vmem limit is recomputed inside build(False) for
    double-buffered weights, and genuine lowering errors re-raise from that
    path instead of being silently swallowed on every call."""
    global _BUFFERED_OK
    if _BUFFERED_OK is None and not _HAS_BUFFERED:
        _BUFFERED_OK = False
    if _BUFFERED_OK is True:
        return build(True)(*args)
    if _BUFFERED_OK is False:
        return build(False)(*args)
    try:
        out = build(True)(*args)
        _BUFFERED_OK = True
        return out
    except Exception:
        _BUFFERED_OK = False
        return build(False)(*args)     # real errors surface from here


def _pad_seq(x, ext_mask, mult=8):
    """Pad the sequence axis to a multiple of `mult` (sublane-aligned reshapes
    and denser score vregs). Padded keys get -10000 additive mask; padded query
    rows are sliced off the output by the caller."""
    S = x.shape[1]
    pad = (-S) % mult
    if pad == 0:
        return x, ext_mask, S
    xp = jnp.pad(x, ((0, 0), (0, pad), (0, 0)))
    mp = jnp.pad(ext_mask, ((0, 0), (0, 0), (0, 0), (0, pad)),
                 constant_values=-10000.0)
    return xp, mp, S


_BL_KEYS = ("wq", "bq", "wk", "bk", "wv", "bv", "wo", "bo", "ln1_g", "ln1_b",
            "wi", "bi", "wo2", "bo2", "ln2_g", "ln2_b")
_BL_MM = {"wq", "wk", "wv", "wo", "wi", "wo2"}


def run_bert_layer(x, ext_mask, p, num_heads):
    x, ext_mask, S0 = _pad_seq(x, ext_mask)
    B, S, H = x.shape
    I = p["wi"].shape[1]
    head_size = H // num_heads
    bt = _pick_block_batch(B, S)
    weights = [p[k].astype(jnp.bfloat16) if k in _BL_MM else p[k].astype(jnp.float32)
               for k in _BL_KEYS]
    w_bytes = sum(int(w.size) * w.dtype.itemsize for w in weights)
    act_bytes = (2 * bt * S * H + bt * S) * 4
    scratch = 4 * bt * S * (8 * H + 3 * I) + 8 * bt * S * S
    cost = pl.CostEstimate(
        flops=int(2 * B * S * H * (4 * H + 2 * S + 2 * I)),
        transcendentals=int(B * (num_heads * S * S + S * I + 4 * S)),
        bytes_accessed=int((2 * B * S * H + B * S) * 4 + w_bytes))
    kernel = functools.partial(bert_layer_kernel,
                               num_heads=num_heads, head_size=head_size)

    def build(single_buffer):
        in_specs = [pl.BlockSpec((bt, S, H), lambda b: (b, 0, 0)),
                    pl.BlockSpec((bt, 1, 1, S), lambda b: (b, 0, 0, 0))]
        in_specs += [_weight_spec(w, single_buffer) for w in weights]
        return pl.pallas_call(
            kernel,
            out_shape=jax.ShapeDtypeStruct((B, S, H), x.dtype),
            grid=(B // bt,),
            in_specs=in_specs,
            out_specs=pl.BlockSpec((bt, S, H), lambda b: (b, 0, 0)),
            compiler_params=pltpu.CompilerParams(
                dimension_semantics=("parallel",),
                vmem_limit_bytes=_vmem_limit(act_bytes, w_bytes, scratch,
                                             1 if single_buffer else 2)),
            cost_estimate=cost)

    out = _pallas_apply(build, (x, ext_mask, *weights))
    return out if S == S0 else out[:, :S0, :]


_CL_KEYS = ("q1w", "q1b", "k1w", "k1b", "v1w", "v1b",
            "q2w", "q2b", "k2w", "k2b", "v2w", "v2b",
            "d1w", "d1b", "ln1g", "ln1b", "d2w", "d2b", "ln2g", "ln2b",
            "viw", "vib", "vow", "vob", "vlg", "vlb",
            "tiw", "tib", "tow", "tob", "tlg", "tlb")
_CL_MM = {"q1w", "k1w", "v1w", "q2w", "k2w", "v2w",
          "d1w", "d2w", "viw", "vow", "tiw", "tow"}


def run_connection_layer(img, img_mask, txt, txt_mask, p, bi_heads):
    img, img_mask, R0 = _pad_seq(img, img_mask)
    txt, txt_mask, S0 = _pad_seq(txt, txt_mask)
    B, R, Hv = img.shape
    _, S, Ht = txt.shape
    biH = p["q1w"].shape[1]
    Iv = p["viw"].shape[1]
    It = p["tiw"].shape[1]
    head_size = biH // bi_heads
    bt = _pick_block_batch(B, max(R, S))
    weights = [p[k].astype(jnp.bfloat16) if k in _CL_MM else p[k].astype(jnp.float32)
               for k in _CL_KEYS]
    w_bytes = sum(int(w.size) * w.dtype.itemsize for w in weights)
    act_bytes = (2 * bt * (R * Hv + S * Ht) + bt * (R + S)) * 4
    scratch = (4 * bt * (R * (6 * biH + 2 * Hv + 3 * Iv)
                         + S * (6 * biH + 2 * Ht + 3 * It))
               + 16 * bt * R * S)
    cost = pl.CostEstimate(
        flops=int(2 * B * (3 * R * Hv * biH + 3 * S * Ht * biH + 4 * S * R * biH
                           + R * biH * Hv + S * biH * Ht
                           + 2 * R * Hv * Iv + 2 * S * Ht * It)),
        transcendentals=int(B * (2 * bi_heads * S * R + R * Iv + S * It
                                 + 4 * (R + S))),
        bytes_accessed=int((2 * B * (R * Hv + S * Ht) + B * (R + S)) * 4 + w_bytes))
    kernel = functools.partial(connection_kernel,
                               bi_heads=bi_heads, bi_head_size=head_size)

    def build(single_buffer):
        in_specs = [pl.BlockSpec((bt, R, Hv), lambda b: (b, 0, 0)),
                    pl.BlockSpec((bt, 1, 1, R), lambda b: (b, 0, 0, 0)),
                    pl.BlockSpec((bt, S, Ht), lambda b: (b, 0, 0)),
                    pl.BlockSpec((bt, 1, 1, S), lambda b: (b, 0, 0, 0))]
        in_specs += [_weight_spec(w, single_buffer) for w in weights]
        return pl.pallas_call(
            kernel,
            out_shape=(jax.ShapeDtypeStruct((B, R, Hv), img.dtype),
                       jax.ShapeDtypeStruct((B, S, Ht), txt.dtype)),
            grid=(B // bt,),
            in_specs=in_specs,
            out_specs=(pl.BlockSpec((bt, R, Hv), lambda b: (b, 0, 0)),
                       pl.BlockSpec((bt, S, Ht), lambda b: (b, 0, 0))),
            compiler_params=pltpu.CompilerParams(
                dimension_semantics=("parallel",),
                vmem_limit_bytes=_vmem_limit(act_bytes, w_bytes, scratch,
                                             1 if single_buffer else 2)),
            cost_estimate=cost)

    v_out, t_out = _pallas_apply(build, (img, img_mask, txt, txt_mask, *weights))
    if R != R0:
        v_out = v_out[:, :R0, :]
    if S != S0:
        t_out = t_out[:, :S0, :]
    return v_out, t_out


# -------------------------- encoder control flow -------------------------------

def bert_encoder_forward(txt_embedding, image_embedding,
                         txt_attention_mask, image_attention_mask,
                         params, cfg, co_attention_mask=None,
                         output_all_encoded_layers=True):
    v_start, t_start, count = 0, 0, 0
    all_encoder_layers_t, all_encoder_layers_v = [], []
    batch_size, num_words, t_hidden = txt_embedding.shape
    _, num_regions, v_hidden = image_embedding.shape

    for v_layer_id, t_layer_id in zip(cfg["v_biattention_id"], cfg["t_biattention_id"]):
        v_end, t_end = v_layer_id, t_layer_id
        assert cfg["fixed_t_layer"] <= t_end and cfg["fixed_v_layer"] <= v_end
        # fixed (no_grad) layers — same compute at inference time
        for idx in range(v_start, cfg["fixed_v_layer"]):
            image_embedding = run_bert_layer(image_embedding, image_attention_mask,
                                             params["v_layer"][idx], cfg["v_heads"])
            v_start = cfg["fixed_v_layer"]
        for idx in range(v_start, v_end):
            image_embedding = run_bert_layer(image_embedding, image_attention_mask,
                                             params["v_layer"][idx], cfg["v_heads"])
        for idx in range(t_start, cfg["fixed_t_layer"]):
            txt_embedding = run_bert_layer(txt_embedding, txt_attention_mask,
                                           params["t_layer"][idx], cfg["t_heads"])
            t_start = cfg["fixed_t_layer"]
        for idx in range(t_start, t_end):
            txt_embedding = run_bert_layer(txt_embedding, txt_attention_mask,
                                           params["t_layer"][idx], cfg["t_heads"])

        if count == 0 and cfg["in_batch_pairs"]:
            image_embedding = jnp.broadcast_to(
                image_embedding[None], (batch_size, batch_size, num_regions, v_hidden)
            ).reshape(batch_size * batch_size, num_regions, v_hidden)
            image_attention_mask = jnp.broadcast_to(
                image_attention_mask[None], (batch_size, batch_size, 1, 1, num_regions)
            ).reshape(batch_size * batch_size, 1, 1, num_regions)
            txt_embedding = jnp.broadcast_to(
                txt_embedding[:, None], (batch_size, batch_size, num_words, t_hidden)
            ).reshape(batch_size * batch_size, num_words, t_hidden)
            txt_attention_mask = jnp.broadcast_to(
                txt_attention_mask[:, None], (batch_size, batch_size, 1, 1, num_words)
            ).reshape(batch_size * batch_size, 1, 1, num_words)
        if count == 0 and cfg["fast_mode"]:
            txt_embedding = jnp.broadcast_to(
                txt_embedding, (image_embedding.shape[0],) + txt_embedding.shape[1:])
            txt_attention_mask = jnp.broadcast_to(
                txt_attention_mask, (image_embedding.shape[0],) + txt_attention_mask.shape[1:])

        if cfg["with_coattention"]:
            image_embedding, txt_embedding = run_connection_layer(
                image_embedding, image_attention_mask,
                txt_embedding, txt_attention_mask,
                params["c_layer"][count], cfg["bi_heads"])

        v_start, t_start = v_end, t_end
        count += 1
        if output_all_encoded_layers:
            all_encoder_layers_t.append(txt_embedding)
            all_encoder_layers_v.append(image_embedding)

    for idx in range(v_start, cfg["v_num_layers"]):
        image_embedding = run_bert_layer(image_embedding, image_attention_mask,
                                         params["v_layer"][idx], cfg["v_heads"])
    for idx in range(t_start, cfg["t_num_layers"]):
        txt_embedding = run_bert_layer(txt_embedding, txt_attention_mask,
                                       params["t_layer"][idx], cfg["t_heads"])
    if not output_all_encoded_layers:
        all_encoder_layers_t.append(txt_embedding)
        all_encoder_layers_v.append(image_embedding)
    # attention-probs outputs omitted (output_all_attention_masks=False)
    return all_encoder_layers_t, all_encoder_layers_v, ([], [], [])


# ------------------------------ parameter init ---------------------------------

def _lin(key, din, dout):
    return jax.random.normal(key, (din, dout), jnp.float32) * 0.02


def init_bert_layer_params(key, H, I):
    ks = jax.random.split(key, 6)
    z = lambda n: jnp.zeros((1, n), jnp.float32)
    o = lambda n: jnp.ones((1, n), jnp.float32)
    return dict(wq=_lin(ks[0], H, H), bq=z(H), wk=_lin(ks[1], H, H), bk=z(H),
                wv=_lin(ks[2], H, H), bv=z(H), wo=_lin(ks[3], H, H), bo=z(H),
                ln1_g=o(H), ln1_b=z(H),
                wi=_lin(ks[4], H, I), bi=z(I), wo2=_lin(ks[5], I, H), bo2=z(H),
                ln2_g=o(H), ln2_b=z(H))


def init_connection_params(key, Hv, Ht, biH, Iv, It):
    ks = jax.random.split(key, 12)
    z = lambda n: jnp.zeros((1, n), jnp.float32)
    o = lambda n: jnp.ones((1, n), jnp.float32)
    return dict(
        q1w=_lin(ks[0], Hv, biH), q1b=z(biH), k1w=_lin(ks[1], Hv, biH), k1b=z(biH),
        v1w=_lin(ks[2], Hv, biH), v1b=z(biH),
        q2w=_lin(ks[3], Ht, biH), q2b=z(biH), k2w=_lin(ks[4], Ht, biH), k2b=z(biH),
        v2w=_lin(ks[5], Ht, biH), v2b=z(biH),
        d1w=_lin(ks[6], biH, Hv), d1b=z(Hv), ln1g=o(Hv), ln1b=z(Hv),
        d2w=_lin(ks[7], biH, Ht), d2b=z(Ht), ln2g=o(Ht), ln2b=z(Ht),
        viw=_lin(ks[8], Hv, Iv), vib=z(Iv), vow=_lin(ks[9], Iv, Hv), vob=z(Hv),
        vlg=o(Hv), vlb=z(Hv),
        tiw=_lin(ks[10], Ht, It), tib=z(It), tow=_lin(ks[11], It, Ht), tob=z(Ht),
        tlg=o(Ht), tlb=z(Ht))


# ----------------------------------- main ---------------------------------------

if __name__ == "__main__":
    # Small synthetic config (mirrors BertEncoder.__init__ structure).
    cfg = dict(
        t_hidden=64, t_heads=4, t_inter=128, t_num_layers=3, t_biattention_id=[2],
        v_hidden=128, v_heads=8, v_inter=256, v_num_layers=2, v_biattention_id=[1],
        bi_hidden=128, bi_heads=8,
        fast_mode=False, with_coattention=True, in_batch_pairs=False,
        fixed_t_layer=0, fixed_v_layer=0,
    )
    B, S, R = 2, 8, 16

    key = jax.random.PRNGKey(0)
    k_txt, k_img, k_t, k_v, k_c = jax.random.split(key, 5)

    txt_embedding = jax.random.normal(k_txt, (B, S, cfg["t_hidden"]), jnp.float32)
    image_embedding = jax.random.normal(k_img, (B, R, cfg["v_hidden"]), jnp.float32)

    # binary masks -> extended additive masks (as BertModel would pass in)
    txt_mask = jnp.ones((B, S), jnp.float32).at[:, -2:].set(0.0)
    img_mask = jnp.ones((B, R), jnp.float32).at[1, -4:].set(0.0)
    txt_attention_mask = ((1.0 - txt_mask) * -10000.0)[:, None, None, :]
    image_attention_mask = ((1.0 - img_mask) * -10000.0)[:, None, None, :]

    # nn.ModuleList of deepcopies of one initialized layer => identical params per layer
    t_layer_p = init_bert_layer_params(k_t, cfg["t_hidden"], cfg["t_inter"])
    v_layer_p = init_bert_layer_params(k_v, cfg["v_hidden"], cfg["v_inter"])
    c_layer_p = init_connection_params(k_c, cfg["v_hidden"], cfg["t_hidden"],
                                       cfg["bi_hidden"], cfg["v_inter"], cfg["t_inter"])
    params = dict(t_layer=[t_layer_p] * cfg["t_num_layers"],
                  v_layer=[v_layer_p] * cfg["v_num_layers"],
                  c_layer=[c_layer_p] * len(cfg["v_biattention_id"]))

    all_t, all_v, _ = bert_encoder_forward(
        txt_embedding, image_embedding, txt_attention_mask, image_attention_mask,
        params, cfg, output_all_encoded_layers=True)

    jax.block_until_ready((all_t, all_v))
    assert all_t[0].shape == (B, S, cfg["t_hidden"])
    assert all_v[0].shape == (B, R, cfg["v_hidden"])
    assert all(bool(jnp.all(jnp.isfinite(a))) for a in all_t + all_v)
    print("KERNEL_OK")
</pallas_src>

<mosaic_0001>
module attributes {stable_mosaic.version = 11 : i64} {
  func.func @bert_layer_kernel(%arg0: i32, %arg1: memref<1x16x128xf32, #tpu.memory_space<vmem>>, %arg2: memref<1x1x1x16xf32, #tpu.memory_space<vmem>>, %arg3: memref<128x128xbf16, #tpu.memory_space<vmem>>, %arg4: memref<1x128xf32, #tpu.memory_space<vmem>>, %arg5: memref<128x128xbf16, #tpu.memory_space<vmem>>, %arg6: memref<1x128xf32, #tpu.memory_space<vmem>>, %arg7: memref<128x128xbf16, #tpu.memory_space<vmem>>, %arg8: memref<1x128xf32, #tpu.memory_space<vmem>>, %arg9: memref<128x128xbf16, #tpu.memory_space<vmem>>, %arg10: memref<1x128xf32, #tpu.memory_space<vmem>>, %arg11: memref<1x128xf32, #tpu.memory_space<vmem>>, %arg12: memref<1x128xf32, #tpu.memory_space<vmem>>, %arg13: memref<128x256xbf16, #tpu.memory_space<vmem>>, %arg14: memref<1x256xf32, #tpu.memory_space<vmem>>, %arg15: memref<256x128xbf16, #tpu.memory_space<vmem>>, %arg16: memref<1x128xf32, #tpu.memory_space<vmem>>, %arg17: memref<1x128xf32, #tpu.memory_space<vmem>>, %arg18: memref<1x128xf32, #tpu.memory_space<vmem>>, %arg19: memref<1x16x128xf32, #tpu.memory_space<vmem>>) attributes {dimension_semantics = [#tpu.dimension_semantics<parallel>], iteration_bounds = array<i64: 2>, scalar_prefetch = 0 : i64, scratch_operands = 0 : i64, tpu.core_type = #tpu.core_type<tc>, window_params = [{transform_indices = @transform_0, window_bounds = array<i64: 1, 16, 128>}, {transform_indices = @transform_1, window_bounds = array<i64: 1, 1, 1, 16>}, {pipeline_mode = #tpu.pipeline_mode<synchronous>, transform_indices = @transform_2, window_bounds = array<i64: 128, 128>}, {pipeline_mode = #tpu.pipeline_mode<synchronous>, transform_indices = @transform_3, window_bounds = array<i64: 1, 128>}, {pipeline_mode = #tpu.pipeline_mode<synchronous>, transform_indices = @transform_4, window_bounds = array<i64: 128, 128>}, {pipeline_mode = #tpu.pipeline_mode<synchronous>, transform_indices = @transform_5, window_bounds = array<i64: 1, 128>}, {pipeline_mode = #tpu.pipeline_mode<synchronous>, transform_indices = @transform_6, window_bounds = array<i64: 128, 128>}, {pipeline_mode = #tpu.pipeline_mode<synchronous>, transform_indices = @transform_7, window_bounds = array<i64: 1, 128>}, {pipeline_mode = #tpu.pipeline_mode<synchronous>, transform_indices = @transform_8, window_bounds = array<i64: 128, 128>}, {pipeline_mode = #tpu.pipeline_mode<synchronous>, transform_indices = @transform_9, window_bounds = array<i64: 1, 128>}, {pipeline_mode = #tpu.pipeline_mode<synchronous>, transform_indices = @transform_10, window_bounds = array<i64: 1, 128>}, {pipeline_mode = #tpu.pipeline_mode<synchronous>, transform_indices = @transform_11, window_bounds = array<i64: 1, 128>}, {pipeline_mode = #tpu.pipeline_mode<synchronous>, transform_indices = @transform_12, window_bounds = array<i64: 128, 256>}, {pipeline_mode = #tpu.pipeline_mode<synchronous>, transform_indices = @transform_13, window_bounds = array<i64: 1, 256>}, {pipeline_mode = #tpu.pipeline_mode<synchronous>, transform_indices = @transform_14, window_bounds = array<i64: 256, 128>}, {pipeline_mode = #tpu.pipeline_mode<synchronous>, transform_indices = @transform_15, window_bounds = array<i64: 1, 128>}, {pipeline_mode = #tpu.pipeline_mode<synchronous>, transform_indices = @transform_16, window_bounds = array<i64: 1, 128>}, {pipeline_mode = #tpu.pipeline_mode<synchronous>, transform_indices = @transform_17, window_bounds = array<i64: 1, 128>}, {transform_indices = @transform_18, window_bounds = array<i64: 1, 16, 128>}]} {
    %c0 = arith.constant 0 : index
    %c0_0 = arith.constant 0 : index
    %c0_1 = arith.constant 0 : index
    %0 = vector.load %arg1[%c0, %c0_0, %c0_1] : memref<1x16x128xf32, #tpu.memory_space<vmem>>, vector<1x16x128xf32>
    %1 = vector.shape_cast %0 : vector<1x16x128xf32> to vector<16x128xf32>
    %2 = arith.truncf %1 : vector<16x128xf32> to vector<16x128xbf16>
    %c0_2 = arith.constant 0 : index
    %c0_3 = arith.constant 0 : index
    %3 = vector.load %arg3[%c0_2, %c0_3] : memref<128x128xbf16, #tpu.memory_space<vmem>>, vector<128x128xbf16>
    %cst = arith.constant dense<0.000000e+00> : vector<16x128xf32>
    %4 = tpu.matmul %2, %3, %cst {dimension_numbers = #tpu.dot_dimension_numbers<[1], [0], [0], [1], [0, 0, 1, 1], [], []>} : vector<16x128xbf16>, vector<128x128xbf16>, vector<16x128xf32> -> vector<16x128xf32>
    %c0_4 = arith.constant 0 : index
    %c0_5 = arith.constant 0 : index
    %5 = vector.load %arg4[%c0_4, %c0_5] : memref<1x128xf32, #tpu.memory_space<vmem>>, vector<1x128xf32>
    %6 = vector.broadcast %5 : vector<1x128xf32> to vector<16x128xf32>
    %7 = arith.addf %4, %6 : vector<16x128xf32>
    %cst_6 = arith.constant 2.500000e-01 : f32
    %8 = vector.broadcast %cst_6 : f32 to vector<16x128xf32>
    %9 = arith.mulf %7, %8 : vector<16x128xf32>
    %10 = arith.truncf %9 : vector<16x128xf32> to vector<16x128xbf16>
    %11 = vector.shape_cast %10 : vector<16x128xbf16> to vector<1x16x128xbf16>
    %c0_7 = arith.constant 0 : index
    %c0_8 = arith.constant 0 : index
    %12 = vector.load %arg5[%c0_7, %c0_8] : memref<128x128xbf16, #tpu.memory_space<vmem>>, vector<128x128xbf16>
    %cst_9 = arith.constant dense<0.000000e+00> : vector<16x128xf32>
    %13 = tpu.matmul %2, %12, %cst_9 {dimension_numbers = #tpu.dot_dimension_numbers<[1], [0], [0], [1], [0, 0, 1, 1], [], []>} : vector<16x128xbf16>, vector<128x128xbf16>, vector<16x128xf32> -> vector<16x128xf32>
    %c0_10 = arith.constant 0 : index
    %c0_11 = arith.constant 0 : index
    %14 = vector.load %arg6[%c0_10, %c0_11] : memref<1x128xf32, #tpu.memory_space<vmem>>, vector<1x128xf32>
    %15 = vector.broadcast %14 : vector<1x128xf32> to vector<16x128xf32>
    %16 = arith.addf %13, %15 : vector<16x128xf32>
    %17 = arith.truncf %16 : vector<16x128xf32> to vector<16x128xbf16>
    %18 = vector.shape_cast %17 : vector<16x128xbf16> to vector<1x16x128xbf16>
    %c0_12 = arith.constant 0 : index
    %c0_13 = arith.constant 0 : index
    %19 = vector.load %arg7[%c0_12, %c0_13] : memref<128x128xbf16, #tpu.memory_space<vmem>>, vector<128x128xbf16>
    %cst_14 = arith.constant dense<0.000000e+00> : vector<16x128xf32>
    %20 = tpu.matmul %2, %19, %cst_14 {dimension_numbers = #tpu.dot_dimension_numbers<[1], [0], [0], [1], [0, 0, 1, 1], [], []>} : vector<16x128xbf16>, vector<128x128xbf16>, vector<16x128xf32> -> vector<16x128xf32>
    %c0_15 = arith.constant 0 : index
    %c0_16 = arith.constant 0 : index
    %21 = vector.load %arg8[%c0_15, %c0_16] : memref<1x128xf32, #tpu.memory_space<vmem>>, vector<1x128xf32>
    %22 = vector.broadcast %21 : vector<1x128xf32> to vector<16x128xf32>
    %23 = arith.addf %20, %22 : vector<16x128xf32>
    %24 = arith.truncf %23 : vector<16x128xf32> to vector<16x128xbf16>
    %25 = vector.shape_cast %24 : vector<16x128xbf16> to vector<1x16x128xbf16>
    %c0_17 = arith.constant 0 : index
    %c0_18 = arith.constant 0 : index
    %c0_19 = arith.constant 0 : index
    %c0_20 = arith.constant 0 : index
    %26 = vector.load %arg2[%c0_17, %c0_18, %c0_19, %c0_20] : memref<1x1x1x16xf32, #tpu.memory_space<vmem>>, vector<1x1x1x16xf32>
    %27 = vector.shape_cast %26 : vector<1x1x1x16xf32> to vector<1x1x16xf32>
    %28 = vector.shape_cast %27 : vector<1x1x16xf32> to vector<1x1x16xf32>
    %29 = vector.broadcast %28 : vector<1x1x16xf32> to vector<1x16x16xf32>
    %30 = vector.extract_strided_slice %11 {offsets = [0, 0, 0], sizes = [1, 16, 16], strides = [1, 1, 1]} : vector<1x16x128xbf16> to vector<1x16x16xbf16>
    %31 = vector.extract_strided_slice %18 {offsets = [0, 0, 0], sizes = [1, 16, 16], strides = [1, 1, 1]} : vector<1x16x128xbf16> to vector<1x16x16xbf16>
    "tpu.trace_start"() <{level = 10 : i32, message = "bqd,bkd->bqk"}> : () -> ()
    %cst_21 = arith.constant dense<0.000000e+00> : vector<1x16x16xf32>
    %32 = tpu.matmul %30, %31, %cst_21 {dimension_numbers = #tpu.dot_dimension_numbers<[2], [2], [1], [1], [0, 0, 0, 1, 1, 1], [0], [0]>} : vector<1x16x16xbf16>, vector<1x16x16xbf16>, vector<1x16x16xf32> -> vector<1x16x16xf32>
    "tpu.trace_stop"() : () -> ()
    %33 = arith.addf %32, %29 : vector<1x16x16xf32>
    %cst_22 = arith.constant dense<0xFF800000> : vector<1x16xf32>
    %34 = vector.multi_reduction <maximumf>, %33, %cst_22 [2] : vector<1x16x16xf32> to vector<1x16xf32>
    %35 = vector.shape_cast %34 : vector<1x16xf32> to vector<1x16x1xf32>
    %36 = vector.broadcast %35 : vector<1x16x1xf32> to vector<1x16x16xf32>
    %37 = arith.subf %33, %36 : vector<1x16x16xf32>
    %38 = math.exp %37 : vector<1x16x16xf32>
    %cst_23 = arith.constant dense<0.000000e+00> : vector<1x16xf32>
    %39 = vector.multi_reduction <add>, %38, %cst_23 [2] : vector<1x16x16xf32> to vector<1x16xf32>
    %40 = vector.shape_cast %39 : vector<1x16xf32> to vector<1x16x1xf32>
    %41 = tpu.reciprocal %40 {approx = true} : vector<1x16x1xf32> -> vector<1x16x1xf32>
    %42 = vector.broadcast %41 : vector<1x16x1xf32> to vector<1x16x16xf32>
    %43 = arith.mulf %38, %42 : vector<1x16x16xf32>
    %44 = arith.truncf %43 : vector<1x16x16xf32> to vector<1x16x16xbf16>
    %45 = vector.extract_strided_slice %25 {offsets = [0, 0, 0], sizes = [1, 16, 16], strides = [1, 1, 1]} : vector<1x16x128xbf16> to vector<1x16x16xbf16>
    "tpu.trace_start"() <{level = 10 : i32, message = "bqk,bkd->bqd"}> : () -> ()
    %cst_24 = arith.constant dense<0.000000e+00> : vector<1x16x16xf32>
    %46 = tpu.matmul %44, %45, %cst_24 {dimension_numbers = #tpu.dot_dimension_numbers<[2], [1], [1], [2], [0, 0, 0, 1, 1, 2], [0], [0]>} : vector<1x16x16xbf16>, vector<1x16x16xbf16>, vector<1x16x16xf32> -> vector<1x16x16xf32>
    "tpu.trace_stop"() : () -> ()
    %47 = vector.extract_strided_slice %11 {offsets = [0, 0, 16], sizes = [1, 16, 16], strides = [1, 1, 1]} : vector<1x16x128xbf16> to vector<1x16x16xbf16>
    %48 = vector.extract_strided_slice %18 {offsets = [0, 0, 16], sizes = [1, 16, 16], strides = [1, 1, 1]} : vector<1x16x128xbf16> to vector<1x16x16xbf16>
    "tpu.trace_start"() <{level = 10 : i32, message = "bqd,bkd->bqk"}> : () -> ()
    %cst_25 = arith.constant dense<0.000000e+00> : vector<1x16x16xf32>
    %49 = tpu.matmul %47, %48, %cst_25 {dimension_numbers = #tpu.dot_dimension_numbers<[2], [2], [1], [1], [0, 0, 0, 1, 1, 1], [0], [0]>} : vector<1x16x16xbf16>, vector<1x16x16xbf16>, vector<1x16x16xf32> -> vector<1x16x16xf32>
    "tpu.trace_stop"() : () -> ()
    %50 = arith.addf %49, %29 : vector<1x16x16xf32>
    %cst_26 = arith.constant dense<0xFF800000> : vector<1x16xf32>
    %51 = vector.multi_reduction <maximumf>, %50, %cst_26 [2] : vector<1x16x16xf32> to vector<1x16xf32>
    %52 = vector.shape_cast %51 : vector<1x16xf32> to vector<1x16x1xf32>
    %53 = vector.broadcast %52 : vector<1x16x1xf32> to vector<1x16x16xf32>
    %54 = arith.subf %50, %53 : vector<1x16x16xf32>
    %55 = math.exp %54 : vector<1x16x16xf32>
    %cst_27 = arith.constant dense<0.000000e+00> : vector<1x16xf32>
    %56 = vector.multi_reduction <add>, %55, %cst_27 [2] : vector<1x16x16xf32> to vector<1x16xf32>
    %57 = vector.shape_cast %56 : vector<1x16xf32> to vector<1x16x1xf32>
    %58 = tpu.reciprocal %57 {approx = true} : vector<1x16x1xf32> -> vector<1x16x1xf32>
    %59 = vector.broadcast %58 : vector<1x16x1xf32> to vector<1x16x16xf32>
    %60 = arith.mulf %55, %59 : vector<1x16x16xf32>
    %61 = arith.truncf %60 : vector<1x16x16xf32> to vector<1x16x16xbf16>
    %62 = vector.extract_strided_slice %25 {offsets = [0, 0, 16], sizes = [1, 16, 16], strides = [1, 1, 1]} : vector<1x16x128xbf16> to vector<1x16x16xbf16>
    "tpu.trace_start"() <{level = 10 : i32, message = "bqk,bkd->bqd"}> : () -> ()
    %cst_28 = arith.constant dense<0.000000e+00> : vector<1x16x16xf32>
    %63 = tpu.matmul %61, %62, %cst_28 {dimension_numbers = #tpu.dot_dimension_numbers<[2], [1], [1], [2], [0, 0, 0, 1, 1, 2], [0], [0]>} : vector<1x16x16xbf16>, vector<1x16x16xbf16>, vector<1x16x16xf32> -> vector<1x16x16xf32>
    "tpu.trace_stop"() : () -> ()
    %64 = vector.extract_strided_slice %11 {offsets = [0, 0, 32], sizes = [1, 16, 16], strides = [1, 1, 1]} : vector<1x16x128xbf16> to vector<1x16x16xbf16>
    %65 = vector.extract_strided_slice %18 {offsets = [0, 0, 32], sizes = [1, 16, 16], strides = [1, 1, 1]} : vector<1x16x128xbf16> to vector<1x16x16xbf16>
    "tpu.trace_start"() <{level = 10 : i32, message = "bqd,bkd->bqk"}> : () -> ()
    %cst_29 = arith.constant dense<0.000000e+00> : vector<1x16x16xf32>
    %66 = tpu.matmul %64, %65, %cst_29 {dimension_numbers = #tpu.dot_dimension_numbers<[2], [2], [1], [1], [0, 0, 0, 1, 1, 1], [0], [0]>} : vector<1x16x16xbf16>, vector<1x16x16xbf16>, vector<1x16x16xf32> -> vector<1x16x16xf32>
    "tpu.trace_stop"() : () -> ()
    %67 = arith.addf %66, %29 : vector<1x16x16xf32>
    %cst_30 = arith.constant dense<0xFF800000> : vector<1x16xf32>
    %68 = vector.multi_reduction <maximumf>, %67, %cst_30 [2] : vector<1x16x16xf32> to vector<1x16xf32>
    %69 = vector.shape_cast %68 : vector<1x16xf32> to vector<1x16x1xf32>
    %70 = vector.broadcast %69 : vector<1x16x1xf32> to vector<1x16x16xf32>
    %71 = arith.subf %67, %70 : vector<1x16x16xf32>
    %72 = math.exp %71 : vector<1x16x16xf32>
    %cst_31 = arith.constant dense<0.000000e+00> : vector<1x16xf32>
    %73 = vector.multi_reduction <add>, %72, %cst_31 [2] : vector<1x16x16xf32> to vector<1x16xf32>
    %74 = vector.shape_cast %73 : vector<1x16xf32> to vector<1x16x1xf32>
    %75 = tpu.reciprocal %74 {approx = true} : vector<1x16x1xf32> -> vector<1x16x1xf32>
    %76 = vector.broadcast %75 : vector<1x16x1xf32> to vector<1x16x16xf32>
    %77 = arith.mulf %72, %76 : vector<1x16x16xf32>
    %78 = arith.truncf %77 : vector<1x16x16xf32> to vector<1x16x16xbf16>
    %79 = vector.extract_strided_slice %25 {offsets = [0, 0, 32], sizes = [1, 16, 16], strides = [1, 1, 1]} : vector<1x16x128xbf16> to vector<1x16x16xbf16>
    "tpu.trace_start"() <{level = 10 : i32, message = "bqk,bkd->bqd"}> : () -> ()
    %cst_32 = arith.constant dense<0.000000e+00> : vector<1x16x16xf32>
    %80 = tpu.matmul %78, %79, %cst_32 {dimension_numbers = #tpu.dot_dimension_numbers<[2], [1], [1], [2], [0, 0, 0, 1, 1, 2], [0], [0]>} : vector<1x16x16xbf16>, vector<1x16x16xbf16>, vector<1x16x16xf32> -> vector<1x16x16xf32>
    "tpu.trace_stop"() : () -> ()
    %81 = vector.extract_strided_slice %11 {offsets = [0, 0, 48], sizes = [1, 16, 16], strides = [1, 1, 1]} : vector<1x16x128xbf16> to vector<1x16x16xbf16>
    %82 = vector.extract_strided_slice %18 {offsets = [0, 0, 48], sizes = [1, 16, 16], strides = [1, 1, 1]} : vector<1x16x128xbf16> to vector<1x16x16xbf16>
    "tpu.trace_start"() <{level = 10 : i32, message = "bqd,bkd->bqk"}> : () -> ()
    %cst_33 = arith.constant dense<0.000000e+00> : vector<1x16x16xf32>
    %83 = tpu.matmul %81, %82, %cst_33 {dimension_numbers = #tpu.dot_dimension_numbers<[2], [2], [1], [1], [0, 0, 0, 1, 1, 1], [0], [0]>} : vector<1x16x16xbf16>, vector<1x16x16xbf16>, vector<1x16x16xf32> -> vector<1x16x16xf32>
    "tpu.trace_stop"() : () -> ()
    %84 = arith.addf %83, %29 : vector<1x16x16xf32>
    %cst_34 = arith.constant dense<0xFF800000> : vector<1x16xf32>
    %85 = vector.multi_reduction <maximumf>, %84, %cst_34 [2] : vector<1x16x16xf32> to vector<1x16xf32>
    %86 = vector.shape_cast %85 : vector<1x16xf32> to vector<1x16x1xf32>
    %87 = vector.broadcast %86 : vector<1x16x1xf32> to vector<1x16x16xf32>
    %88 = arith.subf %84, %87 : vector<1x16x16xf32>
    %89 = math.exp %88 : vector<1x16x16xf32>
    %cst_35 = arith.constant dense<0.000000e+00> : vector<1x16xf32>
    %90 = vector.multi_reduction <add>, %89, %cst_35 [2] : vector<1x16x16xf32> to vector<1x16xf32>
    %91 = vector.shape_cast %90 : vector<1x16xf32> to vector<1x16x1xf32>
    %92 = tpu.reciprocal %91 {approx = true} : vector<1x16x1xf32> -> vector<1x16x1xf32>
    %93 = vector.broadcast %92 : vector<1x16x1xf32> to vector<1x16x16xf32>
    %94 = arith.mulf %89, %93 : vector<1x16x16xf32>
    %95 = arith.truncf %94 : vector<1x16x16xf32> to vector<1x16x16xbf16>
    %96 = vector.extract_strided_slice %25 {offsets = [0, 0, 48], sizes = [1, 16, 16], strides = [1, 1, 1]} : vector<1x16x128xbf16> to vector<1x16x16xbf16>
    "tpu.trace_start"() <{level = 10 : i32, message = "bqk,bkd->bqd"}> : () -> ()
    %cst_36 = arith.constant dense<0.000000e+00> : vector<1x16x16xf32>
    %97 = tpu.matmul %95, %96, %cst_36 {dimension_numbers = #tpu.dot_dimension_numbers<[2], [1], [1], [2], [0, 0, 0, 1, 1, 2], [0], [0]>} : vector<1x16x16xbf16>, vector<1x16x16xbf16>, vector<1x16x16xf32> -> vector<1x16x16xf32>
    "tpu.trace_stop"() : () -> ()
    %98 = vector.extract_strided_slice %11 {offsets = [0, 0, 64], sizes = [1, 16, 16], strides = [1, 1, 1]} : vector<1x16x128xbf16> to vector<1x16x16xbf16>
    %99 = vector.extract_strided_slice %18 {offsets = [0, 0, 64], sizes = [1, 16, 16], strides = [1, 1, 1]} : vector<1x16x128xbf16> to vector<1x16x16xbf16>
    "tpu.trace_start"() <{level = 10 : i32, message = "bqd,bkd->bqk"}> : () -> ()
    %cst_37 = arith.constant dense<0.000000e+00> : vector<1x16x16xf32>
    %100 = tpu.matmul %98, %99, %cst_37 {dimension_numbers = #tpu.dot_dimension_numbers<[2], [2], [1], [1], [0, 0, 0, 1, 1, 1], [0], [0]>} : vector<1x16x16xbf16>, vector<1x16x16xbf16>, vector<1x16x16xf32> -> vector<1x16x16xf32>
    "tpu.trace_stop"() : () -> ()
    %101 = arith.addf %100, %29 : vector<1x16x16xf32>
    %cst_38 = arith.constant dense<0xFF800000> : vector<1x16xf32>
    %102 = vector.multi_reduction <maximumf>, %101, %cst_38 [2] : vector<1x16x16xf32> to vector<1x16xf32>
    %103 = vector.shape_cast %102 : vector<1x16xf32> to vector<1x16x1xf32>
    %104 = vector.broadcast %103 : vector<1x16x1xf32> to vector<1x16x16xf32>
    %105 = arith.subf %101, %104 : vector<1x16x16xf32>
    %106 = math.exp %105 : vector<1x16x16xf32>
    %cst_39 = arith.constant dense<0.000000e+00> : vector<1x16xf32>
    %107 = vector.multi_reduction <add>, %106, %cst_39 [2] : vector<1x16x16xf32> to vector<1x16xf32>
    %108 = vector.shape_cast %107 : vector<1x16xf32> to vector<1x16x1xf32>
    %109 = tpu.reciprocal %108 {approx = true} : vector<1x16x1xf32> -> vector<1x16x1xf32>
    %110 = vector.broadcast %109 : vector<1x16x1xf32> to vector<1x16x16xf32>
    %111 = arith.mulf %106, %110 : vector<1x16x16xf32>
    %112 = arith.truncf %111 : vector<1x16x16xf32> to vector<1x16x16xbf16>
    %113 = vector.extract_strided_slice %25 {offsets = [0, 0, 64], sizes = [1, 16, 16], strides = [1, 1, 1]} : vector<1x16x128xbf16> to vector<1x16x16xbf16>
    "tpu.trace_start"() <{level = 10 : i32, message = "bqk,bkd->bqd"}> : () -> ()
    %cst_40 = arith.constant dense<0.000000e+00> : vector<1x16x16xf32>
    %114 = tpu.matmul %112, %113, %cst_40 {dimension_numbers = #tpu.dot_dimension_numbers<[2], [1], [1], [2], [0, 0, 0, 1, 1, 2], [0], [0]>} : vector<1x16x16xbf16>, vector<1x16x16xbf16>, vector<1x16x16xf32> -> vector<1x16x16xf32>
    "tpu.trace_stop"() : () -> ()
    %115 = vector.extract_strided_slice %11 {offsets = [0, 0, 80], sizes = [1, 16, 16], strides = [1, 1, 1]} : vector<1x16x128xbf16> to vector<1x16x16xbf16>
    %116 = vector.extract_strided_slice %18 {offsets = [0, 0, 80], sizes = [1, 16, 16], strides = [1, 1, 1]} : vector<1x16x128xbf16> to vector<1x16x16xbf16>
    "tpu.trace_start"() <{level = 10 : i32, message = "bqd,bkd->bqk"}> : () -> ()
    %cst_41 = arith.constant dense<0.000000e+00> : vector<1x16x16xf32>
    %117 = tpu.matmul %115, %116, %cst_41 {dimension_numbers = #tpu.dot_dimension_numbers<[2], [2], [1], [1], [0, 0, 0, 1, 1, 1], [0], [0]>} : vector<1x16x16xbf16>, vector<1x16x16xbf16>, vector<1x16x16xf32> -> vector<1x16x16xf32>
    "tpu.trace_stop"() : () -> ()
    %118 = arith.addf %117, %29 : vector<1x16x16xf32>
    %cst_42 = arith.constant dense<0xFF800000> : vector<1x16xf32>
    %119 = vector.multi_reduction <maximumf>, %118, %cst_42 [2] : vector<1x16x16xf32> to vector<1x16xf32>
    %120 = vector.shape_cast %119 : vector<1x16xf32> to vector<1x16x1xf32>
    %121 = vector.broadcast %120 : vector<1x16x1xf32> to vector<1x16x16xf32>
    %122 = arith.subf %118, %121 : vector<1x16x16xf32>
    %123 = math.exp %122 : vector<1x16x16xf32>
    %cst_43 = arith.constant dense<0.000000e+00> : vector<1x16xf32>
    %124 = vector.multi_reduction <add>, %123, %cst_43 [2] : vector<1x16x16xf32> to vector<1x16xf32>
    %125 = vector.shape_cast %124 : vector<1x16xf32> to vector<1x16x1xf32>
    %126 = tpu.reciprocal %125 {approx = true} : vector<1x16x1xf32> -> vector<1x16x1xf32>
    %127 = vector.broadcast %126 : vector<1x16x1xf32> to vector<1x16x16xf32>
    %128 = arith.mulf %123, %127 : vector<1x16x16xf32>
    %129 = arith.truncf %128 : vector<1x16x16xf32> to vector<1x16x16xbf16>
    %130 = vector.extract_strided_slice %25 {offsets = [0, 0, 80], sizes = [1, 16, 16], strides = [1, 1, 1]} : vector<1x16x128xbf16> to vector<1x16x16xbf16>
    "tpu.trace_start"() <{level = 10 : i32, message = "bqk,bkd->bqd"}> : () -> ()
    %cst_44 = arith.constant dense<0.000000e+00> : vector<1x16x16xf32>
    %131 = tpu.matmul %129, %130, %cst_44 {dimension_numbers = #tpu.dot_dimension_numbers<[2], [1], [1], [2], [0, 0, 0, 1, 1, 2], [0], [0]>} : vector<1x16x16xbf16>, vector<1x16x16xbf16>, vector<1x16x16xf32> -> vector<1x16x16xf32>
    "tpu.trace_stop"() : () -> ()
    %132 = vector.extract_strided_slice %11 {offsets = [0, 0, 96], sizes = [1, 16, 16], strides = [1, 1, 1]} : vector<1x16x128xbf16> to vector<1x16x16xbf16>
    %133 = vector.extract_strided_slice %18 {offsets = [0, 0, 96], sizes = [1, 16, 16], strides = [1, 1, 1]} : vector<1x16x128xbf16> to vector<1x16x16xbf16>
    "tpu.trace_start"() <{level = 10 : i32, message = "bqd,bkd->bqk"}> : () -> ()
    %cst_45 = arith.constant dense<0.000000e+00> : vector<1x16x16xf32>
    %134 = tpu.matmul %132, %133, %cst_45 {dimension_numbers = #tpu.dot_dimension_numbers<[2], [2], [1], [1], [0, 0, 0, 1, 1, 1], [0], [0]>} : vector<1x16x16xbf16>, vector<1x16x16xbf16>, vector<1x16x16xf32> -> vector<1x16x16xf32>
    "tpu.trace_stop"() : () -> ()
    %135 = arith.addf %134, %29 : vector<1x16x16xf32>
    %cst_46 = arith.constant dense<0xFF800000> : vector<1x16xf32>
    %136 = vector.multi_reduction <maximumf>, %135, %cst_46 [2] : vector<1x16x16xf32> to vector<1x16xf32>
    %137 = vector.shape_cast %136 : vector<1x16xf32> to vector<1x16x1xf32>
    %138 = vector.broadcast %137 : vector<1x16x1xf32> to vector<1x16x16xf32>
    %139 = arith.subf %135, %138 : vector<1x16x16xf32>
    %140 = math.exp %139 : vector<1x16x16xf32>
    %cst_47 = arith.constant dense<0.000000e+00> : vector<1x16xf32>
    %141 = vector.multi_reduction <add>, %140, %cst_47 [2] : vector<1x16x16xf32> to vector<1x16xf32>
    %142 = vector.shape_cast %141 : vector<1x16xf32> to vector<1x16x1xf32>
    %143 = tpu.reciprocal %142 {approx = true} : vector<1x16x1xf32> -> vector<1x16x1xf32>
    %144 = vector.broadcast %143 : vector<1x16x1xf32> to vector<1x16x16xf32>
    %145 = arith.mulf %140, %144 : vector<1x16x16xf32>
    %146 = arith.truncf %145 : vector<1x16x16xf32> to vector<1x16x16xbf16>
    %147 = vector.extract_strided_slice %25 {offsets = [0, 0, 96], sizes = [1, 16, 16], strides = [1, 1, 1]} : vector<1x16x128xbf16> to vector<1x16x16xbf16>
    "tpu.trace_start"() <{level = 10 : i32, message = "bqk,bkd->bqd"}> : () -> ()
    %cst_48 = arith.constant dense<0.000000e+00> : vector<1x16x16xf32>
    %148 = tpu.matmul %146, %147, %cst_48 {dimension_numbers = #tpu.dot_dimension_numbers<[2], [1], [1], [2], [0, 0, 0, 1, 1, 2], [0], [0]>} : vector<1x16x16xbf16>, vector<1x16x16xbf16>, vector<1x16x16xf32> -> vector<1x16x16xf32>
    "tpu.trace_stop"() : () -> ()
    %149 = vector.extract_strided_slice %11 {offsets = [0, 0, 112], sizes = [1, 16, 16], strides = [1, 1, 1]} : vector<1x16x128xbf16> to vector<1x16x16xbf16>
    %150 = vector.extract_strided_slice %18 {offsets = [0, 0, 112], sizes = [1, 16, 16], strides = [1, 1, 1]} : vector<1x16x128xbf16> to vector<1x16x16xbf16>
    "tpu.trace_start"() <{level = 10 : i32, message = "bqd,bkd->bqk"}> : () -> ()
    %cst_49 = arith.constant dense<0.000000e+00> : vector<1x16x16xf32>
    %151 = tpu.matmul %149, %150, %cst_49 {dimension_numbers = #tpu.dot_dimension_numbers<[2], [2], [1], [1], [0, 0, 0, 1, 1, 1], [0], [0]>} : vector<1x16x16xbf16>, vector<1x16x16xbf16>, vector<1x16x16xf32> -> vector<1x16x16xf32>
    "tpu.trace_stop"() : () -> ()
    %152 = arith.addf %151, %29 : vector<1x16x16xf32>
    %cst_50 = arith.constant dense<0xFF800000> : vector<1x16xf32>
    %153 = vector.multi_reduction <maximumf>, %152, %cst_50 [2] : vector<1x16x16xf32> to vector<1x16xf32>
    %154 = vector.shape_cast %153 : vector<1x16xf32> to vector<1x16x1xf32>
    %155 = vector.broadcast %154 : vector<1x16x1xf32> to vector<1x16x16xf32>
    %156 = arith.subf %152, %155 : vector<1x16x16xf32>
    %157 = math.exp %156 : vector<1x16x16xf32>
    %cst_51 = arith.constant dense<0.000000e+00> : vector<1x16xf32>
    %158 = vector.multi_reduction <add>, %157, %cst_51 [2] : vector<1x16x16xf32> to vector<1x16xf32>
    %159 = vector.shape_cast %158 : vector<1x16xf32> to vector<1x16x1xf32>
    %160 = tpu.reciprocal %159 {approx = true} : vector<1x16x1xf32> -> vector<1x16x1xf32>
    %161 = vector.broadcast %160 : vector<1x16x1xf32> to vector<1x16x16xf32>
    %162 = arith.mulf %157, %161 : vector<1x16x16xf32>
    %163 = arith.truncf %162 : vector<1x16x16xf32> to vector<1x16x16xbf16>
    %164 = vector.extract_strided_slice %25 {offsets = [0, 0, 112], sizes = [1, 16, 16], strides = [1, 1, 1]} : vector<1x16x128xbf16> to vector<1x16x16xbf16>
    "tpu.trace_start"() <{level = 10 : i32, message = "bqk,bkd->bqd"}> : () -> ()
    %cst_52 = arith.constant dense<0.000000e+00> : vector<1x16x16xf32>
    %165 = tpu.matmul %163, %164, %cst_52 {dimension_numbers = #tpu.dot_dimension_numbers<[2], [1], [1], [2], [0, 0, 0, 1, 1, 2], [0], [0]>} : vector<1x16x16xbf16>, vector<1x16x16xbf16>, vector<1x16x16xf32> -> vector<1x16x16xf32>
    "tpu.trace_stop"() : () -> ()
    %166 = tpu.concatenate %46, %63, %80, %97, %114, %131, %148, %165 in 2 : vector<1x16x16xf32>, vector<1x16x16xf32>, vector<1x16x16xf32>, vector<1x16x16xf32>, vector<1x16x16xf32>, vector<1x16x16xf32>, vector<1x16x16xf32>, vector<1x16x16xf32> -> vector<1x16x128xf32>
    %167 = vector.shape_cast %166 : vector<1x16x128xf32> to vector<16x128xf32>
    %168 = arith.truncf %167 : vector<16x128xf32> to vector<16x128xbf16>
    %c0_53 = arith.constant 0 : index
    %c0_54 = arith.constant 0 : index
    %169 = vector.load %arg9[%c0_53, %c0_54] : memref<128x128xbf16, #tpu.memory_space<vmem>>, vector<128x128xbf16>
    %cst_55 = arith.constant dense<0.000000e+00> : vector<16x128xf32>
    %170 = tpu.matmul %168, %169, %cst_55 {dimension_numbers = #tpu.dot_dimension_numbers<[1], [0], [0], [1], [0, 0, 1, 1], [], []>} : vector<16x128xbf16>, vector<128x128xbf16>, vector<16x128xf32> -> vector<16x128xf32>
    %c0_56 = arith.constant 0 : index
    %c0_57 = arith.constant 0 : index
    %171 = vector.load %arg10[%c0_56, %c0_57] : memref<1x128xf32, #tpu.memory_space<vmem>>, vector<1x128xf32>
    %172 = vector.broadcast %171 : vector<1x128xf32> to vector<16x128xf32>
    %173 = arith.addf %170, %172 : vector<16x128xf32>
    %174 = arith.addf %173, %1 : vector<16x128xf32>
    %c0_58 = arith.constant 0 : index
    %c0_59 = arith.constant 0 : index
    %175 = vector.load %arg11[%c0_58, %c0_59] : memref<1x128xf32, #tpu.memory_space<vmem>>, vector<1x128xf32>
    %c0_60 = arith.constant 0 : index
    %c0_61 = arith.constant 0 : index
    %176 = vector.load %arg12[%c0_60, %c0_61] : memref<1x128xf32, #tpu.memory_space<vmem>>, vector<1x128xf32>
    %cst_62 = arith.constant dense<0.000000e+00> : vector<16xf32>
    %177 = vector.multi_reduction <add>, %174, %cst_62 [1] : vector<16x128xf32> to vector<16xf32>
    %178 = vector.shape_cast %177 : vector<16xf32> to vector<16x1xf32>
    %cst_63 = arith.constant 1.280000e+02 : f32
    %179 = vector.broadcast %cst_63 : f32 to vector<16x1xf32>
    %180 = arith.divf %178, %179 : vector<16x1xf32>
    %181 = vector.broadcast %180 : vector<16x1xf32> to vector<16x128xf32>
    %182 = arith.subf %174, %181 : vector<16x128xf32>
    %183 = arith.mulf %182, %182 : vector<16x128xf32>
    %cst_64 = arith.constant dense<0.000000e+00> : vector<16xf32>
    %184 = vector.multi_reduction <add>, %183, %cst_64 [1] : vector<16x128xf32> to vector<16xf32>
    %185 = vector.shape_cast %184 : vector<16xf32> to vector<16x1xf32>
    %cst_65 = arith.constant 1.280000e+02 : f32
    %186 = vector.broadcast %cst_65 : f32 to vector<16x1xf32>
    %187 = arith.divf %185, %186 : vector<16x1xf32>
    %cst_66 = arith.constant 9.99999996E-13 : f32
    %188 = vector.broadcast %cst_66 : f32 to vector<16x1xf32>
    %189 = arith.addf %187, %188 : vector<16x1xf32>
    %190 = math.rsqrt %189 : vector<16x1xf32>
    %191 = vector.broadcast %190 : vector<16x1xf32> to vector<16x128xf32>
    %192 = arith.mulf %182, %191 : vector<16x128xf32>
    %193 = vector.broadcast %175 : vector<1x128xf32> to vector<16x128xf32>
    %194 = arith.mulf %193, %192 : vector<16x128xf32>
    %195 = vector.broadcast %176 : vector<1x128xf32> to vector<16x128xf32>
    %196 = arith.addf %194, %195 : vector<16x128xf32>
    %197 = arith.truncf %196 : vector<16x128xf32> to vector<16x128xbf16>
    %c0_67 = arith.constant 0 : index
    %c0_68 = arith.constant 0 : index
    %198 = vector.load %arg13[%c0_67, %c0_68] : memref<128x256xbf16, #tpu.memory_space<vmem>>, vector<128x256xbf16>
    %cst_69 = arith.constant dense<0.000000e+00> : vector<16x256xf32>
    %199 = tpu.matmul %197, %198, %cst_69 {dimension_numbers = #tpu.dot_dimension_numbers<[1], [0], [0], [1], [0, 0, 1, 1], [], []>} : vector<16x128xbf16>, vector<128x256xbf16>, vector<16x256xf32> -> vector<16x256xf32>
    %c0_70 = arith.constant 0 : index
    %c0_71 = arith.constant 0 : index
    %200 = vector.load %arg14[%c0_70, %c0_71] : memref<1x256xf32, #tpu.memory_space<vmem>>, vector<1x256xf32>
    %201 = vector.broadcast %200 : vector<1x256xf32> to vector<16x256xf32>
    %202 = arith.addf %199, %201 : vector<16x256xf32>
    %cst_72 = arith.constant 5.000000e-01 : f32
    %203 = vector.broadcast %cst_72 : f32 to vector<16x256xf32>
    %204 = arith.mulf %203, %202 : vector<16x256xf32>
    %cst_73 = arith.constant 4.471500e-02 : f32
    %205 = vector.broadcast %cst_73 : f32 to vector<16x256xf32>
    %206 = arith.mulf %205, %202 : vector<16x256xf32>
    %207 = arith.mulf %206, %202 : vector<16x256xf32>
    %208 = arith.mulf %207, %202 : vector<16x256xf32>
    %209 = arith.addf %202, %208 : vector<16x256xf32>
    %cst_74 = arith.constant 0.797884583 : f32
    %210 = vector.broadcast %cst_74 : f32 to vector<16x256xf32>
    %211 = arith.mulf %210, %209 : vector<16x256xf32>
    %212 = math.tanh %211 : vector<16x256xf32>
    %cst_75 = arith.constant 1.000000e+00 : f32
    %213 = vector.broadcast %cst_75 : f32 to vector<16x256xf32>
    %214 = arith.addf %213, %212 : vector<16x256xf32>
    %215 = arith.mulf %204, %214 : vector<16x256xf32>
    %216 = arith.truncf %215 : vector<16x256xf32> to vector<16x256xbf16>
    %c0_76 = arith.constant 0 : index
    %c0_77 = arith.constant 0 : index
    %217 = vector.load %arg15[%c0_76, %c0_77] : memref<256x128xbf16, #tpu.memory_space<vmem>>, vector<256x128xbf16>
    %cst_78 = arith.constant dense<0.000000e+00> : vector<16x128xf32>
    %218 = tpu.matmul %216, %217, %cst_78 {dimension_numbers = #tpu.dot_dimension_numbers<[1], [0], [0], [1], [0, 0, 1, 1], [], []>} : vector<16x256xbf16>, vector<256x128xbf16>, vector<16x128xf32> -> vector<16x128xf32>
    %c0_79 = arith.constant 0 : index
    %c0_80 = arith.constant 0 : index
    %219 = vector.load %arg16[%c0_79, %c0_80] : memref<1x128xf32, #tpu.memory_space<vmem>>, vector<1x128xf32>
    %220 = vector.broadcast %219 : vector<1x128xf32> to vector<16x128xf32>
    %221 = arith.addf %218, %220 : vector<16x128xf32>
    %222 = arith.addf %221, %196 : vector<16x128xf32>
    %c0_81 = arith.constant 0 : index
    %c0_82 = arith.constant 0 : index
    %223 = vector.load %arg17[%c0_81, %c0_82] : memref<1x128xf32, #tpu.memory_space<vmem>>, vector<1x128xf32>
    %c0_83 = arith.constant 0 : index
    %c0_84 = arith.constant 0 : index
    %224 = vector.load %arg18[%c0_83, %c0_84] : memref<1x128xf32, #tpu.memory_space<vmem>>, vector<1x128xf32>
    %cst_85 = arith.constant dense<0.000000e+00> : vector<16xf32>
    %225 = vector.multi_reduction <add>, %222, %cst_85 [1] : vector<16x128xf32> to vector<16xf32>
    %226 = vector.shape_cast %225 : vector<16xf32> to vector<16x1xf32>
    %cst_86 = arith.constant 1.280000e+02 : f32
    %227 = vector.broadcast %cst_86 : f32 to vector<16x1xf32>
    %228 = arith.divf %226, %227 : vector<16x1xf32>
    %229 = vector.broadcast %228 : vector<16x1xf32> to vector<16x128xf32>
    %230 = arith.subf %222, %229 : vector<16x128xf32>
    %231 = arith.mulf %230, %230 : vector<16x128xf32>
    %cst_87 = arith.constant dense<0.000000e+00> : vector<16xf32>
    %232 = vector.multi_reduction <add>, %231, %cst_87 [1] : vector<16x128xf32> to vector<16xf32>
    %233 = vector.shape_cast %232 : vector<16xf32> to vector<16x1xf32>
    %cst_88 = arith.constant 1.280000e+02 : f32
    %234 = vector.broadcast %cst_88 : f32 to vector<16x1xf32>
    %235 = arith.divf %233, %234 : vector<16x1xf32>
    %cst_89 = arith.constant 9.99999996E-13 : f32
    %236 = vector.broadcast %cst_89 : f32 to vector<16x1xf32>
    %237 = arith.addf %235, %236 : vector<16x1xf32>
    %238 = math.rsqrt %237 : vector<16x1xf32>
    %239 = vector.broadcast %238 : vector<16x1xf32> to vector<16x128xf32>
    %240 = arith.mulf %230, %239 : vector<16x128xf32>
    %241 = vector.broadcast %223 : vector<1x128xf32> to vector<16x128xf32>
    %242 = arith.mulf %241, %240 : vector<16x128xf32>
    %243 = vector.broadcast %224 : vector<1x128xf32> to vector<16x128xf32>
    %244 = arith.addf %242, %243 : vector<16x128xf32>
    %245 = vector.shape_cast %244 : vector<16x128xf32> to vector<1x16x128xf32>
    %c0_90 = arith.constant 0 : index
    %c0_91 = arith.constant 0 : index
    %c0_92 = arith.constant 0 : index
    %246 = vector.load %arg19[%c0_90, %c0_91, %c0_92] : memref<1x16x128xf32, #tpu.memory_space<vmem>>, vector<1x16x128xf32>
    tpu.vector_store %arg19[%c0_90, %c0_91, %c0_92], %245 {strides = array<i32>} : memref<1x16x128xf32, #tpu.memory_space<vmem>>, vector<1x16x128xf32>,
    return
  }
  func.func @transform_0(%arg0: i32) -> (i32, i32, i32) {
    %c0_i32 = arith.constant 0 : i32
    %c0_i32_0 = arith.constant 0 : i32
    %c0_i32_1 = arith.constant 0 : i32
    return %arg0, %c0_i32, %c0_i32_0 : i32, i32, i32
  }
  func.func @transform_1(%arg0: i32) -> (i32, i32, i32, i32) {
    %c0_i32 = arith.constant 0 : i32
    %c0_i32_0 = arith.constant 0 : i32
    %c0_i32_1 = arith.constant 0 : i32
    %c0_i32_2 = arith.constant 0 : i32
    return %arg0, %c0_i32, %c0_i32_0, %c0_i32_1 : i32, i32, i32, i32
  }
  func.func @transform_2(%arg0: i32) -> (i32, i32) {
    %c0_i32 = arith.constant 0 : i32
    %c0_i32_0 = arith.constant 0 : i32
    %c0_i32_1 = arith.constant 0 : i32
    return %c0_i32, %c0_i32_0 : i32, i32
  }
  func.func @transform_3(%arg0: i32) -> (i32, i32) {
    %c0_i32 = arith.constant 0 : i32
    %c0_i32_0 = arith.constant 0 : i32
    %c0_i32_1 = arith.constant 0 : i32
    return %c0_i32, %c0_i32_0 : i32, i32
  }
  func.func @transform_4(%arg0: i32) -> (i32, i32) {
    %c0_i32 = arith.constant 0 : i32
    %c0_i32_0 = arith.constant 0 : i32
    %c0_i32_1 = arith.constant 0 : i32
    return %c0_i32, %c0_i32_0 : i32, i32
  }
  func.func @transform_5(%arg0: i32) -> (i32, i32) {
    %c0_i32 = arith.constant 0 : i32
    %c0_i32_0 = arith.constant 0 : i32
    %c0_i32_1 = arith.constant 0 : i32
    return %c0_i32, %c0_i32_0 : i32, i32
  }
  func.func @transform_6(%arg0: i32) -> (i32, i32) {
    %c0_i32 = arith.constant 0 : i32
    %c0_i32_0 = arith.constant 0 : i32
    %c0_i32_1 = arith.constant 0 : i32
    return %c0_i32, %c0_i32_0 : i32, i32
  }
  func.func @transform_7(%arg0: i32) -> (i32, i32) {
    %c0_i32 = arith.constant 0 : i32
    %c0_i32_0 = arith.constant 0 : i32
    %c0_i32_1 = arith.constant 0 : i32
    return %c0_i32, %c0_i32_0 : i32, i32
  }
  func.func @transform_8(%arg0: i32) -> (i32, i32) {
    %c0_i32 = arith.constant 0 : i32
    %c0_i32_0 = arith.constant 0 : i32
    %c0_i32_1 = arith.constant 0 : i32
    return %c0_i32, %c0_i32_0 : i32, i32
  }
  func.func @transform_9(%arg0: i32) -> (i32, i32) {
    %c0_i32 = arith.constant 0 : i32
    %c0_i32_0 = arith.constant 0 : i32
    %c0_i32_1 = arith.constant 0 : i32
    return %c0_i32, %c0_i32_0 : i32, i32
  }
  func.func @transform_10(%arg0: i32) -> (i32, i32) {
    %c0_i32 = arith.constant 0 : i32
    %c0_i32_0 = arith.constant 0 : i32
    %c0_i32_1 = arith.constant 0 : i32
    return %c0_i32, %c0_i32_0 : i32, i32
  }
  func.func @transform_11(%arg0: i32) -> (i32, i32) {
    %c0_i32 = arith.constant 0 : i32
    %c0_i32_0 = arith.constant 0 : i32
    %c0_i32_1 = arith.constant 0 : i32
    return %c0_i32, %c0_i32_0 : i32, i32
  }
  func.func @transform_12(%arg0: i32) -> (i32, i32) {
    %c0_i32 = arith.constant 0 : i32
    %c0_i32_0 = arith.constant 0 : i32
    %c0_i32_1 = arith.constant 0 : i32
    return %c0_i32, %c0_i32_0 : i32, i32
  }
  func.func @transform_13(%arg0: i32) -> (i32, i32) {
    %c0_i32 = arith.constant 0 : i32
    %c0_i32_0 = arith.constant 0 : i32
    %c0_i32_1 = arith.constant 0 : i32
    return %c0_i32, %c0_i32_0 : i32, i32
  }
  func.func @transform_14(%arg0: i32) -> (i32, i32) {
    %c0_i32 = arith.constant 0 : i32
    %c0_i32_0 = arith.constant 0 : i32
    %c0_i32_1 = arith.constant 0 : i32
    return %c0_i32, %c0_i32_0 : i32, i32
  }
  func.func @transform_15(%arg0: i32) -> (i32, i32) {
    %c0_i32 = arith.constant 0 : i32
    %c0_i32_0 = arith.constant 0 : i32
    %c0_i32_1 = arith.constant 0 : i32
    return %c0_i32, %c0_i32_0 : i32, i32
  }
  func.func @transform_16(%arg0: i32) -> (i32, i32) {
    %c0_i32 = arith.constant 0 : i32
    %c0_i32_0 = arith.constant 0 : i32
    %c0_i32_1 = arith.constant 0 : i32
    return %c0_i32, %c0_i32_0 : i32, i32
  }
  func.func @transform_17(%arg0: i32) -> (i32, i32) {
    %c0_i32 = arith.constant 0 : i32
    %c0_i32_0 = arith.constant 0 : i32
    %c0_i32_1 = arith.constant 0 : i32
    return %c0_i32, %c0_i32_0 : i32, i32
  }
  func.func @transform_18(%arg0: i32) -> (i32, i32, i32) {
    %c0_i32 = arith.constant 0 : i32
    %c0_i32_0 = arith.constant 0 : i32
    %c0_i32_1 = arith.constant 0 : i32
    return %arg0, %c0_i32, %c0_i32_0 : i32, i32, i32
  }
}

module attributes {stable_mosaic.version = 11 : i64} {
  func.func @bert_layer_kernel(%arg0: i32, %arg1: memref<1x16x128xf32, #tpu.memory_space<vmem>>, %arg2: memref<1x1x1x16xf32, #tpu.memory_space<vmem>>, %arg3: memref<128x128xbf16, #tpu.memory_space<vmem>>, %arg4: memref<1x128xf32, #tpu.memory_space<vmem>>, %arg5: memref<128x128xbf16, #tpu.memory_space<vmem>>, %arg6: memref<1x128xf32, #tpu.memory_space<vmem>>, %arg7: memref<128x128xbf16, #tpu.memory_space<vmem>>, %arg8: memref<1x128xf32, #tpu.memory_space<vmem>>, %arg9: memref<128x128xbf16, #tpu.memory_space<vmem>>, %arg10: memref<1x128xf32, #tpu.memory_space<vmem>>, %arg11: memref<1x128xf32, #tpu.memory_space<vmem>>, %arg12: memref<1x128xf32, #tpu.memory_space<vmem>>, %arg13: memref<128x256xbf16, #tpu.memory_space<vmem>>, %arg14: memref<1x256xf32, #tpu.memory_space<vmem>>, %arg15: memref<256x128xbf16, #tpu.memory_space<vmem>>, %arg16: memref<1x128xf32, #tpu.memory_space<vmem>>, %arg17: memref<1x128xf32, #tpu.memory_space<vmem>>, %arg18: memref<1x128xf32, #tpu.memory_space<vmem>>, %arg19: memref<1x16x128xf32, #tpu.memory_space<vmem>>) attributes {dimension_semantics = [#tpu.dimension_semantics<parallel>], iteration_bounds = array<i64: 2>, scalar_prefetch = 0 : i64, scratch_operands = 0 : i64, tpu.core_type = #tpu.core_type<tc>, window_params = [{transform_indices = @transform_0, window_bounds = array<i64: 1, 16, 128>}, {transform_indices = @transform_1, window_bounds = array<i64: 1, 1, 1, 16>}, {pipeline_mode = #tpu.pipeline_mode<synchronous>, transform_indices = @transform_2, window_bounds = array<i64: 128, 128>}, {pipeline_mode = #tpu.pipeline_mode<synchronous>, transform_indices = @transform_3, window_bounds = array<i64: 1, 128>}, {pipeline_mode = #tpu.pipeline_mode<synchronous>, transform_indices = @transform_4, window_bounds = array<i64: 128, 128>}, {pipeline_mode = #tpu.pipeline_mode<synchronous>, transform_indices = @transform_5, window_bounds = array<i64: 1, 128>}, {pipeline_mode = #tpu.pipeline_mode<synchronous>, transform_indices = @transform_6, window_bounds = array<i64: 128, 128>}, {pipeline_mode = #tpu.pipeline_mode<synchronous>, transform_indices = @transform_7, window_bounds = array<i64: 1, 128>}, {pipeline_mode = #tpu.pipeline_mode<synchronous>, transform_indices = @transform_8, window_bounds = array<i64: 128, 128>}, {pipeline_mode = #tpu.pipeline_mode<synchronous>, transform_indices = @transform_9, window_bounds = array<i64: 1, 128>}, {pipeline_mode = #tpu.pipeline_mode<synchronous>, transform_indices = @transform_10, window_bounds = array<i64: 1, 128>}, {pipeline_mode = #tpu.pipeline_mode<synchronous>, transform_indices = @transform_11, window_bounds = array<i64: 1, 128>}, {pipeline_mode = #tpu.pipeline_mode<synchronous>, transform_indices = @transform_12, window_bounds = array<i64: 128, 256>}, {pipeline_mode = #tpu.pipeline_mode<synchronous>, transform_indices = @transform_13, window_bounds = array<i64: 1, 256>}, {pipeline_mode = #tpu.pipeline_mode<synchronous>, transform_indices = @transform_14, window_bounds = array<i64: 256, 128>}, {pipeline_mode = #tpu.pipeline_mode<synchronous>, transform_indices = @transform_15, window_bounds = array<i64: 1, 128>}, {pipeline_mode = #tpu.pipeline_mode<synchronous>, transform_indices = @transform_16, window_bounds = array<i64: 1, 128>}, {pipeline_mode = #tpu.pipeline_mode<synchronous>, transform_indices = @transform_17, window_bounds = array<i64: 1, 128>}, {transform_indices = @transform_18, window_bounds = array<i64: 1, 16, 128>}]} {
    %c0 = arith.constant 0 : index
    %c0_0 = arith.constant 0 : index
    %c0_1 = arith.constant 0 : index
    %0 = vector.load %arg1[%c0, %c0_0, %c0_1] : memref<1x16x128xf32, #tpu.memory_space<vmem>>, vector<1x16x128xf32>
    %1 = vector.shape_cast %0 : vector<1x16x128xf32> to vector<16x128xf32>
    %2 = arith.truncf %1 : vector<16x128xf32> to vector<16x128xbf16>
    %c0_2 = arith.constant 0 : index
    %c0_3 = arith.constant 0 : index
    %3 = vector.load %arg3[%c0_2, %c0_3] : memref<128x128xbf16, #tpu.memory_space<vmem>>, vector<128x128xbf16>
    %cst = arith.constant dense<0.000000e+00> : vector<16x128xf32>
    %4 = tpu.matmul %2, %3, %cst {dimension_numbers = #tpu.dot_dimension_numbers<[1], [0], [0], [1], [0, 0, 1, 1], [], []>} : vector<16x128xbf16>, vector<128x128xbf16>, vector<16x128xf32> -> vector<16x128xf32>
    %c0_4 = arith.constant 0 : index
    %c0_5 = arith.constant 0 : index
    %5 = vector.load %arg4[%c0_4, %c0_5] : memref<1x128xf32, #tpu.memory_space<vmem>>, vector<1x128xf32>
    %6 = vector.broadcast %5 : vector<1x128xf32> to vector<16x128xf32>
    %7 = arith.addf %4, %6 : vector<16x128xf32>
    %cst_6 = arith.constant 2.500000e-01 : f32
    %8 = vector.broadcast %cst_6 : f32 to vector<16x128xf32>
    %9 = arith.mulf %7, %8 : vector<16x128xf32>
    %10 = arith.truncf %9 : vector<16x128xf32> to vector<16x128xbf16>
    %11 = vector.shape_cast %10 : vector<16x128xbf16> to vector<1x16x128xbf16>
    %c0_7 = arith.constant 0 : index
    %c0_8 = arith.constant 0 : index
    %12 = vector.load %arg5[%c0_7, %c0_8] : memref<128x128xbf16, #tpu.memory_space<vmem>>, vector<128x128xbf16>
    %cst_9 = arith.constant dense<0.000000e+00> : vector<16x128xf32>
    %13 = tpu.matmul %2, %12, %cst_9 {dimension_numbers = #tpu.dot_dimension_numbers<[1], [0], [0], [1], [0, 0, 1, 1], [], []>} : vector<16x128xbf16>, vector<128x128xbf16>, vector<16x128xf32> -> vector<16x128xf32>
    %c0_10 = arith.constant 0 : index
    %c0_11 = arith.constant 0 : index
    %14 = vector.load %arg6[%c0_10, %c0_11] : memref<1x128xf32, #tpu.memory_space<vmem>>, vector<1x128xf32>
    %15 = vector.broadcast %14 : vector<1x128xf32> to vector<16x128xf32>
    %16 = arith.addf %13, %15 : vector<16x128xf32>
    %17 = arith.truncf %16 : vector<16x128xf32> to vector<16x128xbf16>
    %18 = vector.shape_cast %17 : vector<16x128xbf16> to vector<1x16x128xbf16>
    %c0_12 = arith.constant 0 : index
    %c0_13 = arith.constant 0 : index
    %19 = vector.load %arg7[%c0_12, %c0_13] : memref<128x128xbf16, #tpu.memory_space<vmem>>, vector<128x128xbf16>
    %cst_14 = arith.constant dense<0.000000e+00> : vector<16x128xf32>
    %20 = tpu.matmul %2, %19, %cst_14 {dimension_numbers = #tpu.dot_dimension_numbers<[1], [0], [0], [1], [0, 0, 1, 1], [], []>} : vector<16x128xbf16>, vector<128x128xbf16>, vector<16x128xf32> -> vector<16x128xf32>
    %c0_15 = arith.constant 0 : index
    %c0_16 = arith.constant 0 : index
    %21 = vector.load %arg8[%c0_15, %c0_16] : memref<1x128xf32, #tpu.memory_space<vmem>>, vector<1x128xf32>
    %22 = vector.broadcast %21 : vector<1x128xf32> to vector<16x128xf32>
    %23 = arith.addf %20, %22 : vector<16x128xf32>
    %24 = arith.truncf %23 : vector<16x128xf32> to vector<16x128xbf16>
    %25 = vector.shape_cast %24 : vector<16x128xbf16> to vector<1x16x128xbf16>
    %c0_17 = arith.constant 0 : index
    %c0_18 = arith.constant 0 : index
    %c0_19 = arith.constant 0 : index
    %c0_20 = arith.constant 0 : index
    %26 = vector.load %arg2[%c0_17, %c0_18, %c0_19, %c0_20] : memref<1x1x1x16xf32, #tpu.memory_space<vmem>>, vector<1x1x1x16xf32>
    %27 = vector.shape_cast %26 : vector<1x1x1x16xf32> to vector<1x1x16xf32>
    %28 = vector.shape_cast %27 : vector<1x1x16xf32> to vector<1x1x16xf32>
    %29 = vector.broadcast %28 : vector<1x1x16xf32> to vector<1x16x16xf32>
    %30 = vector.extract_strided_slice %11 {offsets = [0, 0, 0], sizes = [1, 16, 16], strides = [1, 1, 1]} : vector<1x16x128xbf16> to vector<1x16x16xbf16>
    %31 = vector.extract_strided_slice %18 {offsets = [0, 0, 0], sizes = [1, 16, 16], strides = [1, 1, 1]} : vector<1x16x128xbf16> to vector<1x16x16xbf16>
    "tpu.trace_start"() <{level = 10 : i32, message = "bqd,bkd->bqk"}> : () -> ()
    %cst_21 = arith.constant dense<0.000000e+00> : vector<1x16x16xf32>
    %32 = tpu.matmul %30, %31, %cst_21 {dimension_numbers = #tpu.dot_dimension_numbers<[2], [2], [1], [1], [0, 0, 0, 1, 1, 1], [0], [0]>} : vector<1x16x16xbf16>, vector<1x16x16xbf16>, vector<1x16x16xf32> -> vector<1x16x16xf32>
    "tpu.trace_stop"() : () -> ()
    %33 = arith.addf %32, %29 : vector<1x16x16xf32>
    %cst_22 = arith.constant dense<0xFF800000> : vector<1x16xf32>
    %34 = vector.multi_reduction <maximumf>, %33, %cst_22 [2] : vector<1x16x16xf32> to vector<1x16xf32>
    %35 = vector.shape_cast %34 : vector<1x16xf32> to vector<1x16x1xf32>
    %36 = vector.broadcast %35 : vector<1x16x1xf32> to vector<1x16x16xf32>
    %37 = arith.subf %33, %36 : vector<1x16x16xf32>
    %38 = math.exp %37 : vector<1x16x16xf32>
    %cst_23 = arith.constant dense<0.000000e+00> : vector<1x16xf32>
    %39 = vector.multi_reduction <add>, %38, %cst_23 [2] : vector<1x16x16xf32> to vector<1x16xf32>
    %40 = vector.shape_cast %39 : vector<1x16xf32> to vector<1x16x1xf32>
    %41 = tpu.reciprocal %40 {approx = true} : vector<1x16x1xf32> -> vector<1x16x1xf32>
    %42 = vector.broadcast %41 : vector<1x16x1xf32> to vector<1x16x16xf32>
    %43 = arith.mulf %38, %42 : vector<1x16x16xf32>
    %44 = arith.truncf %43 : vector<1x16x16xf32> to vector<1x16x16xbf16>
    %45 = vector.extract_strided_slice %25 {offsets = [0, 0, 0], sizes = [1, 16, 16], strides = [1, 1, 1]} : vector<1x16x128xbf16> to vector<1x16x16xbf16>
    "tpu.trace_start"() <{level = 10 : i32, message = "bqk,bkd->bqd"}> : () -> ()
    %cst_24 = arith.constant dense<0.000000e+00> : vector<1x16x16xf32>
    %46 = tpu.matmul %44, %45, %cst_24 {dimension_numbers = #tpu.dot_dimension_numbers<[2], [1], [1], [2], [0, 0, 0, 1, 1, 2], [0], [0]>} : vector<1x16x16xbf16>, vector<1x16x16xbf16>, vector<1x16x16xf32> -> vector<1x16x16xf32>
    "tpu.trace_stop"() : () -> ()
    %47 = vector.extract_strided_slice %11 {offsets = [0, 0, 16], sizes = [1, 16, 16], strides = [1, 1, 1]} : vector<1x16x128xbf16> to vector<1x16x16xbf16>
    %48 = vector.extract_strided_slice %18 {offsets = [0, 0, 16], sizes = [1, 16, 16], strides = [1, 1, 1]} : vector<1x16x128xbf16> to vector<1x16x16xbf16>
    "tpu.trace_start"() <{level = 10 : i32, message = "bqd,bkd->bqk"}> : () -> ()
    %cst_25 = arith.constant dense<0.000000e+00> : vector<1x16x16xf32>
    %49 = tpu.matmul %47, %48, %cst_25 {dimension_numbers = #tpu.dot_dimension_numbers<[2], [2], [1], [1], [0, 0, 0, 1, 1, 1], [0], [0]>} : vector<1x16x16xbf16>, vector<1x16x16xbf16>, vector<1x16x16xf32> -> vector<1x16x16xf32>
    "tpu.trace_stop"() : () -> ()
    %50 = arith.addf %49, %29 : vector<1x16x16xf32>
    %cst_26 = arith.constant dense<0xFF800000> : vector<1x16xf32>
    %51 = vector.multi_reduction <maximumf>, %50, %cst_26 [2] : vector<1x16x16xf32> to vector<1x16xf32>
    %52 = vector.shape_cast %51 : vector<1x16xf32> to vector<1x16x1xf32>
    %53 = vector.broadcast %52 : vector<1x16x1xf32> to vector<1x16x16xf32>
    %54 = arith.subf %50, %53 : vector<1x16x16xf32>
    %55 = math.exp %54 : vector<1x16x16xf32>
    %cst_27 = arith.constant dense<0.000000e+00> : vector<1x16xf32>
    %56 = vector.multi_reduction <add>, %55, %cst_27 [2] : vector<1x16x16xf32> to vector<1x16xf32>
    %57 = vector.shape_cast %56 : vector<1x16xf32> to vector<1x16x1xf32>
    %58 = tpu.reciprocal %57 {approx = true} : vector<1x16x1xf32> -> vector<1x16x1xf32>
    %59 = vector.broadcast %58 : vector<1x16x1xf32> to vector<1x16x16xf32>
    %60 = arith.mulf %55, %59 : vector<1x16x16xf32>
    %61 = arith.truncf %60 : vector<1x16x16xf32> to vector<1x16x16xbf16>
    %62 = vector.extract_strided_slice %25 {offsets = [0, 0, 16], sizes = [1, 16, 16], strides = [1, 1, 1]} : vector<1x16x128xbf16> to vector<1x16x16xbf16>
    "tpu.trace_start"() <{level = 10 : i32, message = "bqk,bkd->bqd"}> : () -> ()
    %cst_28 = arith.constant dense<0.000000e+00> : vector<1x16x16xf32>
    %63 = tpu.matmul %61, %62, %cst_28 {dimension_numbers = #tpu.dot_dimension_numbers<[2], [1], [1], [2], [0, 0, 0, 1, 1, 2], [0], [0]>} : vector<1x16x16xbf16>, vector<1x16x16xbf16>, vector<1x16x16xf32> -> vector<1x16x16xf32>
    "tpu.trace_stop"() : () -> ()
    %64 = vector.extract_strided_slice %11 {offsets = [0, 0, 32], sizes = [1, 16, 16], strides = [1, 1, 1]} : vector<1x16x128xbf16> to vector<1x16x16xbf16>
    %65 = vector.extract_strided_slice %18 {offsets = [0, 0, 32], sizes = [1, 16, 16], strides = [1, 1, 1]} : vector<1x16x128xbf16> to vector<1x16x16xbf16>
    "tpu.trace_start"() <{level = 10 : i32, message = "bqd,bkd->bqk"}> : () -> ()
    %cst_29 = arith.constant dense<0.000000e+00> : vector<1x16x16xf32>
    %66 = tpu.matmul %64, %65, %cst_29 {dimension_numbers = #tpu.dot_dimension_numbers<[2], [2], [1], [1], [0, 0, 0, 1, 1, 1], [0], [0]>} : vector<1x16x16xbf16>, vector<1x16x16xbf16>, vector<1x16x16xf32> -> vector<1x16x16xf32>
    "tpu.trace_stop"() : () -> ()
    %67 = arith.addf %66, %29 : vector<1x16x16xf32>
    %cst_30 = arith.constant dense<0xFF800000> : vector<1x16xf32>
    %68 = vector.multi_reduction <maximumf>, %67, %cst_30 [2] : vector<1x16x16xf32> to vector<1x16xf32>
    %69 = vector.shape_cast %68 : vector<1x16xf32> to vector<1x16x1xf32>
    %70 = vector.broadcast %69 : vector<1x16x1xf32> to vector<1x16x16xf32>
    %71 = arith.subf %67, %70 : vector<1x16x16xf32>
    %72 = math.exp %71 : vector<1x16x16xf32>
    %cst_31 = arith.constant dense<0.000000e+00> : vector<1x16xf32>
    %73 = vector.multi_reduction <add>, %72, %cst_31 [2] : vector<1x16x16xf32> to vector<1x16xf32>
    %74 = vector.shape_cast %73 : vector<1x16xf32> to vector<1x16x1xf32>
    %75 = tpu.reciprocal %74 {approx = true} : vector<1x16x1xf32> -> vector<1x16x1xf32>
    %76 = vector.broadcast %75 : vector<1x16x1xf32> to vector<1x16x16xf32>
    %77 = arith.mulf %72, %76 : vector<1x16x16xf32>
    %78 = arith.truncf %77 : vector<1x16x16xf32> to vector<1x16x16xbf16>
    %79 = vector.extract_strided_slice %25 {offsets = [0, 0, 32], sizes = [1, 16, 16], strides = [1, 1, 1]} : vector<1x16x128xbf16> to vector<1x16x16xbf16>
    "tpu.trace_start"() <{level = 10 : i32, message = "bqk,bkd->bqd"}> : () -> ()
    %cst_32 = arith.constant dense<0.000000e+00> : vector<1x16x16xf32>
    %80 = tpu.matmul %78, %79, %cst_32 {dimension_numbers = #tpu.dot_dimension_numbers<[2], [1], [1], [2], [0, 0, 0, 1, 1, 2], [0], [0]>} : vector<1x16x16xbf16>, vector<1x16x16xbf16>, vector<1x16x16xf32> -> vector<1x16x16xf32>
    "tpu.trace_stop"() : () -> ()
    %81 = vector.extract_strided_slice %11 {offsets = [0, 0, 48], sizes = [1, 16, 16], strides = [1, 1, 1]} : vector<1x16x128xbf16> to vector<1x16x16xbf16>
    %82 = vector.extract_strided_slice %18 {offsets = [0, 0, 48], sizes = [1, 16, 16], strides = [1, 1, 1]} : vector<1x16x128xbf16> to vector<1x16x16xbf16>
    "tpu.trace_start"() <{level = 10 : i32, message = "bqd,bkd->bqk"}> : () -> ()
    %cst_33 = arith.constant dense<0.000000e+00> : vector<1x16x16xf32>
    %83 = tpu.matmul %81, %82, %cst_33 {dimension_numbers = #tpu.dot_dimension_numbers<[2], [2], [1], [1], [0, 0, 0, 1, 1, 1], [0], [0]>} : vector<1x16x16xbf16>, vector<1x16x16xbf16>, vector<1x16x16xf32> -> vector<1x16x16xf32>
    "tpu.trace_stop"() : () -> ()
    %84 = arith.addf %83, %29 : vector<1x16x16xf32>
    %cst_34 = arith.constant dense<0xFF800000> : vector<1x16xf32>
    %85 = vector.multi_reduction <maximumf>, %84, %cst_34 [2] : vector<1x16x16xf32> to vector<1x16xf32>
    %86 = vector.shape_cast %85 : vector<1x16xf32> to vector<1x16x1xf32>
    %87 = vector.broadcast %86 : vector<1x16x1xf32> to vector<1x16x16xf32>
    %88 = arith.subf %84, %87 : vector<1x16x16xf32>
    %89 = math.exp %88 : vector<1x16x16xf32>
    %cst_35 = arith.constant dense<0.000000e+00> : vector<1x16xf32>
    %90 = vector.multi_reduction <add>, %89, %cst_35 [2] : vector<1x16x16xf32> to vector<1x16xf32>
    %91 = vector.shape_cast %90 : vector<1x16xf32> to vector<1x16x1xf32>
    %92 = tpu.reciprocal %91 {approx = true} : vector<1x16x1xf32> -> vector<1x16x1xf32>
    %93 = vector.broadcast %92 : vector<1x16x1xf32> to vector<1x16x16xf32>
    %94 = arith.mulf %89, %93 : vector<1x16x16xf32>
    %95 = arith.truncf %94 : vector<1x16x16xf32> to vector<1x16x16xbf16>
    %96 = vector.extract_strided_slice %25 {offsets = [0, 0, 48], sizes = [1, 16, 16], strides = [1, 1, 1]} : vector<1x16x128xbf16> to vector<1x16x16xbf16>
    "tpu.trace_start"() <{level = 10 : i32, message = "bqk,bkd->bqd"}> : () -> ()
    %cst_36 = arith.constant dense<0.000000e+00> : vector<1x16x16xf32>
    %97 = tpu.matmul %95, %96, %cst_36 {dimension_numbers = #tpu.dot_dimension_numbers<[2], [1], [1], [2], [0, 0, 0, 1, 1, 2], [0], [0]>} : vector<1x16x16xbf16>, vector<1x16x16xbf16>, vector<1x16x16xf32> -> vector<1x16x16xf32>
    "tpu.trace_stop"() : () -> ()
    %98 = vector.extract_strided_slice %11 {offsets = [0, 0, 64], sizes = [1, 16, 16], strides = [1, 1, 1]} : vector<1x16x128xbf16> to vector<1x16x16xbf16>
    %99 = vector.extract_strided_slice %18 {offsets = [0, 0, 64], sizes = [1, 16, 16], strides = [1, 1, 1]} : vector<1x16x128xbf16> to vector<1x16x16xbf16>
    "tpu.trace_start"() <{level = 10 : i32, message = "bqd,bkd->bqk"}> : () -> ()
    %cst_37 = arith.constant dense<0.000000e+00> : vector<1x16x16xf32>
    %100 = tpu.matmul %98, %99, %cst_37 {dimension_numbers = #tpu.dot_dimension_numbers<[2], [2], [1], [1], [0, 0, 0, 1, 1, 1], [0], [0]>} : vector<1x16x16xbf16>, vector<1x16x16xbf16>, vector<1x16x16xf32> -> vector<1x16x16xf32>
    "tpu.trace_stop"() : () -> ()
    %101 = arith.addf %100, %29 : vector<1x16x16xf32>
    %cst_38 = arith.constant dense<0xFF800000> : vector<1x16xf32>
    %102 = vector.multi_reduction <maximumf>, %101, %cst_38 [2] : vector<1x16x16xf32> to vector<1x16xf32>
    %103 = vector.shape_cast %102 : vector<1x16xf32> to vector<1x16x1xf32>
    %104 = vector.broadcast %103 : vector<1x16x1xf32> to vector<1x16x16xf32>
    %105 = arith.subf %101, %104 : vector<1x16x16xf32>
    %106 = math.exp %105 : vector<1x16x16xf32>
    %cst_39 = arith.constant dense<0.000000e+00> : vector<1x16xf32>
    %107 = vector.multi_reduction <add>, %106, %cst_39 [2] : vector<1x16x16xf32> to vector<1x16xf32>
    %108 = vector.shape_cast %107 : vector<1x16xf32> to vector<1x16x1xf32>
    %109 = tpu.reciprocal %108 {approx = true} : vector<1x16x1xf32> -> vector<1x16x1xf32>
    %110 = vector.broadcast %109 : vector<1x16x1xf32> to vector<1x16x16xf32>
    %111 = arith.mulf %106, %110 : vector<1x16x16xf32>
    %112 = arith.truncf %111 : vector<1x16x16xf32> to vector<1x16x16xbf16>
    %113 = vector.extract_strided_slice %25 {offsets = [0, 0, 64], sizes = [1, 16, 16], strides = [1, 1, 1]} : vector<1x16x128xbf16> to vector<1x16x16xbf16>
    "tpu.trace_start"() <{level = 10 : i32, message = "bqk,bkd->bqd"}> : () -> ()
    %cst_40 = arith.constant dense<0.000000e+00> : vector<1x16x16xf32>
    %114 = tpu.matmul %112, %113, %cst_40 {dimension_numbers = #tpu.dot_dimension_numbers<[2], [1], [1], [2], [0, 0, 0, 1, 1, 2], [0], [0]>} : vector<1x16x16xbf16>, vector<1x16x16xbf16>, vector<1x16x16xf32> -> vector<1x16x16xf32>
    "tpu.trace_stop"() : () -> ()
    %115 = vector.extract_strided_slice %11 {offsets = [0, 0, 80], sizes = [1, 16, 16], strides = [1, 1, 1]} : vector<1x16x128xbf16> to vector<1x16x16xbf16>
    %116 = vector.extract_strided_slice %18 {offsets = [0, 0, 80], sizes = [1, 16, 16], strides = [1, 1, 1]} : vector<1x16x128xbf16> to vector<1x16x16xbf16>
    "tpu.trace_start"() <{level = 10 : i32, message = "bqd,bkd->bqk"}> : () -> ()
    %cst_41 = arith.constant dense<0.000000e+00> : vector<1x16x16xf32>
    %117 = tpu.matmul %115, %116, %cst_41 {dimension_numbers = #tpu.dot_dimension_numbers<[2], [2], [1], [1], [0, 0, 0, 1, 1, 1], [0], [0]>} : vector<1x16x16xbf16>, vector<1x16x16xbf16>, vector<1x16x16xf32> -> vector<1x16x16xf32>
    "tpu.trace_stop"() : () -> ()
    %118 = arith.addf %117, %29 : vector<1x16x16xf32>
    %cst_42 = arith.constant dense<0xFF800000> : vector<1x16xf32>
    %119 = vector.multi_reduction <maximumf>, %118, %cst_42 [2] : vector<1x16x16xf32> to vector<1x16xf32>
    %120 = vector.shape_cast %119 : vector<1x16xf32> to vector<1x16x1xf32>
    %121 = vector.broadcast %120 : vector<1x16x1xf32> to vector<1x16x16xf32>
    %122 = arith.subf %118, %121 : vector<1x16x16xf32>
    %123 = math.exp %122 : vector<1x16x16xf32>
    %cst_43 = arith.constant dense<0.000000e+00> : vector<1x16xf32>
    %124 = vector.multi_reduction <add>, %123, %cst_43 [2] : vector<1x16x16xf32> to vector<1x16xf32>
    %125 = vector.shape_cast %124 : vector<1x16xf32> to vector<1x16x1xf32>
    %126 = tpu.reciprocal %125 {approx = true} : vector<1x16x1xf32> -> vector<1x16x1xf32>
    %127 = vector.broadcast %126 : vector<1x16x1xf32> to vector<1x16x16xf32>
    %128 = arith.mulf %123, %127 : vector<1x16x16xf32>
    %129 = arith.truncf %128 : vector<1x16x16xf32> to vector<1x16x16xbf16>
    %130 = vector.extract_strided_slice %25 {offsets = [0, 0, 80], sizes = [1, 16, 16], strides = [1, 1, 1]} : vector<1x16x128xbf16> to vector<1x16x16xbf16>
    "tpu.trace_start"() <{level = 10 : i32, message = "bqk,bkd->bqd"}> : () -> ()
    %cst_44 = arith.constant dense<0.000000e+00> : vector<1x16x16xf32>
    %131 = tpu.matmul %129, %130, %cst_44 {dimension_numbers = #tpu.dot_dimension_numbers<[2], [1], [1], [2], [0, 0, 0, 1, 1, 2], [0], [0]>} : vector<1x16x16xbf16>, vector<1x16x16xbf16>, vector<1x16x16xf32> -> vector<1x16x16xf32>
    "tpu.trace_stop"() : () -> ()
    %132 = vector.extract_strided_slice %11 {offsets = [0, 0, 96], sizes = [1, 16, 16], strides = [1, 1, 1]} : vector<1x16x128xbf16> to vector<1x16x16xbf16>
    %133 = vector.extract_strided_slice %18 {offsets = [0, 0, 96], sizes = [1, 16, 16], strides = [1, 1, 1]} : vector<1x16x128xbf16> to vector<1x16x16xbf16>
    "tpu.trace_start"() <{level = 10 : i32, message = "bqd,bkd->bqk"}> : () -> ()
    %cst_45 = arith.constant dense<0.000000e+00> : vector<1x16x16xf32>
    %134 = tpu.matmul %132, %133, %cst_45 {dimension_numbers = #tpu.dot_dimension_numbers<[2], [2], [1], [1], [0, 0, 0, 1, 1, 1], [0], [0]>} : vector<1x16x16xbf16>, vector<1x16x16xbf16>, vector<1x16x16xf32> -> vector<1x16x16xf32>
    "tpu.trace_stop"() : () -> ()
    %135 = arith.addf %134, %29 : vector<1x16x16xf32>
    %cst_46 = arith.constant dense<0xFF800000> : vector<1x16xf32>
    %136 = vector.multi_reduction <maximumf>, %135, %cst_46 [2] : vector<1x16x16xf32> to vector<1x16xf32>
    %137 = vector.shape_cast %136 : vector<1x16xf32> to vector<1x16x1xf32>
    %138 = vector.broadcast %137 : vector<1x16x1xf32> to vector<1x16x16xf32>
    %139 = arith.subf %135, %138 : vector<1x16x16xf32>
    %140 = math.exp %139 : vector<1x16x16xf32>
    %cst_47 = arith.constant dense<0.000000e+00> : vector<1x16xf32>
    %141 = vector.multi_reduction <add>, %140, %cst_47 [2] : vector<1x16x16xf32> to vector<1x16xf32>
    %142 = vector.shape_cast %141 : vector<1x16xf32> to vector<1x16x1xf32>
    %143 = tpu.reciprocal %142 {approx = true} : vector<1x16x1xf32> -> vector<1x16x1xf32>
    %144 = vector.broadcast %143 : vector<1x16x1xf32> to vector<1x16x16xf32>
    %145 = arith.mulf %140, %144 : vector<1x16x16xf32>
    %146 = arith.truncf %145 : vector<1x16x16xf32> to vector<1x16x16xbf16>
    %147 = vector.extract_strided_slice %25 {offsets = [0, 0, 96], sizes = [1, 16, 16], strides = [1, 1, 1]} : vector<1x16x128xbf16> to vector<1x16x16xbf16>
    "tpu.trace_start"() <{level = 10 : i32, message = "bqk,bkd->bqd"}> : () -> ()
    %cst_48 = arith.constant dense<0.000000e+00> : vector<1x16x16xf32>
    %148 = tpu.matmul %146, %147, %cst_48 {dimension_numbers = #tpu.dot_dimension_numbers<[2], [1], [1], [2], [0, 0, 0, 1, 1, 2], [0], [0]>} : vector<1x16x16xbf16>, vector<1x16x16xbf16>, vector<1x16x16xf32> -> vector<1x16x16xf32>
    "tpu.trace_stop"() : () -> ()
    %149 = vector.extract_strided_slice %11 {offsets = [0, 0, 112], sizes = [1, 16, 16], strides = [1, 1, 1]} : vector<1x16x128xbf16> to vector<1x16x16xbf16>
    %150 = vector.extract_strided_slice %18 {offsets = [0, 0, 112], sizes = [1, 16, 16], strides = [1, 1, 1]} : vector<1x16x128xbf16> to vector<1x16x16xbf16>
    "tpu.trace_start"() <{level = 10 : i32, message = "bqd,bkd->bqk"}> : () -> ()
    %cst_49 = arith.constant dense<0.000000e+00> : vector<1x16x16xf32>
    %151 = tpu.matmul %149, %150, %cst_49 {dimension_numbers = #tpu.dot_dimension_numbers<[2], [2], [1], [1], [0, 0, 0, 1, 1, 1], [0], [0]>} : vector<1x16x16xbf16>, vector<1x16x16xbf16>, vector<1x16x16xf32> -> vector<1x16x16xf32>
    "tpu.trace_stop"() : () -> ()
    %152 = arith.addf %151, %29 : vector<1x16x16xf32>
    %cst_50 = arith.constant dense<0xFF800000> : vector<1x16xf32>
    %153 = vector.multi_reduction <maximumf>, %152, %cst_50 [2] : vector<1x16x16xf32> to vector<1x16xf32>
    %154 = vector.shape_cast %153 : vector<1x16xf32> to vector<1x16x1xf32>
    %155 = vector.broadcast %154 : vector<1x16x1xf32> to vector<1x16x16xf32>
    %156 = arith.subf %152, %155 : vector<1x16x16xf32>
    %157 = math.exp %156 : vector<1x16x16xf32>
    %cst_51 = arith.constant dense<0.000000e+00> : vector<1x16xf32>
    %158 = vector.multi_reduction <add>, %157, %cst_51 [2] : vector<1x16x16xf32> to vector<1x16xf32>
    %159 = vector.shape_cast %158 : vector<1x16xf32> to vector<1x16x1xf32>
    %160 = tpu.reciprocal %159 {approx = true} : vector<1x16x1xf32> -> vector<1x16x1xf32>
    %161 = vector.broadcast %160 : vector<1x16x1xf32> to vector<1x16x16xf32>
    %162 = arith.mulf %157, %161 : vector<1x16x16xf32>
    %163 = arith.truncf %162 : vector<1x16x16xf32> to vector<1x16x16xbf16>
    %164 = vector.extract_strided_slice %25 {offsets = [0, 0, 112], sizes = [1, 16, 16], strides = [1, 1, 1]} : vector<1x16x128xbf16> to vector<1x16x16xbf16>
    "tpu.trace_start"() <{level = 10 : i32, message = "bqk,bkd->bqd"}> : () -> ()
    %cst_52 = arith.constant dense<0.000000e+00> : vector<1x16x16xf32>
    %165 = tpu.matmul %163, %164, %cst_52 {dimension_numbers = #tpu.dot_dimension_numbers<[2], [1], [1], [2], [0, 0, 0, 1, 1, 2], [0], [0]>} : vector<1x16x16xbf16>, vector<1x16x16xbf16>, vector<1x16x16xf32> -> vector<1x16x16xf32>
    "tpu.trace_stop"() : () -> ()
    %166 = tpu.concatenate %46, %63, %80, %97, %114, %131, %148, %165 in 2 : vector<1x16x16xf32>, vector<1x16x16xf32>, vector<1x16x16xf32>, vector<1x16x16xf32>, vector<1x16x16xf32>, vector<1x16x16xf32>, vector<1x16x16xf32>, vector<1x16x16xf32> -> vector<1x16x128xf32>
    %167 = vector.shape_cast %166 : vector<1x16x128xf32> to vector<16x128xf32>
    %168 = arith.truncf %167 : vector<16x128xf32> to vector<16x128xbf16>
    %c0_53 = arith.constant 0 : index
    %c0_54 = arith.constant 0 : index
    %169 = vector.load %arg9[%c0_53, %c0_54] : memref<128x128xbf16, #tpu.memory_space<vmem>>, vector<128x128xbf16>
    %cst_55 = arith.constant dense<0.000000e+00> : vector<16x128xf32>
    %170 = tpu.matmul %168, %169, %cst_55 {dimension_numbers = #tpu.dot_dimension_numbers<[1], [0], [0], [1], [0, 0, 1, 1], [], []>} : vector<16x128xbf16>, vector<128x128xbf16>, vector<16x128xf32> -> vector<16x128xf32>
    %c0_56 = arith.constant 0 : index
    %c0_57 = arith.constant 0 : index
    %171 = vector.load %arg10[%c0_56, %c0_57] : memref<1x128xf32, #tpu.memory_space<vmem>>, vector<1x128xf32>
    %172 = vector.broadcast %171 : vector<1x128xf32> to vector<16x128xf32>
    %173 = arith.addf %170, %172 : vector<16x128xf32>
    %174 = arith.addf %173, %1 : vector<16x128xf32>
    %c0_58 = arith.constant 0 : index
    %c0_59 = arith.constant 0 : index
    %175 = vector.load %arg11[%c0_58, %c0_59] : memref<1x128xf32, #tpu.memory_space<vmem>>, vector<1x128xf32>
    %c0_60 = arith.constant 0 : index
    %c0_61 = arith.constant 0 : index
    %176 = vector.load %arg12[%c0_60, %c0_61] : memref<1x128xf32, #tpu.memory_space<vmem>>, vector<1x128xf32>
    %cst_62 = arith.constant dense<0.000000e+00> : vector<16xf32>
    %177 = vector.multi_reduction <add>, %174, %cst_62 [1] : vector<16x128xf32> to vector<16xf32>
    %178 = vector.shape_cast %177 : vector<16xf32> to vector<16x1xf32>
    %cst_63 = arith.constant 1.280000e+02 : f32
    %179 = vector.broadcast %cst_63 : f32 to vector<16x1xf32>
    %180 = arith.divf %178, %179 : vector<16x1xf32>
    %181 = vector.broadcast %180 : vector<16x1xf32> to vector<16x128xf32>
    %182 = arith.subf %174, %181 : vector<16x128xf32>
    %183 = arith.mulf %182, %182 : vector<16x128xf32>
    %cst_64 = arith.constant dense<0.000000e+00> : vector<16xf32>
    %184 = vector.multi_reduction <add>, %183, %cst_64 [1] : vector<16x128xf32> to vector<16xf32>
    %185 = vector.shape_cast %184 : vector<16xf32> to vector<16x1xf32>
    %cst_65 = arith.constant 1.280000e+02 : f32
    %186 = vector.broadcast %cst_65 : f32 to vector<16x1xf32>
    %187 = arith.divf %185, %186 : vector<16x1xf32>
    %cst_66 = arith.constant 9.99999996E-13 : f32
    %188 = vector.broadcast %cst_66 : f32 to vector<16x1xf32>
    %189 = arith.addf %187, %188 : vector<16x1xf32>
    %190 = math.rsqrt %189 : vector<16x1xf32>
    %191 = vector.broadcast %190 : vector<16x1xf32> to vector<16x128xf32>
    %192 = arith.mulf %182, %191 : vector<16x128xf32>
    %193 = vector.broadcast %175 : vector<1x128xf32> to vector<16x128xf32>
    %194 = arith.mulf %193, %192 : vector<16x128xf32>
    %195 = vector.broadcast %176 : vector<1x128xf32> to vector<16x128xf32>
    %196 = arith.addf %194, %195 : vector<16x128xf32>
    %197 = arith.truncf %196 : vector<16x128xf32> to vector<16x128xbf16>
    %c0_67 = arith.constant 0 : index
    %c0_68 = arith.constant 0 : index
    %198 = vector.load %arg13[%c0_67, %c0_68] : memref<128x256xbf16, #tpu.memory_space<vmem>>, vector<128x256xbf16>
    %cst_69 = arith.constant dense<0.000000e+00> : vector<16x256xf32>
    %199 = tpu.matmul %197, %198, %cst_69 {dimension_numbers = #tpu.dot_dimension_numbers<[1], [0], [0], [1], [0, 0, 1, 1], [], []>} : vector<16x128xbf16>, vector<128x256xbf16>, vector<16x256xf32> -> vector<16x256xf32>
    %c0_70 = arith.constant 0 : index
    %c0_71 = arith.constant 0 : index
    %200 = vector.load %arg14[%c0_70, %c0_71] : memref<1x256xf32, #tpu.memory_space<vmem>>, vector<1x256xf32>
    %201 = vector.broadcast %200 : vector<1x256xf32> to vector<16x256xf32>
    %202 = arith.addf %199, %201 : vector<16x256xf32>
    %cst_72 = arith.constant 5.000000e-01 : f32
    %203 = vector.broadcast %cst_72 : f32 to vector<16x256xf32>
    %204 = arith.mulf %203, %202 : vector<16x256xf32>
    %cst_73 = arith.constant 4.471500e-02 : f32
    %205 = vector.broadcast %cst_73 : f32 to vector<16x256xf32>
    %206 = arith.mulf %205, %202 : vector<16x256xf32>
    %207 = arith.mulf %206, %202 : vector<16x256xf32>
    %208 = arith.mulf %207, %202 : vector<16x256xf32>
    %209 = arith.addf %202, %208 : vector<16x256xf32>
    %cst_74 = arith.constant 0.797884583 : f32
    %210 = vector.broadcast %cst_74 : f32 to vector<16x256xf32>
    %211 = arith.mulf %210, %209 : vector<16x256xf32>
    %212 = math.tanh %211 : vector<16x256xf32>
    %cst_75 = arith.constant 1.000000e+00 : f32
    %213 = vector.broadcast %cst_75 : f32 to vector<16x256xf32>
    %214 = arith.addf %213, %212 : vector<16x256xf32>
    %215 = arith.mulf %204, %214 : vector<16x256xf32>
    %216 = arith.truncf %215 : vector<16x256xf32> to vector<16x256xbf16>
    %c0_76 = arith.constant 0 : index
    %c0_77 = arith.constant 0 : index
    %217 = vector.load %arg15[%c0_76, %c0_77] : memref<256x128xbf16, #tpu.memory_space<vmem>>, vector<256x128xbf16>
    %cst_78 = arith.constant dense<0.000000e+00> : vector<16x128xf32>
    %218 = tpu.matmul %216, %217, %cst_78 {dimension_numbers = #tpu.dot_dimension_numbers<[1], [0], [0], [1], [0, 0, 1, 1], [], []>} : vector<16x256xbf16>, vector<256x128xbf16>, vector<16x128xf32> -> vector<16x128xf32>
    %c0_79 = arith.constant 0 : index
    %c0_80 = arith.constant 0 : index
    %219 = vector.load %arg16[%c0_79, %c0_80] : memref<1x128xf32, #tpu.memory_space<vmem>>, vector<1x128xf32>
    %220 = vector.broadcast %219 : vector<1x128xf32> to vector<16x128xf32>
    %221 = arith.addf %218, %220 : vector<16x128xf32>
    %222 = arith.addf %221, %196 : vector<16x128xf32>
    %c0_81 = arith.constant 0 : index
    %c0_82 = arith.constant 0 : index
    %223 = vector.load %arg17[%c0_81, %c0_82] : memref<1x128xf32, #tpu.memory_space<vmem>>, vector<1x128xf32>
    %c0_83 = arith.constant 0 : index
    %c0_84 = arith.constant 0 : index
    %224 = vector.load %arg18[%c0_83, %c0_84] : memref<1x128xf32, #tpu.memory_space<vmem>>, vector<1x128xf32>
    %cst_85 = arith.constant dense<0.000000e+00> : vector<16xf32>
    %225 = vector.multi_reduction <add>, %222, %cst_85 [1] : vector<16x128xf32> to vector<16xf32>
    %226 = vector.shape_cast %225 : vector<16xf32> to vector<16x1xf32>
    %cst_86 = arith.constant 1.280000e+02 : f32
    %227 = vector.broadcast %cst_86 : f32 to vector<16x1xf32>
    %228 = arith.divf %226, %227 : vector<16x1xf32>
    %229 = vector.broadcast %228 : vector<16x1xf32> to vector<16x128xf32>
    %230 = arith.subf %222, %229 : vector<16x128xf32>
    %231 = arith.mulf %230, %230 : vector<16x128xf32>
    %cst_87 = arith.constant dense<0.000000e+00> : vector<16xf32>
    %232 = vector.multi_reduction <add>, %231, %cst_87 [1] : vector<16x128xf32> to vector<16xf32>
    %233 = vector.shape_cast %232 : vector<16xf32> to vector<16x1xf32>
    %cst_88 = arith.constant 1.280000e+02 : f32
    %234 = vector.broadcast %cst_88 : f32 to vector<16x1xf32>
    %235 = arith.divf %233, %234 : vector<16x1xf32>
    %cst_89 = arith.constant 9.99999996E-13 : f32
    %236 = vector.broadcast %cst_89 : f32 to vector<16x1xf32>
    %237 = arith.addf %235, %236 : vector<16x1xf32>
    %238 = math.rsqrt %237 : vector<16x1xf32>
    %239 = vector.broadcast %238 : vector<16x1xf32> to vector<16x128xf32>
    %240 = arith.mulf %230, %239 : vector<16x128xf32>
    %241 = vector.broadcast %223 : vector<1x128xf32> to vector<16x128xf32>
    %242 = arith.mulf %241, %240 : vector<16x128xf32>
    %243 = vector.broadcast %224 : vector<1x128xf32> to vector<16x128xf32>
    %244 = arith.addf %242, %243 : vector<16x128xf32>
    %245 = vector.shape_cast %244 : vector<16x128xf32> to vector<1x16x128xf32>
    %c0_90 = arith.constant 0 : index
    %c0_91 = arith.constant 0 : index
    %c0_92 = arith.constant 0 : index
    %246 = vector.load %arg19[%c0_90, %c0_91, %c0_92] : memref<1x16x128xf32, #tpu.memory_space<vmem>>, vector<1x16x128xf32>
    tpu.vector_store %arg19[%c0_90, %c0_91, %c0_92], %245 {strides = array<i32>} : memref<1x16x128xf32, #tpu.memory_space<vmem>>, vector<1x16x128xf32>,
    return
  }
  func.func @transform_0(%arg0: i32) -> (i32, i32, i32) {
    %c0_i32 = arith.constant 0 : i32
    %c0_i32_0 = arith.constant 0 : i32
    %c0_i32_1 = arith.constant 0 : i32
    return %arg0, %c0_i32, %c0_i32_0 : i32, i32, i32
  }
  func.func @transform_1(%arg0: i32) -> (i32, i32, i32, i32) {
    %c0_i32 = arith.constant 0 : i32
    %c0_i32_0 = arith.constant 0 : i32
    %c0_i32_1 = arith.constant 0 : i32
    %c0_i32_2 = arith.constant 0 : i32
    return %arg0, %c0_i32, %c0_i32_0, %c0_i32_1 : i32, i32, i32, i32
  }
  func.func @transform_2(%arg0: i32) -> (i32, i32) {
    %c0_i32 = arith.constant 0 : i32
    %c0_i32_0 = arith.constant 0 : i32
    %c0_i32_1 = arith.constant 0 : i32
    return %c0_i32, %c0_i32_0 : i32, i32
  }
  func.func @transform_3(%arg0: i32) -> (i32, i32) {
    %c0_i32 = arith.constant 0 : i32
    %c0_i32_0 = arith.constant 0 : i32
    %c0_i32_1 = arith.constant 0 : i32
    return %c0_i32, %c0_i32_0 : i32, i32
  }
  func.func @transform_4(%arg0: i32) -> (i32, i32) {
    %c0_i32 = arith.constant 0 : i32
    %c0_i32_0 = arith.constant 0 : i32
    %c0_i32_1 = arith.constant 0 : i32
    return %c0_i32, %c0_i32_0 : i32, i32
  }
  func.func @transform_5(%arg0: i32) -> (i32, i32) {
    %c0_i32 = arith.constant 0 : i32
    %c0_i32_0 = arith.constant 0 : i32
    %c0_i32_1 = arith.constant 0 : i32
    return %c0_i32, %c0_i32_0 : i32, i32
  }
  func.func @transform_6(%arg0: i32) -> (i32, i32) {
    %c0_i32 = arith.constant 0 : i32
    %c0_i32_0 = arith.constant 0 : i32
    %c0_i32_1 = arith.constant 0 : i32
    return %c0_i32, %c0_i32_0 : i32, i32
  }
  func.func @transform_7(%arg0: i32) -> (i32, i32) {
    %c0_i32 = arith.constant 0 : i32
    %c0_i32_0 = arith.constant 0 : i32
    %c0_i32_1 = arith.constant 0 : i32
    return %c0_i32, %c0_i32_0 : i32, i32
  }
  func.func @transform_8(%arg0: i32) -> (i32, i32) {
    %c0_i32 = arith.constant 0 : i32
    %c0_i32_0 = arith.constant 0 : i32
    %c0_i32_1 = arith.constant 0 : i32
    return %c0_i32, %c0_i32_0 : i32, i32
  }
  func.func @transform_9(%arg0: i32) -> (i32, i32) {
    %c0_i32 = arith.constant 0 : i32
    %c0_i32_0 = arith.constant 0 : i32
    %c0_i32_1 = arith.constant 0 : i32
    return %c0_i32, %c0_i32_0 : i32, i32
  }
  func.func @transform_10(%arg0: i32) -> (i32, i32) {
    %c0_i32 = arith.constant 0 : i32
    %c0_i32_0 = arith.constant 0 : i32
    %c0_i32_1 = arith.constant 0 : i32
    return %c0_i32, %c0_i32_0 : i32, i32
  }
  func.func @transform_11(%arg0: i32) -> (i32, i32) {
    %c0_i32 = arith.constant 0 : i32
    %c0_i32_0 = arith.constant 0 : i32
    %c0_i32_1 = arith.constant 0 : i32
    return %c0_i32, %c0_i32_0 : i32, i32
  }
  func.func @transform_12(%arg0: i32) -> (i32, i32) {
    %c0_i32 = arith.constant 0 : i32
    %c0_i32_0 = arith.constant 0 : i32
    %c0_i32_1 = arith.constant 0 : i32
    return %c0_i32, %c0_i32_0 : i32, i32
  }
  func.func @transform_13(%arg0: i32) -> (i32, i32) {
    %c0_i32 = arith.constant 0 : i32
    %c0_i32_0 = arith.constant 0 : i32
    %c0_i32_1 = arith.constant 0 : i32
    return %c0_i32, %c0_i32_0 : i32, i32
  }
  func.func @transform_14(%arg0: i32) -> (i32, i32) {
    %c0_i32 = arith.constant 0 : i32
    %c0_i32_0 = arith.constant 0 : i32
    %c0_i32_1 = arith.constant 0 : i32
    return %c0_i32, %c0_i32_0 : i32, i32
  }
  func.func @transform_15(%arg0: i32) -> (i32, i32) {
    %c0_i32 = arith.constant 0 : i32
    %c0_i32_0 = arith.constant 0 : i32
    %c0_i32_1 = arith.constant 0 : i32
    return %c0_i32, %c0_i32_0 : i32, i32
  }
  func.func @transform_16(%arg0: i32) -> (i32, i32) {
    %c0_i32 = arith.constant 0 : i32
    %c0_i32_0 = arith.constant 0 : i32
    %c0_i32_1 = arith.constant 0 : i32
    return %c0_i32, %c0_i32_0 : i32, i32
  }
  func.func @transform_17(%arg0: i32) -> (i32, i32) {
    %c0_i32 = arith.constant 0 : i32
    %c0_i32_0 = arith.constant 0 : i32
    %c0_i32_1 = arith.constant 0 : i32
    return %c0_i32, %c0_i32_0 : i32, i32
  }
  func.func @transform_18(%arg0: i32) -> (i32, i32, i32) {
    %c0_i32 = arith.constant 0 : i32
    %c0_i32_0 = arith.constant 0 : i32
    %c0_i32_1 = arith.constant 0 : i32
    return %arg0, %c0_i32, %c0_i32_0 : i32, i32, i32
  }
}

</mosaic_0001>

<llo_original>
// kernel: tpu_custom_call.1
$region0: #{tpu_custom_call.1}
  #allocation0 [shape = 'u32[]', space=smem, size = 0x4, offset = 0x4, fixed_abs, tag = 'smem constant byte address 0x4 - core index']
  #allocation1 [shape = 'u32[72,128]{1,0:T(1,128)}', space=vmem, size = 0x9000, scoped, tag = 'internal scratch']
  %s0 = inlined_call_operand.hbm [shape: f32[2,16,128], index: 0, kind: input, shape index: {}]
  %s1 = inlined_call_operand.hbm [shape: f32[2,1,1,16], index: 1, kind: input, shape index: {}]
  %s2 = inlined_call_operand.hbm [shape: bf16[128,128], index: 2, kind: input, shape index: {}]
  %s3 = inlined_call_operand.vmem [shape: f32[1,128], index: 3, kind: input, shape index: {}]
  %s4 = inlined_call_operand.hbm [shape: bf16[128,128], index: 4, kind: input, shape index: {}]
  %s5 = inlined_call_operand.vmem [shape: f32[1,128], index: 5, kind: input, shape index: {}]
  %s6 = inlined_call_operand.hbm [shape: bf16[128,128], index: 6, kind: input, shape index: {}]
  %s7 = inlined_call_operand.vmem [shape: f32[1,128], index: 7, kind: input, shape index: {}]
  %s8 = inlined_call_operand.hbm [shape: bf16[128,128], index: 8, kind: input, shape index: {}]
  %s9 = inlined_call_operand.vmem [shape: f32[1,128], index: 9, kind: input, shape index: {}]
  %s10 = inlined_call_operand.vmem [shape: f32[1,128], index: 10, kind: input, shape index: {}]
  %s11 = inlined_call_operand.vmem [shape: f32[1,128], index: 11, kind: input, shape index: {}]
  %s12 = inlined_call_operand.hbm [shape: bf16[128,256], index: 12, kind: input, shape index: {}]
  %s13 = inlined_call_operand.vmem [shape: f32[1,256], index: 13, kind: input, shape index: {}]
  %s14 = inlined_call_operand.hbm [shape: bf16[256,128], index: 14, kind: input, shape index: {}]
  %s15 = inlined_call_operand.vmem [shape: f32[1,128], index: 15, kind: input, shape index: {}]
  %s16 = inlined_call_operand.vmem [shape: f32[1,128], index: 16, kind: input, shape index: {}]
  %s17 = inlined_call_operand.vmem [shape: f32[1,128], index: 17, kind: input, shape index: {}]
  %s18 = inlined_call_operand.hbm [shape: f32[2,16,128], index: 18, kind: output, shape index: {}]
  %s19 = sld [smem:[#allocation0]]
  $region137: #{tpu_custom_call.1} parent=0
    _
  %s21 = ssub.s32 1, %s19
  %s22 = scalar_select 0, %s21, %s19
  $region1: #{tpu_custom_call.1} parent=0
    #allocation2 [shape = 'u8[16384]{0}', space=vmem, size = 0x4000, scoped, tag = 'input window, operand 0']
    #allocation3 [shape = 's32[2]{0}', space=sflag, size = 0x8, scoped, tag = 'scoped memory for tpu_custom_call.1']
    #allocation4 [shape = 's32[2]{0}', space=sflag, size = 0x8, scoped, tag = 'scoped memory for tpu_custom_call.1']
    #allocation5 [shape = 'u8[1024]{0}', space=vmem, size = 0x400, scoped, tag = 'input window, operand 1']
    #allocation6 [shape = 's32[2]{0}', space=sflag, size = 0x8, scoped, tag = 'scoped memory for tpu_custom_call.1']
    #allocation7 [shape = 'u8[32768]{0}', space=vmem, size = 0x8000, scoped, tag = 'input window, operand 2, single buffered']
    #allocation8 [shape = 'u8[32768]{0}', space=vmem, size = 0x8000, scoped, tag = 'input window, operand 4, single buffered']
    #allocation9 [shape = 's32[1]{0}', space=sflag, size = 0x4, scoped, tag = 'scoped memory for tpu_custom_call.1']
    #allocation10 [shape = 'u8[32768]{0}', space=vmem, size = 0x8000, scoped, tag = 'input window, operand 6, single buffered']
    #allocation11 [shape = 'u8[32768]{0}', space=vmem, size = 0x8000, scoped, tag = 'input window, operand 8, single buffered']
    #allocation12 [shape = 's32[1]{0}', space=sflag, size = 0x4, scoped, tag = 'scoped memory for tpu_custom_call.1']
    #allocation13 [shape = 'u8[65536]{0}', space=vmem, size = 0x10000, scoped, tag = 'input window, operand 12, single buffered']
    #allocation14 [shape = 'u8[65536]{0}', space=vmem, size = 0x10000, scoped, tag = 'input window, operand 14, single buffered']
    #allocation15 [shape = 's32[1]{0}', space=sflag, size = 0x4, scoped, tag = 'scoped memory for tpu_custom_call.1']
    #allocation16 [shape = 'u8[16384]{0}', space=vmem, size = 0x4000, scoped, tag = 'output window, operand 0']
    %23 = vsyncpa [#allocation3], 0
    %s24 = scalar_lea.sflag [#allocation3], 1
    %25 = vsyncpa %s24, 0
    %26 = vsyncpa [#allocation6], 0
    %s27 = scalar_lea.sflag [#allocation6], 1
    %28 = vsyncpa %s27, 0
    %29 = vsyncpa [#allocation9], 0
    %30 = vsyncpa [#allocation12], 0
    %31 = vsyncpa [#allocation15], 0
    %32 = vsyncpa [#allocation4], 0
    %s33 = scalar_lea.sflag [#allocation4], 1
    %34 = vsyncpa %s33, 0
    loop: start=0, step=1, limit=4
    $region2: #{tpu_custom_call.1} parent=1 // loop_pre_header
      _
    $region3: #{tpu_custom_call.1} parent=1 // loop_header
      %s36 = sphi 0, %s40
      %p37 = scmp.ge.s32.totalorder %s36, 4
      %s46 = sphi 0, %s48
      %s49 = sphi 0, %s46
      %s50 = sphi 0, %s49
      %s66 = sphi 0, %s50
      %s72 = sphi 0, %s74
      %s75 = sphi 0, %s72
      %s76 = sphi 0, %s75
      %s92 = sphi 0, %s76
      %s96 = sphi 0, %s96
      %s98 = sphi 0, %s96
      %s99 = sphi 0, %s98
      %s113 = sphi 0, %s99
      %s117 = sphi 0, %s117
      %s119 = sphi 0, %s117
      %s120 = sphi 0, %s119
      %s134 = sphi 0, %s120
      %s138 = sphi 0, %s138
      %s140 = sphi 0, %s138
      %s141 = sphi 0, %s140
      %s155 = sphi 0, %s141
      %s159 = sphi 0, %s159
      %s161 = sphi 0, %s159
      %s162 = sphi 0, %s161
      %s176 = sphi 0, %s162
      %s180 = sphi 0, %s180
      %s182 = sphi 0, %s180
      %s183 = sphi 0, %s182
      %s197 = sphi 0, %s183
      %s201 = sphi 0, %s201
      %s203 = sphi 0, %s201
      %s204 = sphi 0, %s203
      %s218 = sphi 0, %s204
      %s222 = sphi 0, %s222
      %s224 = sphi 0, %s222
      %s225 = sphi 0, %s224
      %s239 = sphi 0, %s225
      %s243 = sphi 0, %s243
      %s245 = sphi 0, %s243
      %s246 = sphi 0, %s245
      %s260 = sphi 0, %s246
      %s264 = sphi 0, %s264
      %s266 = sphi 0, %s264
      %s267 = sphi 0, %s266
      %s281 = sphi 0, %s267
      %s285 = sphi 0, %s285
      %s287 = sphi 0, %s285
      %s288 = sphi 0, %s287
      %s302 = sphi 0, %s288
      %s306 = sphi 0, %s306
      %s308 = sphi 0, %s306
      %s309 = sphi 0, %s308
      %s323 = sphi 0, %s309
      %s327 = sphi 0, %s327
      %s329 = sphi 0, %s327
      %s330 = sphi 0, %s329
      %s344 = sphi 0, %s330
      %s348 = sphi 0, %s348
      %s350 = sphi 0, %s348
      %s351 = sphi 0, %s350
      %s365 = sphi 0, %s351
      %s369 = sphi 0, %s369
      %s371 = sphi 0, %s369
      %s372 = sphi 0, %s371
      %s386 = sphi 0, %s372
      %s390 = sphi 0, %s390
      %s392 = sphi 0, %s390
      %s393 = sphi 0, %s392
      %s407 = sphi 0, %s393
      %s411 = sphi 0, %s411
      %s413 = sphi 0, %s411
      %s414 = sphi 0, %s413
      %s428 = sphi 0, %s414
      %s434 = sphi 0, %s436
      %s437 = sphi 0, %s434
      %s438 = sphi 0, %s437
      %s454 = sphi 0, %s438
    $region4: #{tpu_custom_call.1} parent=1 // loop_header_branch
      %39 = sbr.rel (%p37) target = $region8
    $region5: #{tpu_custom_call.1} parent=1 // loop_body
      %s41 = ssub.s32 %s36, 1
      %s42 = ssub.s32 %s36, 2
      %s43 = sadd.s32 %s36, 1
      %s44 = ssub.s32 %s36, %s43
      %p45 = scmp.eq.s32.totalorder %s44, 0
      %s47 = sadd.s32 %s46, 1
      %s48 = scalar_select %p45, %s46, %s47
      %p51 = pneg %p45
      %p52 = scmp.eq.s32.totalorder %s36, 1
      %p53 = por %p51, %p52
      %p54 = scmp.ne.s32.totalorder %s46, %s49
      %p55 = scmp.eq.s32.totalorder %s36, 0
      %p56 = por %p54, %p55
      %p57 = scmp.ne.s32.totalorder %s46, %s49
      %p58 = scmp.eq.s32.totalorder %s41, 1
      %p59 = por %p57, %p58
      %p60 = scmp.ne.s32.totalorder %s49, %s50
      %p61 = scmp.eq.s32.totalorder %s41, 0
      %p62 = por %p60, %p61
      %p63 = scmp.ne.s32.totalorder %s49, %s50
      %p64 = scmp.eq.s32.totalorder %s42, 1
      %p65 = por %p63, %p64
      %p67 = scmp.ne.s32.totalorder %s50, %s66
      %p68 = scmp.eq.s32.totalorder %s42, 0
      %p69 = por %p67, %p68
      %s70 = ssub.s32 %s36, %s43
      %p71 = scmp.eq.s32.totalorder %s70, 0
      %s73 = sadd.s32 %s72, 1
      %s74 = scalar_select %p71, %s72, %s73
      %p77 = pneg %p71
      %p78 = scmp.eq.s32.totalorder %s36, 1
      %p79 = por %p77, %p78
      %p80 = scmp.ne.s32.totalorder %s72, %s75
      %p81 = scmp.eq.s32.totalorder %s36, 0
      %p82 = por %p80, %p81
      %p83 = scmp.ne.s32.totalorder %s72, %s75
      %p84 = scmp.eq.s32.totalorder %s41, 1
      %p85 = por %p83, %p84
      %p86 = scmp.ne.s32.totalorder %s75, %s76
      %p87 = scmp.eq.s32.totalorder %s41, 0
      %p88 = por %p86, %p87
      %p89 = scmp.ne.s32.totalorder %s75, %s76
      %p90 = scmp.eq.s32.totalorder %s42, 1
      %p91 = por %p89, %p90
      %p93 = scmp.ne.s32.totalorder %s76, %s92
      %p94 = scmp.eq.s32.totalorder %s42, 0
      %p95 = por %p93, %p94
      %s97 = sadd.s32 %s96, 1
      %p100 = scmp.eq.s32.totalorder %s36, 1
      %p101 = scmp.ne.s32.totalorder %s96, %s98
      %p102 = scmp.eq.s32.totalorder %s36, 0
      %p103 = por %p101, %p102
      %p104 = scmp.ne.s32.totalorder %s96, %s98
      %p105 = scmp.eq.s32.totalorder %s41, 1
      %p106 = por %p104, %p105
      %p107 = scmp.ne.s32.totalorder %s98, %s99
      %p108 = scmp.eq.s32.totalorder %s41, 0
      %p109 = por %p107, %p108
      %p110 = scmp.ne.s32.totalorder %s98, %s99
      %p111 = scmp.eq.s32.totalorder %s42, 1
      %p112 = por %p110, %p111
      %p114 = scmp.ne.s32.totalorder %s99, %s113
      %p115 = scmp.eq.s32.totalorder %s42, 0
      %p116 = por %p114, %p115
      %s118 = sadd.s32 %s117, 1
      %p121 = scmp.eq.s32.totalorder %s36, 1
      %p122 = scmp.ne.s32.totalorder %s117, %s119
      %p123 = scmp.eq.s32.totalorder %s36, 0
      %p124 = por %p122, %p123
      %p125 = scmp.ne.s32.totalorder %s117, %s119
      %p126 = scmp.eq.s32.totalorder %s41, 1
      %p127 = por %p125, %p126
      %p128 = scmp.ne.s32.totalorder %s119, %s120
      %p129 = scmp.eq.s32.totalorder %s41, 0
      %p130 = por %p128, %p129
      %p131 = scmp.ne.s32.totalorder %s119, %s120
      %p132 = scmp.eq.s32.totalorder %s42, 1
      %p133 = por %p131, %p132
      %p135 = scmp.ne.s32.totalorder %s120, %s134
      %p136 = scmp.eq.s32.totalorder %s42, 0
      %p137 = por %p135, %p136
      %s139 = sadd.s32 %s138, 1
      %p142 = scmp.eq.s32.totalorder %s36, 1
      %p143 = scmp.ne.s32.totalorder %s138, %s140
      %p144 = scmp.eq.s32.totalorder %s36, 0
      %p145 = por %p143, %p144
      %p146 = scmp.ne.s32.totalorder %s138, %s140
      %p147 = scmp.eq.s32.totalorder %s41, 1
      %p148 = por %p146, %p147
      %p149 = scmp.ne.s32.totalorder %s140, %s141
      %p150 = scmp.eq.s32.totalorder %s41, 0
      %p151 = por %p149, %p150
      %p152 = scmp.ne.s32.totalorder %s140, %s141
      %p153 = scmp.eq.s32.totalorder %s42, 1
      %p154 = por %p152, %p153
      %p156 = scmp.ne.s32.totalorder %s141, %s155
      %p157 = scmp.eq.s32.totalorder %s42, 0
      %p158 = por %p156, %p157
      %s160 = sadd.s32 %s159, 1
      %p163 = scmp.eq.s32.totalorder %s36, 1
      %p164 = scmp.ne.s32.totalorder %s159, %s161
      %p165 = scmp.eq.s32.totalorder %s36, 0
      %p166 = por %p164, %p165
      %p167 = scmp.ne.s32.totalorder %s159, %s161
      %p168 = scmp.eq.s32.totalorder %s41, 1
      %p169 = por %p167, %p168
      %p170 = scmp.ne.s32.totalorder %s161, %s162
      %p171 = scmp.eq.s32.totalorder %s41, 0
      %p172 = por %p170, %p171
      %p173 = scmp.ne.s32.totalorder %s161, %s162
      %p174 = scmp.eq.s32.totalorder %s42, 1
      %p175 = por %p173, %p174
      %p177 = scmp.ne.s32.totalorder %s162, %s176
      %p178 = scmp.eq.s32.totalorder %s42, 0
      %p179 = por %p177, %p178
      %s181 = sadd.s32 %s180, 1
      %p184 = scmp.eq.s32.totalorder %s36, 1
      %p185 = scmp.ne.s32.totalorder %s180, %s182
      %p186 = scmp.eq.s32.totalorder %s36, 0
      %p187 = por %p185, %p186
      %p188 = scmp.ne.s32.totalorder %s180, %s182
      %p189 = scmp.eq.s32.totalorder %s41, 1
      %p190 = por %p188, %p189
      %p191 = scmp.ne.s32.totalorder %s182, %s183
      %p192 = scmp.eq.s32.totalorder %s41, 0
      %p193 = por %p191, %p192
      %p194 = scmp.ne.s32.totalorder %s182, %s183
      %p195 = scmp.eq.s32.totalorder %s42, 1
      %p196 = por %p194, %p195
      %p198 = scmp.ne.s32.totalorder %s183, %s197
      %p199 = scmp.eq.s32.totalorder %s42, 0
      %p200 = por %p198, %p199
      %s202 = sadd.s32 %s201, 1
      %p205 = scmp.eq.s32.totalorder %s36, 1
      %p206 = scmp.ne.s32.totalorder %s201, %s203
      %p207 = scmp.eq.s32.totalorder %s36, 0
      %p208 = por %p206, %p207
      %p209 = scmp.ne.s32.totalorder %s201, %s203
      %p210 = scmp.eq.s32.totalorder %s41, 1
      %p211 = por %p209, %p210
      %p212 = scmp.ne.s32.totalorder %s203, %s204
      %p213 = scmp.eq.s32.totalorder %s41, 0
      %p214 = por %p212, %p213
      %p215 = scmp.ne.s32.totalorder %s203, %s204
      %p216 = scmp.eq.s32.totalorder %s42, 1
      %p217 = por %p215, %p216
      %p219 = scmp.ne.s32.totalorder %s204, %s218
      %p220 = scmp.eq.s32.totalorder %s42, 0
      %p221 = por %p219, %p220
      %s223 = sadd.s32 %s222, 1
      %p226 = scmp.eq.s32.totalorder %s36, 1
      %p227 = scmp.ne.s32.totalorder %s222, %s224
      %p228 = scmp.eq.s32.totalorder %s36, 0
      %p229 = por %p227, %p228
      %p230 = scmp.ne.s32.totalorder %s222, %s224
      %p231 = scmp.eq.s32.totalorder %s41, 1
      %p232 = por %p230, %p231
      %p233 = scmp.ne.s32.totalorder %s224, %s225
      %p234 = scmp.eq.s32.totalorder %s41, 0
      %p235 = por %p233, %p234
      %p236 = scmp.ne.s32.totalorder %s224, %s225
      %p237 = scmp.eq.s32.totalorder %s42, 1
      %p238 = por %p236, %p237
      %p240 = scmp.ne.s32.totalorder %s225, %s239
      %p241 = scmp.eq.s32.totalorder %s42, 0
      %p242 = por %p240, %p241
      %s244 = sadd.s32 %s243, 1
      %p247 = scmp.eq.s32.totalorder %s36, 1
      %p248 = scmp.ne.s32.totalorder %s243, %s245
      %p249 = scmp.eq.s32.totalorder %s36, 0
      %p250 = por %p248, %p249
      %p251 = scmp.ne.s32.totalorder %s243, %s245
      %p252 = scmp.eq.s32.totalorder %s41, 1
      %p253 = por %p251, %p252
      %p254 = scmp.ne.s32.totalorder %s245, %s246
      %p255 = scmp.eq.s32.totalorder %s41, 0
      %p256 = por %p254, %p255
      %p257 = scmp.ne.s32.totalorder %s245, %s246
      %p258 = scmp.eq.s32.totalorder %s42, 1
      %p259 = por %p257, %p258
      %p261 = scmp.ne.s32.totalorder %s246, %s260
      %p262 = scmp.eq.s32.totalorder %s42, 0
      %p263 = por %p261, %p262
      %s265 = sadd.s32 %s264, 1
      %p268 = scmp.eq.s32.totalorder %s36, 1
      %p269 = scmp.ne.s32.totalorder %s264, %s266
      %p270 = scmp.eq.s32.totalorder %s36, 0
      %p271 = por %p269, %p270
      %p272 = scmp.ne.s32.totalorder %s264, %s266
      %p273 = scmp.eq.s32.totalorder %s41, 1
      %p274 = por %p272, %p273
      %p275 = scmp.ne.s32.totalorder %s266, %s267
      %p276 = scmp.eq.s32.totalorder %s41, 0
      %p277 = por %p275, %p276
      %p278 = scmp.ne.s32.totalorder %s266, %s267
      %p279 = scmp.eq.s32.totalorder %s42, 1
      %p280 = por %p278, %p279
      %p282 = scmp.ne.s32.totalorder %s267, %s281
      %p283 = scmp.eq.s32.totalorder %s42, 0
      %p284 = por %p282, %p283
      %s286 = sadd.s32 %s285, 1
      %p289 = scmp.eq.s32.totalorder %s36, 1
      %p290 = scmp.ne.s32.totalorder %s285, %s287
      %p291 = scmp.eq.s32.totalorder %s36, 0
      %p292 = por %p290, %p291
      %p293 = scmp.ne.s32.totalorder %s285, %s287
      %p294 = scmp.eq.s32.totalorder %s41, 1
      %p295 = por %p293, %p294
      %p296 = scmp.ne.s32.totalorder %s287, %s288
      %p297 = scmp.eq.s32.totalorder %s41, 0
      %p298 = por %p296, %p297
      %p299 = scmp.ne.s32.totalorder %s287, %s288
      %p300 = scmp.eq.s32.totalorder %s42, 1
      %p301 = por %p299, %p300
      %p303 = scmp.ne.s32.totalorder %s288, %s302
      %p304 = scmp.eq.s32.totalorder %s42, 0
      %p305 = por %p303, %p304
      %s307 = sadd.s32 %s306, 1
      %p310 = scmp.eq.s32.totalorder %s36, 1
      %p311 = scmp.ne.s32.totalorder %s306, %s308
      %p312 = scmp.eq.s32.totalorder %s36, 0
      %p313 = por %p311, %p312
      %p314 = scmp.ne.s32.totalorder %s306, %s308
      %p315 = scmp.eq.s32.totalorder %s41, 1
      %p316 = por %p314, %p315
      %p317 = scmp.ne.s32.totalorder %s308, %s309
      %p318 = scmp.eq.s32.totalorder %s41, 0
      %p319 = por %p317, %p318
      %p320 = scmp.ne.s32.totalorder %s308, %s309
      %p321 = scmp.eq.s32.totalorder %s42, 1
      %p322 = por %p320, %p321
      %p324 = scmp.ne.s32.totalorder %s309, %s323
      %p325 = scmp.eq.s32.totalorder %s42, 0
      %p326 = por %p324, %p325
      %s328 = sadd.s32 %s327, 1
      %p331 = scmp.eq.s32.totalorder %s36, 1
      %p332 = scmp.ne.s32.totalorder %s327, %s329
      %p333 = scmp.eq.s32.totalorder %s36, 0
      %p334 = por %p332, %p333
      %p335 = scmp.ne.s32.totalorder %s327, %s329
      %p336 = scmp.eq.s32.totalorder %s41, 1
      %p337 = por %p335, %p336
      %p338 = scmp.ne.s32.totalorder %s329, %s330
      %p339 = scmp.eq.s32.totalorder %s41, 0
      %p340 = por %p338, %p339
      %p341 = scmp.ne.s32.totalorder %s329, %s330
      %p342 = scmp.eq.s32.totalorder %s42, 1
      %p343 = por %p341, %p342
      %p345 = scmp.ne.s32.totalorder %s330, %s344
      %p346 = scmp.eq.s32.totalorder %s42, 0
      %p347 = por %p345, %p346
      %s349 = sadd.s32 %s348, 1
      %p352 = scmp.eq.s32.totalorder %s36, 1
      %p353 = scmp.ne.s32.totalorder %s348, %s350
      %p354 = scmp.eq.s32.totalorder %s36, 0
      %p355 = por %p353, %p354
      %p356 = scmp.ne.s32.totalorder %s348, %s350
      %p357 = scmp.eq.s32.totalorder %s41, 1
      %p358 = por %p356, %p357
      %p359 = scmp.ne.s32.totalorder %s350, %s351
      %p360 = scmp.eq.s32.totalorder %s41, 0
      %p361 = por %p359, %p360
      %p362 = scmp.ne.s32.totalorder %s350, %s351
      %p363 = scmp.eq.s32.totalorder %s42, 1
      %p364 = por %p362, %p363
      %p366 = scmp.ne.s32.totalorder %s351, %s365
      %p367 = scmp.eq.s32.totalorder %s42, 0
      %p368 = por %p366, %p367
      %s370 = sadd.s32 %s369, 1
      %p373 = scmp.eq.s32.totalorder %s36, 1
      %p374 = scmp.ne.s32.totalorder %s369, %s371
      %p375 = scmp.eq.s32.totalorder %s36, 0
      %p376 = por %p374, %p375
      %p377 = scmp.ne.s32.totalorder %s369, %s371
      %p378 = scmp.eq.s32.totalorder %s41, 1
      %p379 = por %p377, %p378
      %p380 = scmp.ne.s32.totalorder %s371, %s372
      %p381 = scmp.eq.s32.totalorder %s41, 0
      %p382 = por %p380, %p381
      %p383 = scmp.ne.s32.totalorder %s371, %s372
      %p384 = scmp.eq.s32.totalorder %s42, 1
      %p385 = por %p383, %p384
      %p387 = scmp.ne.s32.totalorder %s372, %s386
      %p388 = scmp.eq.s32.totalorder %s42, 0
      %p389 = por %p387, %p388
      %s391 = sadd.s32 %s390, 1
      %p394 = scmp.eq.s32.totalorder %s36, 1
      %p395 = scmp.ne.s32.totalorder %s390, %s392
      %p396 = scmp.eq.s32.totalorder %s36, 0
      %p397 = por %p395, %p396
      %p398 = scmp.ne.s32.totalorder %s390, %s392
      %p399 = scmp.eq.s32.totalorder %s41, 1
      %p400 = por %p398, %p399
      %p401 = scmp.ne.s32.totalorder %s392, %s393
      %p402 = scmp.eq.s32.totalorder %s41, 0
      %p403 = por %p401, %p402
      %p404 = scmp.ne.s32.totalorder %s392, %s393
      %p405 = scmp.eq.s32.totalorder %s42, 1
      %p406 = por %p404, %p405
      %p408 = scmp.ne.s32.totalorder %s393, %s407
      %p409 = scmp.eq.s32.totalorder %s42, 0
      %p410 = por %p408, %p409
      %s412 = sadd.s32 %s411, 1
      %p415 = scmp.eq.s32.totalorder %s36, 1
      %p416 = scmp.ne.s32.totalorder %s411, %s413
      %p417 = scmp.eq.s32.totalorder %s36, 0
      %p418 = por %p416, %p417
      %p419 = scmp.ne.s32.totalorder %s411, %s413
      %p420 = scmp.eq.s32.totalorder %s41, 1
      %p421 = por %p419, %p420
      %p422 = scmp.ne.s32.totalorder %s413, %s414
      %p423 = scmp.eq.s32.totalorder %s41, 0
      %p424 = por %p422, %p423
      %p425 = scmp.ne.s32.totalorder %s413, %s414
      %p426 = scmp.eq.s32.totalorder %s42, 1
      %p427 = por %p425, %p426
      %p429 = scmp.ne.s32.totalorder %s414, %s428
      %p430 = scmp.eq.s32.totalorder %s42, 0
      %p431 = por %p429, %p430
      %s432 = ssub.s32 %s36, %s43
      %p433 = scmp.eq.s32.totalorder %s432, 0
      %s435 = sadd.s32 %s434, 1
      %s436 = scalar_select %p433, %s434, %s435
      %p439 = pneg %p433
      %p440 = scmp.eq.s32.totalorder %s36, 1
      %p441 = por %p439, %p440
      %p442 = scmp.ne.s32.totalorder %s434, %s437
      %p443 = scmp.eq.s32.totalorder %s36, 0
      %p444 = por %p442, %p443
      %p445 = scmp.ne.s32.totalorder %s434, %s437
      %p446 = scmp.eq.s32.totalorder %s41, 1
      %p447 = por %p445, %p446
      %p448 = scmp.ne.s32.totalorder %s437, %s438
      %p449 = scmp.eq.s32.totalorder %s41, 0
      %p450 = por %p448, %p449
      %p451 = scmp.ne.s32.totalorder %s437, %s438
      %p452 = scmp.eq.s32.totalorder %s42, 1
      %p453 = por %p451, %p452
      %p455 = scmp.ne.s32.totalorder %s438, %s454
      %p456 = scmp.eq.s32.totalorder %s42, 0
      %p457 = por %p455, %p456
      %p458 = scmp.le.s32.totalorder 1, %s36
      %p459 = scmp.lt.s32.totalorder %s36, 3
      %p460 = pnand %p458, %p459
      %p461 = pneg %p460
      // Predicated region
      $region9: #{tpu_custom_call.1} parent=5 // pred_check
        _
      $region10: #{tpu_custom_call.1} parent=5 // pred_check_branch
        %463 = sbr.rel (%p460) target = $region12
      $region11: #{tpu_custom_call.1} parent=5 // pred_region
        %s464 = ssub.s32 %s36, 1
        // Predicated region
        $region13: #{tpu_custom_call.1} parent=11 // pred_check
          %p465 = pneg %p109
        $region14: #{tpu_custom_call.1} parent=11 // pred_check_branch
          %467 = sbr.rel (%p465) target = $region16
        $region15: #{tpu_custom_call.1} parent=11 // pred_region
          %469 = vsyncadd [#allocation6], 0
          %s470 = sshll.u32 %s2, 4
          %s471 = int_to_ptr.hbm [resolvable:$true] %s470
          %s472 = sshll.u32 [#allocation7], 4
          %s473 = int_to_ptr.vmem [resolvable:$true] %s472
          %478 = dma.hbm_to_vmem [thread:$0]  %s471, 1024, %s473, [#allocation6], 64, 64, 4
        $region16: #{tpu_custom_call.1} parent=11 // pred_fallthru
          _
        // Predicated region
        $region17: #{tpu_custom_call.1} parent=11 // pred_check
          %p479 = pneg %p130
        $region18: #{tpu_custom_call.1} parent=11 // pred_check_branch
          %481 = sbr.rel (%p479) target = $region20
        $region19: #{tpu_custom_call.1} parent=11 // pred_region
          _
        $region20: #{tpu_custom_call.1} parent=11 // pred_fallthru
          _
        // Predicated region
        $region21: #{tpu_custom_call.1} parent=11 // pred_check
          %p482 = pneg %p151
        $region22: #{tpu_custom_call.1} parent=11 // pred_check_branch
          %484 = sbr.rel (%p482) target = $region24
        $region23: #{tpu_custom_call.1} parent=11 // pred_region
          %486 = vsyncadd [#allocation9], 0
          %s487 = sshll.u32 %s4, 4
          %s488 = int_to_ptr.hbm [resolvable:$true] %s487
          %s489 = sshll.u32 [#allocation8], 4
          %s490 = int_to_ptr.vmem [resolvable:$true] %s489
          %495 = dma.hbm_to_vmem [thread:$0]  %s488, 1024, %s490, [#allocation9], 64, 64, 4
        $region24: #{tpu_custom_call.1} parent=11 // pred_fallthru
          _
        // Predicated region
        $region25: #{tpu_custom_call.1} parent=11 // pred_check
          %p496 = pneg %p172
        $region26: #{tpu_custom_call.1} parent=11 // pred_check_branch
          %498 = sbr.rel (%p496) target = $region28
        $region27: #{tpu_custom_call.1} parent=11 // pred_region
          _
        $region28: #{tpu_custom_call.1} parent=11 // pred_fallthru
          _
        // Predicated region
        $region29: #{tpu_custom_call.1} parent=11 // pred_check
          %p499 = pneg %p193
        $region30: #{tpu_custom_call.1} parent=11 // pred_check_branch
          %501 = sbr.rel (%p499) target = $region32
        $region31: #{tpu_custom_call.1} parent=11 // pred_region
          %503 = vsyncadd [#allocation9], 0
          %s504 = sshll.u32 %s6, 4
          %s505 = int_to_ptr.hbm [resolvable:$true] %s504
          %s506 = sshll.u32 [#allocation10], 4
          %s507 = int_to_ptr.vmem [resolvable:$true] %s506
          %512 = dma.hbm_to_vmem [thread:$0]  %s505, 1024, %s507, [#allocation9], 64, 64, 4
        $region32: #{tpu_custom_call.1} parent=11 // pred_fallthru
          _
        // Predicated region
        $region33: #{tpu_custom_call.1} parent=11 // pred_check
          %p513 = pneg %p214
        $region34: #{tpu_custom_call.1} parent=11 // pred_check_branch
          %515 = sbr.rel (%p513) target = $region36
        $region35: #{tpu_custom_call.1} parent=11 // pred_region
          _
        $region36: #{tpu_custom_call.1} parent=11 // pred_fallthru
          _
        // Predicated region
        $region37: #{tpu_custom_call.1} parent=11 // pred_check
          %p516 = pneg %p235
        $region38: #{tpu_custom_call.1} parent=11 // pred_check_branch
          %518 = sbr.rel (%p516) target = $region40
        $region39: #{tpu_custom_call.1} parent=11 // pred_region
          %520 = vsyncadd [#allocation12], 0
          %s521 = sshll.u32 %s8, 4
          %s522 = int_to_ptr.hbm [resolvable:$true] %s521
          %s523 = sshll.u32 [#allocation11], 4
          %s524 = int_to_ptr.vmem [resolvable:$true] %s523
          %529 = dma.hbm_to_vmem [thread:$0]  %s522, 1024, %s524, [#allocation12], 64, 64, 4
        $region40: #{tpu_custom_call.1} parent=11 // pred_fallthru
          _
        // Predicated region
        $region41: #{tpu_custom_call.1} parent=11 // pred_check
          %p530 = pneg %p256
        $region42: #{tpu_custom_call.1} parent=11 // pred_check_branch
          %532 = sbr.rel (%p530) target = $region44
        $region43: #{tpu_custom_call.1} parent=11 // pred_region
          _
        $region44: #{tpu_custom_call.1} parent=11 // pred_fallthru
          _
        // Predicated region
        $region45: #{tpu_custom_call.1} parent=11 // pred_check
          %p533 = pneg %p277
        $region46: #{tpu_custom_call.1} parent=11 // pred_check_branch
          %535 = sbr.rel (%p533) target = $region48
        $region47: #{tpu_custom_call.1} parent=11 // pred_region
          _
        $region48: #{tpu_custom_call.1} parent=11 // pred_fallthru
          _
        // Predicated region
        $region49: #{tpu_custom_call.1} parent=11 // pred_check
          %p536 = pneg %p298
        $region50: #{tpu_custom_call.1} parent=11 // pred_check_branch
          %538 = sbr.rel (%p536) target = $region52
        $region51: #{tpu_custom_call.1} parent=11 // pred_region
          _
        $region52: #{tpu_custom_call.1} parent=11 // pred_fallthru
          _
        // Predicated region
        $region53: #{tpu_custom_call.1} parent=11 // pred_check
          %p539 = pneg %p319
        $region54: #{tpu_custom_call.1} parent=11 // pred_check_branch
          %541 = sbr.rel (%p539) target = $region56
        $region55: #{tpu_custom_call.1} parent=11 // pred_region
          %543 = vsyncadd [#allocation12], 0
          %s544 = sshll.u32 %s12, 4
          %s545 = int_to_ptr.hbm [resolvable:$true] %s544
          %s546 = sshll.u32 [#allocation13], 4
          %s547 = int_to_ptr.vmem [resolvable:$true] %s546
          %552 = dma.hbm_to_vmem [thread:$0]  %s545, 2048, %s547, [#allocation12], 128, 128, 8
        $region56: #{tpu_custom_call.1} parent=11 // pred_fallthru
          _
        // Predicated region
        $region57: #{tpu_custom_call.1} parent=11 // pred_check
          %p553 = pneg %p340
        $region58: #{tpu_custom_call.1} parent=11 // pred_check_branch
          %555 = sbr.rel (%p553) target = $region60
        $region59: #{tpu_custom_call.1} parent=11 // pred_region
          _
        $region60: #{tpu_custom_call.1} parent=11 // pred_fallthru
          _
        // Predicated region
        $region61: #{tpu_custom_call.1} parent=11 // pred_check
          %p556 = pneg %p361
        $region62: #{tpu_custom_call.1} parent=11 // pred_check_branch
          %558 = sbr.rel (%p556) target = $region64
        $region63: #{tpu_custom_call.1} parent=11 // pred_region
          %560 = vsyncadd [#allocation15], 0
          %s561 = sshll.u32 %s14, 4
          %s562 = int_to_ptr.hbm [resolvable:$true] %s561
          %s563 = sshll.u32 [#allocation14], 4
          %s564 = int_to_ptr.vmem [resolvable:$true] %s563
          %569 = dma.hbm_to_vmem [thread:$0]  %s562, 2048, %s564, [#allocation15], 64, 64, 4
        $region64: #{tpu_custom_call.1} parent=11 // pred_fallthru
          _
        // Predicated region
        $region65: #{tpu_custom_call.1} parent=11 // pred_check
          %p570 = pneg %p382
        $region66: #{tpu_custom_call.1} parent=11 // pred_check_branch
          %572 = sbr.rel (%p570) target = $region68
        $region67: #{tpu_custom_call.1} parent=11 // pred_region
          _
        $region68: #{tpu_custom_call.1} parent=11 // pred_fallthru
          _
        // Predicated region
        $region69: #{tpu_custom_call.1} parent=11 // pred_check
          %p573 = pneg %p403
        $region70: #{tpu_custom_call.1} parent=11 // pred_check_branch
          %575 = sbr.rel (%p573) target = $region72
        $region71: #{tpu_custom_call.1} parent=11 // pred_region
          _
        $region72: #{tpu_custom_call.1} parent=11 // pred_fallthru
          _
        // Predicated region
        $region73: #{tpu_custom_call.1} parent=11 // pred_check
          %p576 = pneg %p424
        $region74: #{tpu_custom_call.1} parent=11 // pred_check_branch
          %578 = sbr.rel (%p576) target = $region76
        $region75: #{tpu_custom_call.1} parent=11 // pred_region
          _
        $region76: #{tpu_custom_call.1} parent=11 // pred_fallthru
          _
      $region12: #{tpu_custom_call.1} parent=5 // pred_fallthru
        _
      %p579 = scmp.lt.s32.totalorder %s36, 2
      // Predicated region
      $region77: #{tpu_custom_call.1} parent=5 // pred_check
        %p580 = pneg %p579
      $region78: #{tpu_custom_call.1} parent=5 // pred_check_branch
        %582 = sbr.rel (%p580) target = $region80
      $region79: #{tpu_custom_call.1} parent=5 // pred_region
        // Predicated region
        $region81: #{tpu_custom_call.1} parent=79 // pred_check
          %p583 = pneg %p56
        $region82: #{tpu_custom_call.1} parent=79 // pred_check_branch
          %585 = sbr.rel (%p583) target = $region84
        $region83: #{tpu_custom_call.1} parent=79 // pred_region
          %s586 = sand.u32 %s46, 1
          %s587 = scalar_lea.sflag [#allocation3], %s586
          %s588 = sand.u32 %s46, 1
          %s589 = smul.addr %s588, 16
          %s590 = scalar_lea.vmem [#allocation2], %s589
          %592 = vsyncadd %s587, 0
          %s593 = smul.addr %s36, 2
          %s594 = smul.addr %s593, 8
          %s595 = scalar_lea.hbm %s0, %s594
          %s596 = sshll.u32 %s595, 4
          %s597 = int_to_ptr.hbm [resolvable:$true] %s596
          %s598 = sshll.u32 %s590, 4
          %s599 = int_to_ptr.vmem [resolvable:$true] %s598
          %604 = dma.hbm_to_vmem [thread:$0]  %s597, 256, %s599, %s587, 128, 128, 8
        $region84: #{tpu_custom_call.1} parent=79 // pred_fallthru
          _
        // Predicated region
        $region85: #{tpu_custom_call.1} parent=79 // pred_check
          %p605 = pneg %p82
        $region86: #{tpu_custom_call.1} parent=79 // pred_check_branch
          %607 = sbr.rel (%p605) target = $region88
        $region87: #{tpu_custom_call.1} parent=79 // pred_region
          %s608 = sand.u32 %s36, 1
          %s609 = scalar_lea.sflag [#allocation6], %s608
          %s610 = sand.u32 %s72, 1
          %s611 = scalar_lea.vmem [#allocation5], %s610
          %613 = vsyncadd %s609, 0
          %s614 = scalar_lea.hbm %s1, %s36
          %s616 = sshll.u32 %s614, 4
          %s617 = int_to_ptr.hbm [resolvable:$true] %s616
          %s618 = sshll.u32 %s611, 4
          %s619 = int_to_ptr.vmem [resolvable:$true] %s618
          %621 = dma.hbm_to_vmem [thread:$0]  %s617, 16, %s619, %s609
        $region88: #{tpu_custom_call.1} parent=79 // pred_fallthru
          _
      $region80: #{tpu_custom_call.1} parent=5 // pred_fallthru
        _
      %p622 = scmp.le.s32.totalorder 1, %s36
      %p623 = scmp.lt.s32.totalorder %s36, 3
      %p624 = pnand %p622, %p623
      %p625 = pneg %p624
      // Predicated region
      $region89: #{tpu_custom_call.1} parent=5 // pred_check
        _
      $region90: #{tpu_custom_call.1} parent=5 // pred_check_branch
        %627 = sbr.rel (%p624) target = $region92
      $region91: #{tpu_custom_call.1} parent=5 // pred_region
        %s628 = ssub.s32 %s36, 1
        %s629 = sand.u32 %s49, 1
        %s630 = scalar_lea.sflag [#allocation3], %s629
        %s631 = sand.u32 %s49, 1
        %s632 = smul.addr %s631, 16
        %s633 = scalar_lea.vmem [#allocation2], %s632
        // Predicated region
        $region93: #{tpu_custom_call.1} parent=91 // pred_check
          %p634 = pneg %p62
        $region94: #{tpu_custom_call.1} parent=91 // pred_check_branch
          %636 = sbr.rel (%p634) target = $region96
        $region95: #{tpu_custom_call.1} parent=91 // pred_region
          %638 = dma.done %s630, 256
        $region96: #{tpu_custom_call.1} parent=91 // pred_fallthru
          _
        %s639 = sand.u32 %s41, 1
        %s640 = scalar_lea.sflag [#allocation6], %s639
        %s641 = sand.u32 %s75, 1
        %s642 = scalar_lea.vmem [#allocation5], %s641
        // Predicated region
        $region97: #{tpu_custom_call.1} parent=91 // pred_check
          %p643 = pneg %p88
        $region98: #{tpu_custom_call.1} parent=91 // pred_check_branch
          %645 = sbr.rel (%p643) target = $region100
        $region99: #{tpu_custom_call.1} parent=91 // pred_region
          %647 = dma.done %s640, 16
        $region100: #{tpu_custom_call.1} parent=91 // pred_fallthru
          _
        // Predicated region
        $region101: #{tpu_custom_call.1} parent=91 // pred_check
          %p648 = pneg %p109
        $region102: #{tpu_custom_call.1} parent=91 // pred_check_branch
          %650 = sbr.rel (%p648) target = $region104
        $region103: #{tpu_custom_call.1} parent=91 // pred_region
          %652 = dma.done [#allocation6], 1024
        $region104: #{tpu_custom_call.1} parent=91 // pred_fallthru
          _
        // Predicated region
        $region105: #{tpu_custom_call.1} parent=91 // pred_check
          %p653 = pneg %p151
        $region106: #{tpu_custom_call.1} parent=91 // pred_check_branch
          %655 = sbr.rel (%p653) target = $region108
        $region107: #{tpu_custom_call.1} parent=91 // pred_region
          %657 = dma.done [#allocation9], 1024
        $region108: #{tpu_custom_call.1} parent=91 // pred_fallthru
          _
        // Predicated region
        $region109: #{tpu_custom_call.1} parent=91 // pred_check
          %p658 = pneg %p193
        $region110: #{tpu_custom_call.1} parent=91 // pred_check_branch
          %660 = sbr.rel (%p658) target = $region112
        $region111: #{tpu_custom_call.1} parent=91 // pred_region
          %662 = dma.done [#allocation9], 1024
        $region112: #{tpu_custom_call.1} parent=91 // pred_fallthru
          _
        // Predicated region
        $region113: #{tpu_custom_call.1} parent=91 // pred_check
          %p663 = pneg %p235
        $region114: #{tpu_custom_call.1} parent=91 // pred_check_branch
          %665 = sbr.rel (%p663) target = $region116
        $region115: #{tpu_custom_call.1} parent=91 // pred_region
          %667 = dma.done [#allocation12], 1024
        $region116: #{tpu_custom_call.1} parent=91 // pred_fallthru
          _
        // Predicated region
        $region117: #{tpu_custom_call.1} parent=91 // pred_check
          %p668 = pneg %p319
        $region118: #{tpu_custom_call.1} parent=91 // pred_check_branch
          %670 = sbr.rel (%p668) target = $region120
        $region119: #{tpu_custom_call.1} parent=91 // pred_region
          %672 = dma.done [#allocation12], 2048
        $region120: #{tpu_custom_call.1} parent=91 // pred_fallthru
          _
        // Predicated region
        $region121: #{tpu_custom_call.1} parent=91 // pred_check
          %p673 = pneg %p361
        $region122: #{tpu_custom_call.1} parent=91 // pred_check_branch
          %675 = sbr.rel (%p673) target = $region124
        $region123: #{tpu_custom_call.1} parent=91 // pred_region
          %677 = dma.done [#allocation15], 2048
        $region124: #{tpu_custom_call.1} parent=91 // pred_fallthru
          _
        %s678 = sand.u32 %s49, 1
        %s679 = scalar_lea.sflag [#allocation3], %s678
        %s680 = sand.u32 %s49, 1
        %s681 = smul.addr %s680, 16
        %s682 = scalar_lea.vmem [#allocation2], %s681
        %p683 = pneg %p62
        %p684 = pneg %p59
        %s685 = sand.u32 %s41, 1
        %s686 = scalar_lea.sflag [#allocation6], %s685
        %s687 = sand.u32 %s75, 1
        %s688 = scalar_lea.vmem [#allocation5], %s687
        %p689 = pneg %p88
        %p690 = pneg %p85
        %p691 = pneg %p109
        %p692 = pneg %p106
        %p693 = pneg %p130
        %p694 = pneg %p127
        %p695 = pneg %p151
        %p696 = pneg %p148
        %p697 = pneg %p172
        %p698 = pneg %p169
        %p699 = pneg %p193
        %p700 = pneg %p190
        %p701 = pneg %p214
        %p702 = pneg %p211
        %p703 = pneg %p235
        %p704 = pneg %p232
        %p705 = pneg %p256
        %p706 = pneg %p253
        %p707 = pneg %p277
        %p708 = pneg %p274
        %p709 = pneg %p298
        %p710 = pneg %p295
        %p711 = pneg %p319
        %p712 = pneg %p316
        %p713 = pneg %p340
        %p714 = pneg %p337
        %p715 = pneg %p361
        %p716 = pneg %p358
        %p717 = pneg %p382
        %p718 = pneg %p379
        %p719 = pneg %p403
        %p720 = pneg %p400
        %p721 = pneg %p424
        %p722 = pneg %p421
        %p723 = pneg %p450
        %p724 = pneg %p447
        %s725 = sand.u32 %s437, 1
        %s726 = scalar_lea.sflag [#allocation4], %s725
        %s727 = sand.u32 %s437, 1
        %s728 = smul.addr %s727, 16
        %s729 = scalar_lea.vmem [#allocation16], %s728
        %v731 = vld [vmem:[%s633] sm:$0xff]
        %v732 = vld [vmem:[%s633 + $0x8] sm:$0xff]
        %v733 = vpack.c.bf16 %v732, %v731
        %v734 = vld [vmem:[#allocation7] sm:$0xf]
        %v735 = vld [vmem:[#allocation7 + $0x4] sm:$0xf]
        %v736 = vld [vmem:[#allocation7 + $0x8] sm:$0xf]
        %v737 = vld [vmem:[#allocation7 + $0xc] sm:$0xf]
        %v738 = vld [vmem:[#allocation7 + $0x10] sm:$0xf]
        %v739 = vld [vmem:[#allocation7 + $0x14] sm:$0xf]
        %v740 = vld [vmem:[#allocation7 + $0x18] sm:$0xf]
        %v741 = vld [vmem:[#allocation7 + $0x1c] sm:$0xf]
        %v742 = vld [vmem:[#allocation7 + $0x20] sm:$0xf]
        %v743 = vld [vmem:[#allocation7 + $0x24] sm:$0xf]
        %v744 = vld [vmem:[#allocation7 + $0x28] sm:$0xf]
        %v745 = vld [vmem:[#allocation7 + $0x2c] sm:$0xf]
        %v746 = vld [vmem:[#allocation7 + $0x30] sm:$0xf]
        %v747 = vld [vmem:[#allocation7 + $0x34] sm:$0xf]
        %v748 = vld [vmem:[#allocation7 + $0x38] sm:$0xf]
        %v749 = vld [vmem:[#allocation7 + $0x3c] sm:$0xf]
        %v750 = vld [vmem:[%s3] sm:$0x1]
        %v752 = vperm.slane %v750, 0
        %v770 = vunpack.c.l.b16 %v734
        %v771 = vunpack.c.l.b16 %v735
        %v772 = vunpack.c.l.b16 %v736
        %v773 = vunpack.c.l.b16 %v737
        %v774 = vunpack.c.l.b16 %v738
        %v775 = vunpack.c.l.b16 %v739
        %v776 = vunpack.c.l.b16 %v740
        %v777 = vunpack.c.l.b16 %v741
        %v778 = vunpack.c.l.b16 %v742
        %v779 = vunpack.c.l.b16 %v743
        %v780 = vunpack.c.l.b16 %v744
        %v781 = vunpack.c.l.b16 %v745
        %v782 = vunpack.c.l.b16 %v746
        %v783 = vunpack.c.l.b16 %v747
        %v784 = vunpack.c.l.b16 %v748
        %v785 = vunpack.c.l.b16 %v749
        %v786 = vpack.c.b16 %v771, %v770
        %v787 = vpack.c.b16 %v773, %v772
        %v788 = vpack.c.b16 %v775, %v774
        %v789 = vpack.c.b16 %v777, %v776
        %v790 = vpack.c.b16 %v779, %v778
        %v791 = vpack.c.b16 %v781, %v780
        %v792 = vpack.c.b16 %v783, %v782
        %v793 = vpack.c.b16 %v785, %v784
        %802 = vmatpush.bf16.msra.mxu0 %v793
        %803 = vmatpush.bf16.msra.mxu0 %v792
        %804 = vmatpush.bf16.msra.mxu0 %v791
        %805 = vmatpush.bf16.msra.mxu0 %v790
        %806 = vmatpush.bf16.msra.mxu0 %v789
        %807 = vmatpush.bf16.msra.mxu0 %v788
        %808 = vmatpush.bf16.msra.mxu0 %v787
        %809 = vmatpush.bf16.msra.mxu0 %v786
        %810 = vmatmul.bf16.gmra.mxu0 %v733
        %v811 = vpop.f32.mrf.mxu0
        %v812 = vadd.f32 %v752, %v811
        %v813 = vpop.f32.mrf.mxu0
        %v814 = vadd.f32 %v752, %v813
        %815 = vdwg.mxu0
        %v816 = vmul.f32 %v812, 0.25
        %v817 = vmul.f32 %v814, 0.25
        %v818 = vpack.c.bf16 %v816, %v816
        %v819 = vpack.c.bf16 %v817, %v817
        %v820 = vld [vmem:[#allocation8] sm:$0xf]
        %v821 = vld [vmem:[#allocation8 + $0x4] sm:$0xf]
        %v822 = vld [vmem:[#allocation8 + $0x8] sm:$0xf]
        %v823 = vld [vmem:[#allocation8 + $0xc] sm:$0xf]
        %v824 = vld [vmem:[#allocation8 + $0x10] sm:$0xf]
        %v825 = vld [vmem:[#allocation8 + $0x14] sm:$0xf]
        %v826 = vld [vmem:[#allocation8 + $0x18] sm:$0xf]
        %v827 = vld [vmem:[#allocation8 + $0x1c] sm:$0xf]
        %v828 = vld [vmem:[#allocation8 + $0x20] sm:$0xf]
        %v829 = vld [vmem:[#allocation8 + $0x24] sm:$0xf]
        %v830 = vld [vmem:[#allocation8 + $0x28] sm:$0xf]
        %v831 = vld [vmem:[#allocation8 + $0x2c] sm:$0xf]
        %v832 = vld [vmem:[#allocation8 + $0x30] sm:$0xf]
        %v833 = vld [vmem:[#allocation8 + $0x34] sm:$0xf]
        %v834 = vld [vmem:[#allocation8 + $0x38] sm:$0xf]
        %v835 = vld [vmem:[#allocation8 + $0x3c] sm:$0xf]
        %v836 = vld [vmem:[%s5] sm:$0x1]
        %v838 = vperm.slane %v836, 0
        %v856 = vunpack.c.l.b16 %v820
        %v857 = vunpack.c.l.b16 %v821
        %v858 = vunpack.c.l.b16 %v822
        %v859 = vunpack.c.l.b16 %v823
        %v860 = vunpack.c.l.b16 %v824
        %v861 = vunpack.c.l.b16 %v825
        %v862 = vunpack.c.l.b16 %v826
        %v863 = vunpack.c.l.b16 %v827
        %v864 = vunpack.c.l.b16 %v828
        %v865 = vunpack.c.l.b16 %v829
        %v866 = vunpack.c.l.b16 %v830
        %v867 = vunpack.c.l.b16 %v831
        %v868 = vunpack.c.l.b16 %v832
        %v869 = vunpack.c.l.b16 %v833
        %v870 = vunpack.c.l.b16 %v834
        %v871 = vunpack.c.l.b16 %v835
        %v872 = vpack.c.b16 %v857, %v856
        %v873 = vpack.c.b16 %v859, %v858
        %v874 = vpack.c.b16 %v861, %v860
        %v875 = vpack.c.b16 %v863, %v862
        %v876 = vpack.c.b16 %v865, %v864
        %v877 = vpack.c.b16 %v867, %v866
        %v878 = vpack.c.b16 %v869, %v868
        %v879 = vpack.c.b16 %v871, %v870
        %888 = vmatpush.bf16.msra.mxu0 %v879
        %889 = vmatpush.bf16.msra.mxu0 %v878
        %890 = vmatpush.bf16.msra.mxu0 %v877
        %891 = vmatpush.bf16.msra.mxu0 %v876
        %892 = vmatpush.bf16.msra.mxu0 %v875
        %893 = vmatpush.bf16.msra.mxu0 %v874
        %894 = vmatpush.bf16.msra.mxu0 %v873
        %895 = vmatpush.bf16.msra.mxu0 %v872
        %896 = vmatmul.bf16.gmra.mxu0 %v733
        %v897 = vpop.f32.mrf.mxu0
        %v898 = vadd.f32 %v838, %v897
        %v899 = vpop.f32.mrf.mxu0
        %v900 = vadd.f32 %v838, %v899
        %901 = vdwg.mxu0
        %v902 = vpack.c.bf16 %v898, %v898
        %v903 = vpack.c.bf16 %v900, %v900
        %v904 = vld [vmem:[#allocation10] sm:$0xf]
        %v905 = vld [vmem:[#allocation10 + $0x4] sm:$0xf]
        %v906 = vld [vmem:[#allocation10 + $0x8] sm:$0xf]
        %v907 = vld [vmem:[#allocation10 + $0xc] sm:$0xf]
        %v908 = vld [vmem:[#allocation10 + $0x10] sm:$0xf]
        %v909 = vld [vmem:[#allocation10 + $0x14] sm:$0xf]
        %v910 = vld [vmem:[#allocation10 + $0x18] sm:$0xf]
        %v911 = vld [vmem:[#allocation10 + $0x1c] sm:$0xf]
        %v912 = vld [vmem:[#allocation10 + $0x20] sm:$0xf]
        %v913 = vld [vmem:[#allocation10 + $0x24] sm:$0xf]
        %v914 = vld [vmem:[#allocation10 + $0x28] sm:$0xf]
        %v915 = vld [vmem:[#allocation10 + $0x2c] sm:$0xf]
        %v916 = vld [vmem:[#allocation10 + $0x30] sm:$0xf]
        %v917 = vld [vmem:[#allocation10 + $0x34] sm:$0xf]
        %v918 = vld [vmem:[#allocation10 + $0x38] sm:$0xf]
        %v919 = vld [vmem:[#allocation10 + $0x3c] sm:$0xf]
        %v920 = vld [vmem:[%s7] sm:$0x1]
        %v922 = vperm.slane %v920, 0
        %v940 = vunpack.c.l.b16 %v904
        %v941 = vunpack.c.l.b16 %v905
        %v942 = vunpack.c.l.b16 %v906
        %v943 = vunpack.c.l.b16 %v907
        %v944 = vunpack.c.l.b16 %v908
        %v945 = vunpack.c.l.b16 %v909
        %v946 = vunpack.c.l.b16 %v910
        %v947 = vunpack.c.l.b16 %v911
        %v948 = vunpack.c.l.b16 %v912
        %v949 = vunpack.c.l.b16 %v913
        %v950 = vunpack.c.l.b16 %v914
        %v951 = vunpack.c.l.b16 %v915
        %v952 = vunpack.c.l.b16 %v916
        %v953 = vunpack.c.l.b16 %v917
        %v954 = vunpack.c.l.b16 %v918
        %v955 = vunpack.c.l.b16 %v919
        %v956 = vpack.c.b16 %v941, %v940
        %v957 = vpack.c.b16 %v943, %v942
        %v958 = vpack.c.b16 %v945, %v944
        %v959 = vpack.c.b16 %v947, %v946
        %v960 = vpack.c.b16 %v949, %v948
        %v961 = vpack.c.b16 %v951, %v950
        %v962 = vpack.c.b16 %v953, %v952
        %v963 = vpack.c.b16 %v955, %v954
        %972 = vmatpush.bf16.msra.mxu0 %v963
        %973 = vmatpush.bf16.msra.mxu0 %v962
        %974 = vmatpush.bf16.msra.mxu0 %v961
        %975 = vmatpush.bf16.msra.mxu0 %v960
        %976 = vmatpush.bf16.msra.mxu0 %v959
        %977 = vmatpush.bf16.msra.mxu0 %v958
        %978 = vmatpush.bf16.msra.mxu0 %v957
        %979 = vmatpush.bf16.msra.mxu0 %v956
        %980 = vmatmul.bf16.gmra.mxu0 %v733
        %v981 = vpop.f32.mrf.mxu0
        %v982 = vadd.f32 %v922, %v981
        %v983 = vpop.f32.mrf.mxu0
        %v984 = vadd.f32 %v922, %v983
        %985 = vdwg.mxu0
        %v986 = vpack.c.bf16 %v982, %v982
        %v987 = vpack.c.bf16 %v984, %v984
        %v988 = vld [vmem:[%s642] sm:$0x1]
        %v990 = vperm.slane %v988, 0
        %v994 = vunpack.c.l.b16 %v818
        %v995 = vunpack.c.l.b16 %v819
        %v996 = vpack.c.b16 %v995, %v994
        %v999 = vunpack.c.l.b16 %v902
        %v1000 = vunpack.c.l.b16 %v903
        %v1001 = vpack.c.b16 %v1000, %v999
        %vm1002 = vcmask 130048
        %v1004 = vsel %vm1002, %v996, 0
        %v1007 = vsel %vm1002, %v1001, 0
        %1009 = vmatpush.bf16.xpose.msra.mxu0 0
        %1010 = vmatpush.bf16.xpose.msra.mxu0 0
        %1011 = vmatpush.bf16.xpose.msra.mxu0 0
        %1012 = vmatpush.bf16.xpose.msra.mxu0 0
        %1013 = vmatpush.bf16.xpose.msra.mxu0 0
        %1014 = vmatpush.bf16.xpose.msra.mxu0 0
        %1015 = vmatpush.bf16.xpose.msra.mxu0 0
        %1016 = vmatpush.bf16.xpose.msra.mxu0 %v1007
        %1017 = vmatmul.bf16.gmra.mxu0 %v1004
        %v1018 = vpop.f32.mrf.mxu0
        %v1019 = vadd.f32 %v990, %v1018
        %v1020 = vpop.f32.mrf.mxu0
        %v1021 = vadd.f32 %v990, %v1020
        %1022 = vdwg.mxu0
        %v1023 = vsel %vm1002, %v1019, -inf
        %1024 = vmax.xlane.f32.xlu0 %v1023
        %v1025 = vpop.xlane.xlu0 %1024
        %v1026 = vsel %vm1002, %v1021, -inf
        %1027 = vmax.xlane.f32.xlu0 %v1026
        %v1028 = vpop.xlane.xlu0 %1027
        %v1029 = vsub.f32 %v1019, %v1025
        %v1030 = vsub.f32 %v1021, %v1028
        %v1031 = vmul.f32 %v1029, 1.442695
        %v1032 = vpow.pop %v1031
        %v1033 = vmul.f32 %v1030, 1.442695
        %v1034 = vpow.pop %v1033
        %v1035 = vsel %vm1002, %v1032, 0.0
        %1036 = vadd.xlane.f32.xlu0 %v1035
        %v1037 = vpop.xlane.xlu0 %1036
        %v1038 = vsel %vm1002, %v1034, 0.0
        %1039 = vadd.xlane.f32.xlu0 %v1038
        %v1040 = vpop.xlane.xlu0 %1039
        %v1041 = vrcp.pop %v1037
        %v1042 = vrcp.pop %v1040
        %v1043 = vmul.f32 %v1032, %v1041
        %v1044 = vmul.f32 %v1034, %v1042
        %v1045 = vpack.c.bf16 %v1043, %v1043
        %v1046 = vpack.c.bf16 %v1044, %v1044
        %v1049 = vunpack.c.l.b16 %v1045
        %v1050 = vunpack.c.l.b16 %v1046
        %v1051 = vpack.c.b16 %v1050, %v1049
        %v1054 = vunpack.c.l.b16 %v986
        %v1055 = vunpack.c.l.b16 %v987
        %v1056 = vpack.c.b16 %v1055, %v1054
        %v1059 = vsel %vm1002, %v1051, 0
        %1061 = vmatpush.bf16.msra.mxu0 0
        %1062 = vmatpush.bf16.msra.mxu0 0
        %1063 = vmatpush.bf16.msra.mxu0 0
        %1064 = vmatpush.bf16.msra.mxu0 0
        %1065 = vmatpush.bf16.msra.mxu0 0
        %1066 = vmatpush.bf16.msra.mxu0 0
        %1067 = vmatpush.bf16.msra.mxu0 0
        %1068 = vmatpush.bf16.msra.mxu0 %v1056
        %1069 = vmatmul.bf16.gmra.mxu0 %v1059
        %v1070 = vpop.f32.mrf.mxu0
        %v1071 = vadd.f32 0.0, %v1070
        %v1072 = vpop.f32.mrf.mxu0
        %v1073 = vadd.f32 0.0, %v1072
        %1074 = vdwg.mxu0
        %1075 = vrot.lane.b32.xlu0 %v996, 112
        %v1076 = vpop.permute.xlu0 %1075
        %1077 = vrot.lane.b32.xlu0 %v1001, 112
        %v1078 = vpop.permute.xlu0 %1077
        %v1080 = vsel %vm1002, %v1076, 0
        %v1083 = vsel %vm1002, %v1078, 0
        %1085 = vmatpush.bf16.xpose.msra.mxu0 0
        %1086 = vmatpush.bf16.xpose.msra.mxu0 0
        %1087 = vmatpush.bf16.xpose.msra.mxu0 0
        %1088 = vmatpush.bf16.xpose.msra.mxu0 0
        %1089 = vmatpush.bf16.xpose.msra.mxu0 0
        %1090 = vmatpush.bf16.xpose.msra.mxu0 0
        %1091 = vmatpush.bf16.xpose.msra.mxu0 0
        %1092 = vmatpush.bf16.xpose.msra.mxu0 %v1083
        %1093 = vmatmul.bf16.gmra.mxu0 %v1080
        %v1094 = vpop.f32.mrf.mxu0
        %v1095 = vadd.f32 %v990, %v1094
        %v1096 = vpop.f32.mrf.mxu0
        %v1097 = vadd.f32 %v990, %v1096
        %1098 = vdwg.mxu0
        %v1099 = vsel %vm1002, %v1095, -inf
        %1100 = vmax.xlane.f32.xlu0 %v1099
        %v1101 = vpop.xlane.xlu0 %1100
        %v1102 = vsel %vm1002, %v1097, -inf
        %1103 = vmax.xlane.f32.xlu0 %v1102
        %v1104 = vpop.xlane.xlu0 %1103
        %v1105 = vsub.f32 %v1095, %v1101
        %v1106 = vsub.f32 %v1097, %v1104
        %v1107 = vmul.f32 %v1105, 1.442695
        %v1108 = vpow.pop %v1107
        %v1109 = vmul.f32 %v1106, 1.442695
        %v1110 = vpow.pop %v1109
        %v1111 = vsel %vm1002, %v1108, 0.0
        %1112 = vadd.xlane.f32.xlu0 %v1111
        %v1113 = vpop.xlane.xlu0 %1112
        %v1114 = vsel %vm1002, %v1110, 0.0
        %1115 = vadd.xlane.f32.xlu0 %v1114
        %v1116 = vpop.xlane.xlu0 %1115
        %v1117 = vrcp.pop %v1113
        %v1118 = vrcp.pop %v1116
        %v1119 = vmul.f32 %v1108, %v1117
        %v1120 = vmul.f32 %v1110, %v1118
        %v1121 = vpack.c.bf16 %v1119, %v1119
        %v1122 = vpack.c.bf16 %v1120, %v1120
        %v1125 = vunpack.c.l.b16 %v1121
        %v1126 = vunpack.c.l.b16 %v1122
        %v1127 = vpack.c.b16 %v1126, %v1125
        %1128 = vrot.lane.b32.xlu0 %v1056, 112
        %v1129 = vpop.permute.xlu0 %1128
        %v1132 = vsel %vm1002, %v1127, 0
        %1134 = vmatpush.bf16.msra.mxu0 0
        %1135 = vmatpush.bf16.msra.mxu0 0
        %1136 = vmatpush.bf16.msra.mxu0 0
        %1137 = vmatpush.bf16.msra.mxu0 0
        %1138 = vmatpush.bf16.msra.mxu0 0
        %1139 = vmatpush.bf16.msra.mxu0 0
        %1140 = vmatpush.bf16.msra.mxu0 0
        %1141 = vmatpush.bf16.msra.mxu0 %v1129
        %1142 = vmatmul.bf16.gmra.mxu0 %v1132
        %v1143 = vpop.f32.mrf.mxu0
        %v1144 = vadd.f32 0.0, %v1143
        %v1145 = vpop.f32.mrf.mxu0
        %v1146 = vadd.f32 0.0, %v1145
        %1147 = vdwg.mxu0
        %1148 = vrot.lane.b32.xlu0 %v996, 96
        %v1149 = vpop.permute.xlu0 %1148
        %1150 = vrot.lane.b32.xlu0 %v1001, 96
        %v1151 = vpop.permute.xlu0 %1150
        %v1153 = vsel %vm1002, %v1149, 0
        %v1156 = vsel %vm1002, %v1151, 0
        %1158 = vmatpush.bf16.xpose.msra.mxu0 0
        %1159 = vmatpush.bf16.xpose.msra.mxu0 0
        %1160 = vmatpush.bf16.xpose.msra.mxu0 0
        %1161 = vmatpush.bf16.xpose.msra.mxu0 0
        %1162 = vmatpush.bf16.xpose.msra.mxu0 0
        %1163 = vmatpush.bf16.xpose.msra.mxu0 0
        %1164 = vmatpush.bf16.xpose.msra.mxu0 0
        %1165 = vmatpush.bf16.xpose.msra.mxu0 %v1156
        %1166 = vmatmul.bf16.gmra.mxu0 %v1153
        %v1167 = vpop.f32.mrf.mxu0
        %v1168 = vadd.f32 %v990, %v1167
        %v1169 = vpop.f32.mrf.mxu0
        %v1170 = vadd.f32 %v990, %v1169
        %1171 = vdwg.mxu0
        %v1172 = vsel %vm1002, %v1168, -inf
        %1173 = vmax.xlane.f32.xlu0 %v1172
        %v1174 = vpop.xlane.xlu0 %1173
        %v1175 = vsel %vm1002, %v1170, -inf
        %1176 = vmax.xlane.f32.xlu0 %v1175
        %v1177 = vpop.xlane.xlu0 %1176
        %v1178 = vsub.f32 %v1168, %v1174
        %v1179 = vsub.f32 %v1170, %v1177
        %v1180 = vmul.f32 %v1178, 1.442695
        %v1181 = vpow.pop %v1180
        %v1182 = vmul.f32 %v1179, 1.442695
        %v1183 = vpow.pop %v1182
        %v1184 = vsel %vm1002, %v1181, 0.0
        %1185 = vadd.xlane.f32.xlu0 %v1184
        %v1186 = vpop.xlane.xlu0 %1185
        %v1187 = vsel %vm1002, %v1183, 0.0
        %1188 = vadd.xlane.f32.xlu0 %v1187
        %v1189 = vpop.xlane.xlu0 %1188
        %v1190 = vrcp.pop %v1186
        %v1191 = vrcp.pop %v1189
        %v1192 = vmul.f32 %v1181, %v1190
        %v1193 = vmul.f32 %v1183, %v1191
        %v1194 = vpack.c.bf16 %v1192, %v1192
        %v1195 = vpack.c.bf16 %v1193, %v1193
        %v1198 = vunpack.c.l.b16 %v1194
        %v1199 = vunpack.c.l.b16 %v1195
        %v1200 = vpack.c.b16 %v1199, %v1198
        %1201 = vrot.lane.b32.xlu0 %v1056, 96
        %v1202 = vpop.permute.xlu0 %1201
        %v1205 = vsel %vm1002, %v1200, 0
        %1207 = vmatpush.bf16.msra.mxu0 0
        %1208 = vmatpush.bf16.msra.mxu0 0
        %1209 = vmatpush.bf16.msra.mxu0 0
        %1210 = vmatpush.bf16.msra.mxu0 0
        %1211 = vmatpush.bf16.msra.mxu0 0
        %1212 = vmatpush.bf16.msra.mxu0 0
        %1213 = vmatpush.bf16.msra.mxu0 0
        %1214 = vmatpush.bf16.msra.mxu0 %v1202
        %1215 = vmatmul.bf16.gmra.mxu0 %v1205
        %v1216 = vpop.f32.mrf.mxu0
        %v1217 = vadd.f32 0.0, %v1216
        %v1218 = vpop.f32.mrf.mxu0
        %v1219 = vadd.f32 0.0, %v1218
        %1220 = vdwg.mxu0
        %1221 = vrot.lane.b32.xlu0 %v996, 80
        %v1222 = vpop.permute.xlu0 %1221
        %1223 = vrot.lane.b32.xlu0 %v1001, 80
        %v1224 = vpop.permute.xlu0 %1223
        %v1226 = vsel %vm1002, %v1222, 0
        %v1229 = vsel %vm1002, %v1224, 0
        %1231 = vmatpush.bf16.xpose.msra.mxu0 0
        %1232 = vmatpush.bf16.xpose.msra.mxu0 0
        %1233 = vmatpush.bf16.xpose.msra.mxu0 0
        %1234 = vmatpush.bf16.xpose.msra.mxu0 0
        %1235 = vmatpush.bf16.xpose.msra.mxu0 0
        %1236 = vmatpush.bf16.xpose.msra.mxu0 0
        %1237 = vmatpush.bf16.xpose.msra.mxu0 0
        %1238 = vmatpush.bf16.xpose.msra.mxu0 %v1229
        %1239 = vmatmul.bf16.gmra.mxu0 %v1226
        %v1240 = vpop.f32.mrf.mxu0
        %v1241 = vadd.f32 %v990, %v1240
        %v1242 = vpop.f32.mrf.mxu0
        %v1243 = vadd.f32 %v990, %v1242
        %1244 = vdwg.mxu0
        %v1245 = vsel %vm1002, %v1241, -inf
        %1246 = vmax.xlane.f32.xlu0 %v1245
        %v1247 = vpop.xlane.xlu0 %1246
        %v1248 = vsel %vm1002, %v1243, -inf
        %1249 = vmax.xlane.f32.xlu0 %v1248
        %v1250 = vpop.xlane.xlu0 %1249
        %v1251 = vsub.f32 %v1241, %v1247
        %v1252 = vsub.f32 %v1243, %v1250
        %v1253 = vmul.f32 %v1251, 1.442695
        %v1254 = vpow.pop %v1253
        %v1255 = vmul.f32 %v1252, 1.442695
        %v1256 = vpow.pop %v1255
        %v1257 = vsel %vm1002, %v1254, 0.0
        %1258 = vadd.xlane.f32.xlu0 %v1257
        %v1259 = vpop.xlane.xlu0 %1258
        %v1260 = vsel %vm1002, %v1256, 0.0
        %1261 = vadd.xlane.f32.xlu0 %v1260
        %v1262 = vpop.xlane.xlu0 %1261
        %v1263 = vrcp.pop %v1259
        %v1264 = vrcp.pop %v1262
        %v1265 = vmul.f32 %v1254, %v1263
        %v1266 = vmul.f32 %v1256, %v1264
        %v1267 = vpack.c.bf16 %v1265, %v1265
        %v1268 = vpack.c.bf16 %v1266, %v1266
        %v1271 = vunpack.c.l.b16 %v1267
        %v1272 = vunpack.c.l.b16 %v1268
        %v1273 = vpack.c.b16 %v1272, %v1271
        %1274 = vrot.lane.b32.xlu0 %v1056, 80
        %v1275 = vpop.permute.xlu0 %1274
        %v1278 = vsel %vm1002, %v1273, 0
        %1280 = vmatpush.bf16.msra.mxu0 0
        %1281 = vmatpush.bf16.msra.mxu0 0
        %1282 = vmatpush.bf16.msra.mxu0 0
        %1283 = vmatpush.bf16.msra.mxu0 0
        %1284 = vmatpush.bf16.msra.mxu0 0
        %1285 = vmatpush.bf16.msra.mxu0 0
        %1286 = vmatpush.bf16.msra.mxu0 0
        %1287 = vmatpush.bf16.msra.mxu0 %v1275
        %1288 = vmatmul.bf16.gmra.mxu0 %v1278
        %v1289 = vpop.f32.mrf.mxu0
        %v1290 = vadd.f32 0.0, %v1289
        %v1291 = vpop.f32.mrf.mxu0
        %v1292 = vadd.f32 0.0, %v1291
        %1293 = vdwg.mxu0
        %1294 = vrot.lane.b32.xlu0 %v996, 64
        %v1295 = vpop.permute.xlu0 %1294
        %1296 = vrot.lane.b32.xlu0 %v1001, 64
        %v1297 = vpop.permute.xlu0 %1296
        %v1299 = vsel %vm1002, %v1295, 0
        %v1302 = vsel %vm1002, %v1297, 0
        %1304 = vmatpush.bf16.xpose.msra.mxu0 0
        %1305 = vmatpush.bf16.xpose.msra.mxu0 0
        %1306 = vmatpush.bf16.xpose.msra.mxu0 0
        %1307 = vmatpush.bf16.xpose.msra.mxu0 0
        %1308 = vmatpush.bf16.xpose.msra.mxu0 0
        %1309 = vmatpush.bf16.xpose.msra.mxu0 0
        %1310 = vmatpush.bf16.xpose.msra.mxu0 0
        %1311 = vmatpush.bf16.xpose.msra.mxu0 %v1302
        %1312 = vmatmul.bf16.gmra.mxu0 %v1299
        %v1313 = vpop.f32.mrf.mxu0
        %v1314 = vadd.f32 %v990, %v1313
        %v1315 = vpop.f32.mrf.mxu0
        %v1316 = vadd.f32 %v990, %v1315
        %1317 = vdwg.mxu0
        %v1318 = vsel %vm1002, %v1314, -inf
        %1319 = vmax.xlane.f32.xlu0 %v1318
        %v1320 = vpop.xlane.xlu0 %1319
        %v1321 = vsel %vm1002, %v1316, -inf
        %1322 = vmax.xlane.f32.xlu0 %v1321
        %v1323 = vpop.xlane.xlu0 %1322
        %v1324 = vsub.f32 %v1314, %v1320
        %v1325 = vsub.f32 %v1316, %v1323
        %v1326 = vmul.f32 %v1324, 1.442695
        %v1327 = vpow.pop %v1326
        %v1328 = vmul.f32 %v1325, 1.442695
        %v1329 = vpow.pop %v1328
        %v1330 = vsel %vm1002, %v1327, 0.0
        %1331 = vadd.xlane.f32.xlu0 %v1330
        %v1332 = vpop.xlane.xlu0 %1331
        %v1333 = vsel %vm1002, %v1329, 0.0
        %1334 = vadd.xlane.f32.xlu0 %v1333
        %v1335 = vpop.xlane.xlu0 %1334
        %v1336 = vrcp.pop %v1332
        %v1337 = vrcp.pop %v1335
        %v1338 = vmul.f32 %v1327, %v1336
        %v1339 = vmul.f32 %v1329, %v1337
        %v1340 = vpack.c.bf16 %v1338, %v1338
        %v1341 = vpack.c.bf16 %v1339, %v1339
        %v1344 = vunpack.c.l.b16 %v1340
        %v1345 = vunpack.c.l.b16 %v1341
        %v1346 = vpack.c.b16 %v1345, %v1344
        %1347 = vrot.lane.b32.xlu0 %v1056, 64
        %v1348 = vpop.permute.xlu0 %1347
        %v1351 = vsel %vm1002, %v1346, 0
        %1353 = vmatpush.bf16.msra.mxu0 0
        %1354 = vmatpush.bf16.msra.mxu0 0
        %1355 = vmatpush.bf16.msra.mxu0 0
        %1356 = vmatpush.bf16.msra.mxu0 0
        %1357 = vmatpush.bf16.msra.mxu0 0
        %1358 = vmatpush.bf16.msra.mxu0 0
        %1359 = vmatpush.bf16.msra.mxu0 0
        %1360 = vmatpush.bf16.msra.mxu0 %v1348
        %1361 = vmatmul.bf16.gmra.mxu0 %v1351
        %v1362 = vpop.f32.mrf.mxu0
        %v1363 = vadd.f32 0.0, %v1362
        %v1364 = vpop.f32.mrf.mxu0
        %v1365 = vadd.f32 0.0, %v1364
        %1366 = vdwg.mxu0
        %1367 = vrot.lane.b32.xlu0 %v996, 48
        %v1368 = vpop.permute.xlu0 %1367
        %1369 = vrot.lane.b32.xlu0 %v1001, 48
        %v1370 = vpop.permute.xlu0 %1369
        %v1372 = vsel %vm1002, %v1368, 0
        %v1375 = vsel %vm1002, %v1370, 0
        %1377 = vmatpush.bf16.xpose.msra.mxu0 0
        %1378 = vmatpush.bf16.xpose.msra.mxu0 0
        %1379 = vmatpush.bf16.xpose.msra.mxu0 0
        %1380 = vmatpush.bf16.xpose.msra.mxu0 0
        %1381 = vmatpush.bf16.xpose.msra.mxu0 0
        %1382 = vmatpush.bf16.xpose.msra.mxu0 0
        %1383 = vmatpush.bf16.xpose.msra.mxu0 0
        %1384 = vmatpush.bf16.xpose.msra.mxu0 %v1375
        %1385 = vmatmul.bf16.gmra.mxu0 %v1372
        %v1386 = vpop.f32.mrf.mxu0
        %v1387 = vadd.f32 %v990, %v1386
        %v1388 = vpop.f32.mrf.mxu0
        %v1389 = vadd.f32 %v990, %v1388
        %1390 = vdwg.mxu0
        %v1391 = vsel %vm1002, %v1387, -inf
        %1392 = vmax.xlane.f32.xlu0 %v1391
        %v1393 = vpop.xlane.xlu0 %1392
        %v1394 = vsel %vm1002, %v1389, -inf
        %1395 = vmax.xlane.f32.xlu0 %v1394
        %v1396 = vpop.xlane.xlu0 %1395
        %v1397 = vsub.f32 %v1387, %v1393
        %v1398 = vsub.f32 %v1389, %v1396
        %v1399 = vmul.f32 %v1397, 1.442695
        %v1400 = vpow.pop %v1399
        %v1401 = vmul.f32 %v1398, 1.442695
        %v1402 = vpow.pop %v1401
        %v1403 = vsel %vm1002, %v1400, 0.0
        %1404 = vadd.xlane.f32.xlu0 %v1403
        %v1405 = vpop.xlane.xlu0 %1404
        %v1406 = vsel %vm1002, %v1402, 0.0
        %1407 = vadd.xlane.f32.xlu0 %v1406
        %v1408 = vpop.xlane.xlu0 %1407
        %v1409 = vrcp.pop %v1405
        %v1410 = vrcp.pop %v1408
        %v1411 = vmul.f32 %v1400, %v1409
        %v1412 = vmul.f32 %v1402, %v1410
        %v1413 = vpack.c.bf16 %v1411, %v1411
        %v1414 = vpack.c.bf16 %v1412, %v1412
        %v1417 = vunpack.c.l.b16 %v1413
        %v1418 = vunpack.c.l.b16 %v1414
        %v1419 = vpack.c.b16 %v1418, %v1417
        %1420 = vrot.lane.b32.xlu0 %v1056, 48
        %v1421 = vpop.permute.xlu0 %1420
        %v1424 = vsel %vm1002, %v1419, 0
        %1426 = vmatpush.bf16.msra.mxu0 0
        %1427 = vmatpush.bf16.msra.mxu0 0
        %1428 = vmatpush.bf16.msra.mxu0 0
        %1429 = vmatpush.bf16.msra.mxu0 0
        %1430 = vmatpush.bf16.msra.mxu0 0
        %1431 = vmatpush.bf16.msra.mxu0 0
        %1432 = vmatpush.bf16.msra.mxu0 0
        %1433 = vmatpush.bf16.msra.mxu0 %v1421
        %1434 = vmatmul.bf16.gmra.mxu0 %v1424
        %v1435 = vpop.f32.mrf.mxu0
        %v1436 = vadd.f32 0.0, %v1435
        %v1437 = vpop.f32.mrf.mxu0
        %v1438 = vadd.f32 0.0, %v1437
        %1439 = vdwg.mxu0
        %1440 = vrot.lane.b32.xlu0 %v996, 32
        %v1441 = vpop.permute.xlu0 %1440
        %1442 = vrot.lane.b32.xlu0 %v1001, 32
        %v1443 = vpop.permute.xlu0 %1442
        %v1445 = vsel %vm1002, %v1441, 0
        %v1448 = vsel %vm1002, %v1443, 0
        %1450 = vmatpush.bf16.xpose.msra.mxu0 0
        %1451 = vmatpush.bf16.xpose.msra.mxu0 0
        %1452 = vmatpush.bf16.xpose.msra.mxu0 0
        %1453 = vmatpush.bf16.xpose.msra.mxu0 0
        %1454 = vmatpush.bf16.xpose.msra.mxu0 0
        %1455 = vmatpush.bf16.xpose.msra.mxu0 0
        %1456 = vmatpush.bf16.xpose.msra.mxu0 0
        %1457 = vmatpush.bf16.xpose.msra.mxu0 %v1448
        %1458 = vmatmul.bf16.gmra.mxu0 %v1445
        %v1459 = vpop.f32.mrf.mxu0
        %v1460 = vadd.f32 %v990, %v1459
        %v1461 = vpop.f32.mrf.mxu0
        %v1462 = vadd.f32 %v990, %v1461
        %1463 = vdwg.mxu0
        %v1464 = vsel %vm1002, %v1460, -inf
        %1465 = vmax.xlane.f32.xlu0 %v1464
        %v1466 = vpop.xlane.xlu0 %1465
        %v1467 = vsel %vm1002, %v1462, -inf
        %1468 = vmax.xlane.f32.xlu0 %v1467
        %v1469 = vpop.xlane.xlu0 %1468
        %v1470 = vsub.f32 %v1460, %v1466
        %v1471 = vsub.f32 %v1462, %v1469
        %v1472 = vmul.f32 %v1470, 1.442695
        %v1473 = vpow.pop %v1472
        %v1474 = vmul.f32 %v1471, 1.442695
        %v1475 = vpow.pop %v1474
        %v1476 = vsel %vm1002, %v1473, 0.0
        %1477 = vadd.xlane.f32.xlu0 %v1476
        %v1478 = vpop.xlane.xlu0 %1477
        %v1479 = vsel %vm1002, %v1475, 0.0
        %1480 = vadd.xlane.f32.xlu0 %v1479
        %v1481 = vpop.xlane.xlu0 %1480
        %v1482 = vrcp.pop %v1478
        %v1483 = vrcp.pop %v1481
        %v1484 = vmul.f32 %v1473, %v1482
        %v1485 = vmul.f32 %v1475, %v1483
        %v1486 = vpack.c.bf16 %v1484, %v1484
        %v1487 = vpack.c.bf16 %v1485, %v1485
        %v1490 = vunpack.c.l.b16 %v1486
        %v1491 = vunpack.c.l.b16 %v1487
        %v1492 = vpack.c.b16 %v1491, %v1490
        %1493 = vrot.lane.b32.xlu0 %v1056, 32
        %v1494 = vpop.permute.xlu0 %1493
        %v1497 = vsel %vm1002, %v1492, 0
        %1499 = vmatpush.bf16.msra.mxu0 0
        %1500 = vmatpush.bf16.msra.mxu0 0
        %1501 = vmatpush.bf16.msra.mxu0 0
        %1502 = vmatpush.bf16.msra.mxu0 0
        %1503 = vmatpush.bf16.msra.mxu0 0
        %1504 = vmatpush.bf16.msra.mxu0 0
        %1505 = vmatpush.bf16.msra.mxu0 0
        %1506 = vmatpush.bf16.msra.mxu0 %v1494
        %1507 = vmatmul.bf16.gmra.mxu0 %v1497
        %v1508 = vpop.f32.mrf.mxu0
        %v1509 = vadd.f32 0.0, %v1508
        %v1510 = vpop.f32.mrf.mxu0
        %v1511 = vadd.f32 0.0, %v1510
        %1512 = vdwg.mxu0
        %1513 = vrot.lane.b32.xlu0 %v996, 16
        %v1514 = vpop.permute.xlu0 %1513
        %1515 = vrot.lane.b32.xlu0 %v1001, 16
        %v1516 = vpop.permute.xlu0 %1515
        %v1518 = vsel %vm1002, %v1514, 0
        %v1521 = vsel %vm1002, %v1516, 0
        %1523 = vmatpush.bf16.xpose.msra.mxu0 0
        %1524 = vmatpush.bf16.xpose.msra.mxu0 0
        %1525 = vmatpush.bf16.xpose.msra.mxu0 0
        %1526 = vmatpush.bf16.xpose.msra.mxu0 0
        %1527 = vmatpush.bf16.xpose.msra.mxu0 0
        %1528 = vmatpush.bf16.xpose.msra.mxu0 0
        %1529 = vmatpush.bf16.xpose.msra.mxu0 0
        %1530 = vmatpush.bf16.xpose.msra.mxu0 %v1521
        %1531 = vmatmul.bf16.gmra.mxu0 %v1518
        %v1532 = vpop.f32.mrf.mxu0
        %v1533 = vadd.f32 %v990, %v1532
        %v1534 = vpop.f32.mrf.mxu0
        %v1535 = vadd.f32 %v990, %v1534
        %1536 = vdwg.mxu0
        %v1537 = vsel %vm1002, %v1533, -inf
        %1538 = vmax.xlane.f32.xlu0 %v1537
        %v1539 = vpop.xlane.xlu0 %1538
        %v1540 = vsel %vm1002, %v1535, -inf
        %1541 = vmax.xlane.f32.xlu0 %v1540
        %v1542 = vpop.xlane.xlu0 %1541
        %v1543 = vsub.f32 %v1533, %v1539
        %v1544 = vsub.f32 %v1535, %v1542
        %v1545 = vmul.f32 %v1543, 1.442695
        %v1546 = vpow.pop %v1545
        %v1547 = vmul.f32 %v1544, 1.442695
        %v1548 = vpow.pop %v1547
        %v1549 = vsel %vm1002, %v1546, 0.0
        %1550 = vadd.xlane.f32.xlu0 %v1549
        %v1551 = vpop.xlane.xlu0 %1550
        %v1552 = vsel %vm1002, %v1548, 0.0
        %1553 = vadd.xlane.f32.xlu0 %v1552
        %v1554 = vpop.xlane.xlu0 %1553
        %v1555 = vrcp.pop %v1551
        %v1556 = vrcp.pop %v1554
        %v1557 = vmul.f32 %v1546, %v1555
        %v1558 = vmul.f32 %v1548, %v1556
        %v1559 = vpack.c.bf16 %v1557, %v1557
        %v1560 = vpack.c.bf16 %v1558, %v1558
        %v1563 = vunpack.c.l.b16 %v1559
        %v1564 = vunpack.c.l.b16 %v1560
        %v1565 = vpack.c.b16 %v1564, %v1563
        %1566 = vrot.lane.b32.xlu0 %v1056, 16
        %v1567 = vpop.permute.xlu0 %1566
        %v1570 = vsel %vm1002, %v1565, 0
        %1572 = vmatpush.bf16.msra.mxu0 0
        %1573 = vmatpush.bf16.msra.mxu0 0
        %1574 = vmatpush.bf16.msra.mxu0 0
        %1575 = vmatpush.bf16.msra.mxu0 0
        %1576 = vmatpush.bf16.msra.mxu0 0
        %1577 = vmatpush.bf16.msra.mxu0 0
        %1578 = vmatpush.bf16.msra.mxu0 0
        %1579 = vmatpush.bf16.msra.mxu0 %v1567
        %1580 = vmatmul.bf16.gmra.mxu0 %v1570
        %v1581 = vpop.f32.mrf.mxu0
        %v1582 = vadd.f32 0.0, %v1581
        %v1583 = vpop.f32.mrf.mxu0
        %v1584 = vadd.f32 0.0, %v1583
        %1585 = vdwg.mxu0
        %1588 = vrot.lane.b32.xlu0 %v1144, 16
        %v1589 = vpop.permute.xlu0 %1588
        %1590 = vrot.lane.b32.xlu0 %v1146, 16
        %v1591 = vpop.permute.xlu0 %1590
        %1596 = vrot.lane.b32.xlu0 %v1217, 32
        %v1597 = vpop.permute.xlu0 %1596
        %1598 = vrot.lane.b32.xlu0 %v1219, 32
        %v1599 = vpop.permute.xlu0 %1598
        %1604 = vrot.lane.b32.xlu0 %v1290, 48
        %v1605 = vpop.permute.xlu0 %1604
        %1606 = vrot.lane.b32.xlu0 %v1292, 48
        %v1607 = vpop.permute.xlu0 %1606
        %1612 = vrot.lane.b32.xlu0 %v1363, 64
        %v1613 = vpop.permute.xlu0 %1612
        %1614 = vrot.lane.b32.xlu0 %v1365, 64
        %v1615 = vpop.permute.xlu0 %1614
        %1620 = vrot.lane.b32.xlu0 %v1436, 80
        %v1621 = vpop.permute.xlu0 %1620
        %1622 = vrot.lane.b32.xlu0 %v1438, 80
        %v1623 = vpop.permute.xlu0 %1622
        %1628 = vrot.lane.b32.xlu0 %v1509, 96
        %v1629 = vpop.permute.xlu0 %1628
        %1630 = vrot.lane.b32.xlu0 %v1511, 96
        %v1631 = vpop.permute.xlu0 %1630
        %1636 = vrot.lane.b32.xlu0 %v1582, 112
        %v1637 = vpop.permute.xlu0 %1636
        %1638 = vrot.lane.b32.xlu0 %v1584, 112
        %v1639 = vpop.permute.xlu0 %1638
        %v1642 = vsel %vm1002, %v1071, %v1589
        %v1643 = vsel %vm1002, %v1073, %v1591
        %vm1644 = vcmask 261120
        %v1645 = vsel %vm1644, %v1642, %v1597
        %v1646 = vsel %vm1644, %v1643, %v1599
        %vm1647 = vcmask 392192
        %v1648 = vsel %vm1647, %v1645, %v1605
        %v1649 = vsel %vm1647, %v1646, %v1607
        %vm1650 = vcmask 523264
        %v1651 = vsel %vm1650, %v1648, %v1613
        %v1652 = vsel %vm1650, %v1649, %v1615
        %vm1653 = vcmask 654336
        %v1654 = vsel %vm1653, %v1651, %v1621
        %v1655 = vsel %vm1653, %v1652, %v1623
        %vm1656 = vcmask 785408
        %v1657 = vsel %vm1656, %v1654, %v1629
        %v1658 = vsel %vm1656, %v1655, %v1631
        %vm1659 = vcmask 916480
        %v1660 = vsel %vm1659, %v1657, %v1637
        %v1661 = vsel %vm1659, %v1658, %v1639
        %v1662 = vpack.c.bf16 %v1661, %v1660
        %v1663 = vld [vmem:[#allocation11] sm:$0xf]
        %v1664 = vld [vmem:[#allocation11 + $0x4] sm:$0xf]
        %v1665 = vld [vmem:[#allocation11 + $0x8] sm:$0xf]
        %v1666 = vld [vmem:[#allocation11 + $0xc] sm:$0xf]
        %v1667 = vld [vmem:[#allocation11 + $0x10] sm:$0xf]
        %v1668 = vld [vmem:[#allocation11 + $0x14] sm:$0xf]
        %v1669 = vld [vmem:[#allocation11 + $0x18] sm:$0xf]
        %v1670 = vld [vmem:[#allocation11 + $0x1c] sm:$0xf]
        %v1671 = vld [vmem:[#allocation11 + $0x20] sm:$0xf]
        %v1672 = vld [vmem:[#allocation11 + $0x24] sm:$0xf]
        %v1673 = vld [vmem:[#allocation11 + $0x28] sm:$0xf]
        %v1674 = vld [vmem:[#allocation11 + $0x2c] sm:$0xf]
        %v1675 = vld [vmem:[#allocation11 + $0x30] sm:$0xf]
        %v1676 = vld [vmem:[#allocation11 + $0x34] sm:$0xf]
        %v1677 = vld [vmem:[#allocation11 + $0x38] sm:$0xf]
        %v1678 = vld [vmem:[#allocation11 + $0x3c] sm:$0xf]
        %v1679 = vld [vmem:[%s9] sm:$0x1]
        %v1681 = vperm.slane %v1679, 0
        %v1699 = vunpack.c.l.b16 %v1663
        %v1700 = vunpack.c.l.b16 %v1664
        %v1701 = vunpack.c.l.b16 %v1665
        %v1702 = vunpack.c.l.b16 %v1666
        %v1703 = vunpack.c.l.b16 %v1667
        %v1704 = vunpack.c.l.b16 %v1668
        %v1705 = vunpack.c.l.b16 %v1669
        %v1706 = vunpack.c.l.b16 %v1670
        %v1707 = vunpack.c.l.b16 %v1671
        %v1708 = vunpack.c.l.b16 %v1672
        %v1709 = vunpack.c.l.b16 %v1673
        %v1710 = vunpack.c.l.b16 %v1674
        %v1711 = vunpack.c.l.b16 %v1675
        %v1712 = vunpack.c.l.b16 %v1676
        %v1713 = vunpack.c.l.b16 %v1677
        %v1714 = vunpack.c.l.b16 %v1678
        %v1715 = vpack.c.b16 %v1700, %v1699
        %v1716 = vpack.c.b16 %v1702, %v1701
        %v1717 = vpack.c.b16 %v1704, %v1703
        %v1718 = vpack.c.b16 %v1706, %v1705
        %v1719 = vpack.c.b16 %v1708, %v1707
        %v1720 = vpack.c.b16 %v1710, %v1709
        %v1721 = vpack.c.b16 %v1712, %v1711
        %v1722 = vpack.c.b16 %v1714, %v1713
        %1731 = vmatpush.bf16.msra.mxu0 %v1722
        %1732 = vmatpush.bf16.msra.mxu0 %v1721
        %1733 = vmatpush.bf16.msra.mxu0 %v1720
        %1734 = vmatpush.bf16.msra.mxu0 %v1719
        %1735 = vmatpush.bf16.msra.mxu0 %v1718
        %1736 = vmatpush.bf16.msra.mxu0 %v1717
        %1737 = vmatpush.bf16.msra.mxu0 %v1716
        %1738 = vmatpush.bf16.msra.mxu0 %v1715
        %1739 = vmatmul.bf16.gmra.mxu0 %v1662
        %v1740 = vpop.f32.mrf.mxu0
        %v1741 = vadd.f32 %v1681, %v1740
        %v1742 = vpop.f32.mrf.mxu0
        %v1743 = vadd.f32 %v1681, %v1742
        %1744 = vdwg.mxu0
        %v1745 = vadd.f32 %v1741, %v731
        %v1746 = vadd.f32 %v1743, %v732
        %v1747 = vld [vmem:[%s10] sm:$0x1]
        %v1748 = vld [vmem:[%s11] sm:$0x1]
        %1749 = vadd.xlane.f32.xlu0 %v1745
        %v1750 = vpop.xlane.xlu0 %1749
        %1751 = vadd.xlane.f32.xlu0 %v1746
        %v1752 = vpop.xlane.xlu0 %1751
        %v1753 = vrcp.pop 128.0
        %v1754 = vmul.f32 128.0, %v1753
        %v1755 = vsub.f32 1.0, %v1754
        %v1756 = vmul.f32 %v1753, %v1755
        %v1757 = vadd.f32 %v1753, %v1756
        %vm1758 = vweird.f32 %v1753
        %v1759 = vsel %vm1758, %v1753, %v1757
        %v1760 = vmul.f32 %v1750, %v1759
        %v1761 = vmul.f32 %v1752, %v1759
        %v1762 = vsub.f32 %v1745, %v1760
        %v1763 = vsub.f32 %v1746, %v1761
        %v1764 = vmul.f32 %v1762, %v1762
        %v1765 = vmul.f32 %v1763, %v1763
        %1766 = vadd.xlane.f32.xlu0 %v1764
        %v1767 = vpop.xlane.xlu0 %1766
        %1768 = vadd.xlane.f32.xlu0 %v1765
        %v1769 = vpop.xlane.xlu0 %1768
        %v1770 = vmul.f32 %v1767, %v1759
        %v1771 = vmul.f32 %v1769, %v1759
        %v1772 = vadd.f32 %v1770, 1e-12
        %v1773 = vadd.f32 %v1771, 1e-12
        %v1774 = vrsqrt.pop %v1772
        %v1775 = vmul.f32 %v1774, %v1772
        %v1776 = vmul.f32 %v1775, %v1774
        %v1777 = vmul.f32 0.5, %v1776
        %v1778 = vsub.f32 1.5, %v1777
        %v1779 = vmul.f32 %v1774, %v1778
        %vm1780 = vweird.f32 %v1772
        %vm1781 = vweird.f32 %v1774
        %vm1782 = vmor %vm1780, %vm1781
        %v1783 = vsel %vm1782, %v1774, %v1779
        %v1784 = vrsqrt.pop %v1773
        %v1785 = vmul.f32 %v1784, %v1773
        %v1786 = vmul.f32 %v1785, %v1784
        %v1787 = vmul.f32 0.5, %v1786
        %v1788 = vsub.f32 1.5, %v1787
        %v1789 = vmul.f32 %v1784, %v1788
        %vm1790 = vweird.f32 %v1773
        %vm1791 = vweird.f32 %v1784
        %vm1792 = vmor %vm1790, %vm1791
        %v1793 = vsel %vm1792, %v1784, %v1789
        %v1794 = vmul.f32 %v1762, %v1783
        %v1795 = vmul.f32 %v1763, %v1793
        %v1797 = vperm.slane %v1747, 0
        %v1799 = vmul.f32 %v1797, %v1794
        %v1800 = vmul.f32 %v1797, %v1795
        %v1802 = vperm.slane %v1748, 0
        %v1804 = vadd.f32 %v1799, %v1802
        %v1805 = vadd.f32 %v1800, %v1802
        %v1806 = vpack.c.bf16 %v1805, %v1804
        %v1807 = vld [vmem:[#allocation13] sm:$0xff]
        %v1808 = vld [vmem:[#allocation13 + $0x8] sm:$0xff]
        %v1809 = vld [vmem:[#allocation13 + $0x10] sm:$0xff]
        %v1810 = vld [vmem:[#allocation13 + $0x18] sm:$0xff]
        %v1811 = vld [vmem:[#allocation13 + $0x20] sm:$0xff]
        %v1812 = vld [vmem:[#allocation13 + $0x28] sm:$0xff]
        %v1813 = vld [vmem:[#allocation13 + $0x30] sm:$0xff]
        %v1814 = vld [vmem:[#allocation13 + $0x38] sm:$0xff]
        %v1815 = vld [vmem:[#allocation13 + $0x40] sm:$0xff]
        %v1816 = vld [vmem:[#allocation13 + $0x48] sm:$0xff]
        %v1817 = vld [vmem:[#allocation13 + $0x50] sm:$0xff]
        %v1818 = vld [vmem:[#allocation13 + $0x58] sm:$0xff]
        %v1819 = vld [vmem:[#allocation13 + $0x60] sm:$0xff]
        %v1820 = vld [vmem:[#allocation13 + $0x68] sm:$0xff]
        %v1821 = vld [vmem:[#allocation13 + $0x70] sm:$0xff]
        %v1822 = vld [vmem:[#allocation13 + $0x78] sm:$0xff]
        %v1823 = vld [vmem:[%s13] sm:$0x3]
        %v1825 = vperm.slane %v1823, 0
        %v1826 = vperm.slane %v1823, 1
        %v1845 = vunpack.c.l.b16 %v1807
        %v1846 = vunpack.c.h.b16 %v1807
        %v1847 = vunpack.c.l.b16 %v1808
        %v1848 = vunpack.c.h.b16 %v1808
        %v1849 = vunpack.c.l.b16 %v1809
        %v1850 = vunpack.c.h.b16 %v1809
        %v1851 = vunpack.c.l.b16 %v1810
        %v1852 = vunpack.c.h.b16 %v1810
        %v1853 = vunpack.c.l.b16 %v1811
        %v1854 = vunpack.c.h.b16 %v1811
        %v1855 = vunpack.c.l.b16 %v1812
        %v1856 = vunpack.c.h.b16 %v1812
        %v1857 = vunpack.c.l.b16 %v1813
        %v1858 = vunpack.c.h.b16 %v1813
        %v1859 = vunpack.c.l.b16 %v1814
        %v1860 = vunpack.c.h.b16 %v1814
        %v1861 = vunpack.c.l.b16 %v1815
        %v1862 = vunpack.c.h.b16 %v1815
        %v1863 = vunpack.c.l.b16 %v1816
        %v1864 = vunpack.c.h.b16 %v1816
        %v1865 = vunpack.c.l.b16 %v1817
        %v1866 = vunpack.c.h.b16 %v1817
        %v1867 = vunpack.c.l.b16 %v1818
        %v1868 = vunpack.c.h.b16 %v1818
        %v1869 = vunpack.c.l.b16 %v1819
        %v1870 = vunpack.c.h.b16 %v1819
        %v1871 = vunpack.c.l.b16 %v1820
        %v1872 = vunpack.c.h.b16 %v1820
        %v1873 = vunpack.c.l.b16 %v1821
        %v1874 = vunpack.c.h.b16 %v1821
        %v1875 = vunpack.c.l.b16 %v1822
        %v1876 = vunpack.c.h.b16 %v1822
        %v1877 = vpack.c.b16 %v1847, %v1845
        %v1878 = vpack.c.b16 %v1848, %v1846
        %v1879 = vpack.c.b16 %v1851, %v1849
        %v1880 = vpack.c.b16 %v1852, %v1850
        %v1881 = vpack.c.b16 %v1855, %v1853
        %v1882 = vpack.c.b16 %v1856, %v1854
        %v1883 = vpack.c.b16 %v1859, %v1857
        %v1884 = vpack.c.b16 %v1860, %v1858
        %v1885 = vpack.c.b16 %v1863, %v1861
        %v1886 = vpack.c.b16 %v1864, %v1862
        %v1887 = vpack.c.b16 %v1867, %v1865
        %v1888 = vpack.c.b16 %v1868, %v1866
        %v1889 = vpack.c.b16 %v1871, %v1869
        %v1890 = vpack.c.b16 %v1872, %v1870
        %v1891 = vpack.c.b16 %v1875, %v1873
        %v1892 = vpack.c.b16 %v1876, %v1874
        %1909 = vmatpush.bf16.msra.mxu0 %v1891
        %1910 = vmatpush.bf16.msra.mxu0 %v1889
        %1911 = vmatpush.bf16.msra.mxu0 %v1887
        %1912 = vmatpush.bf16.msra.mxu0 %v1885
        %1913 = vmatpush.bf16.msra.mxu0 %v1883
        %1914 = vmatpush.bf16.msra.mxu0 %v1881
        %1915 = vmatpush.bf16.msra.mxu0 %v1879
        %1916 = vmatpush.bf16.msra.mxu0 %v1877
        %1917 = vmatmul.bf16.gmra.mxu0 %v1806
        %v1918 = vpop.f32.mrf.mxu0
        %v1919 = vadd.f32 %v1825, %v1918
        %v1920 = vpop.f32.mrf.mxu0
        %v1921 = vadd.f32 %v1825, %v1920
        %1922 = vdwg.mxu0
        %1923 = vmatpush.bf16.msra.mxu0 %v1892
        %1924 = vmatpush.bf16.msra.mxu0 %v1890
        %1925 = vmatpush.bf16.msra.mxu0 %v1888
        %1926 = vmatpush.bf16.msra.mxu0 %v1886
        %1927 = vmatpush.bf16.msra.mxu0 %v1884
        %1928 = vmatpush.bf16.msra.mxu0 %v1882
        %1929 = vmatpush.bf16.msra.mxu0 %v1880
        %1930 = vmatpush.bf16.msra.mxu0 %v1878
        %1931 = vmatmul.bf16.gmra.mxu0 %v1806
        %v1932 = vpop.f32.mrf.mxu0
        %v1933 = vadd.f32 %v1826, %v1932
        %v1934 = vpop.f32.mrf.mxu0
        %v1935 = vadd.f32 %v1826, %v1934
        %1936 = vdwg.mxu0
        %v1937 = vmul.f32 %v1919, 0.5
        %v1938 = vmul.f32 %v1933, 0.5
        %v1939 = vmul.f32 %v1921, 0.5
        %v1940 = vmul.f32 %v1935, 0.5
        %v1941 = vmul.f32 %v1919, 0.044715
        %v1942 = vmul.f32 %v1933, 0.044715
        %v1943 = vmul.f32 %v1921, 0.044715
        %v1944 = vmul.f32 %v1935, 0.044715
        %v1945 = vmul.f32 %v1941, %v1919
        %v1946 = vmul.f32 %v1942, %v1933
        %v1947 = vmul.f32 %v1943, %v1921
        %v1948 = vmul.f32 %v1944, %v1935
        %v1949 = vmul.f32 %v1945, %v1919
        %v1950 = vmul.f32 %v1946, %v1933
        %v1951 = vmul.f32 %v1947, %v1921
        %v1952 = vmul.f32 %v1948, %v1935
        %v1953 = vadd.f32 %v1919, %v1949
        %v1954 = vadd.f32 %v1933, %v1950
        %v1955 = vadd.f32 %v1921, %v1951
        %v1956 = vadd.f32 %v1935, %v1952
        %v1957 = vmul.f32 %v1953, 0.7978846
        %v1958 = vmul.f32 %v1954, 0.7978846
        %v1959 = vmul.f32 %v1955, 0.7978846
        %v1960 = vmul.f32 %v1956, 0.7978846
        %v1961 = vtanh.pop %v1957
        %v1962 = vtanh.pop %v1958
        %v1963 = vtanh.pop %v1959
        %v1964 = vtanh.pop %v1960
        %v1965 = vadd.f32 %v1961, 1.0
        %v1966 = vadd.f32 %v1962, 1.0
        %v1967 = vadd.f32 %v1963, 1.0
        %v1968 = vadd.f32 %v1964, 1.0
        %v1969 = vmul.f32 %v1937, %v1965
        %v1970 = vmul.f32 %v1938, %v1966
        %v1971 = vmul.f32 %v1939, %v1967
        %v1972 = vmul.f32 %v1940, %v1968
        %v1973 = vpack.c.bf16 %v1971, %v1969
        %v1974 = vpack.c.bf16 %v1972, %v1970
        %v1975 = vld [vmem:[#allocation14] sm:$0xf]
        %v1976 = vld [vmem:[#allocation14 + $0x4] sm:$0xf]
        %v1977 = vld [vmem:[#allocation14 + $0x8] sm:$0xf]
        %v1978 = vld [vmem:[#allocation14 + $0xc] sm:$0xf]
        %v1979 = vld [vmem:[#allocation14 + $0x10] sm:$0xf]
        %v1980 = vld [vmem:[#allocation14 + $0x14] sm:$0xf]
        %v1981 = vld [vmem:[#allocation14 + $0x18] sm:$0xf]
        %v1982 = vld [vmem:[#allocation14 + $0x1c] sm:$0xf]
        %v1983 = vld [vmem:[#allocation14 + $0x20] sm:$0xf]
        %v1984 = vld [vmem:[#allocation14 + $0x24] sm:$0xf]
        %v1985 = vld [vmem:[#allocation14 + $0x28] sm:$0xf]
        %v1986 = vld [vmem:[#allocation14 + $0x2c] sm:$0xf]
        %v1987 = vld [vmem:[#allocation14 + $0x30] sm:$0xf]
        %v1988 = vld [vmem:[#allocation14 + $0x34] sm:$0xf]
        %v1989 = vld [vmem:[#allocation14 + $0x38] sm:$0xf]
        %v1990 = vld [vmem:[#allocation14 + $0x3c] sm:$0xf]
        %v1991 = vld [vmem:[#allocation14 + $0x40] sm:$0xf]
        %v1992 = vld [vmem:[#allocation14 + $0x44] sm:$0xf]
        %v1993 = vld [vmem:[#allocation14 + $0x48] sm:$0xf]
        %v1994 = vld [vmem:[#allocation14 + $0x4c] sm:$0xf]
        %v1995 = vld [vmem:[#allocation14 + $0x50] sm:$0xf]
        %v1996 = vld [vmem:[#allocation14 + $0x54] sm:$0xf]
        %v1997 = vld [vmem:[#allocation14 + $0x58] sm:$0xf]
        %v1998 = vld [vmem:[#allocation14 + $0x5c] sm:$0xf]
        %v1999 = vld [vmem:[#allocation14 + $0x60] sm:$0xf]
        %v2000 = vld [vmem:[#allocation14 + $0x64] sm:$0xf]
        %v2001 = vld [vmem:[#allocation14 + $0x68] sm:$0xf]
        %v2002 = vld [vmem:[#allocation14 + $0x6c] sm:$0xf]
        %v2003 = vld [vmem:[#allocation14 + $0x70] sm:$0xf]
        %v2004 = vld [vmem:[#allocation14 + $0x74] sm:$0xf]
        %v2005 = vld [vmem:[#allocation14 + $0x78] sm:$0xf]
        %v2006 = vld [vmem:[#allocation14 + $0x7c] sm:$0xf]
        %v2007 = vld [vmem:[%s15] sm:$0x1]
        %v2009 = vperm.slane %v2007, 0
        %v2043 = vunpack.c.l.b16 %v1975
        %v2044 = vunpack.c.l.b16 %v1976
        %v2045 = vunpack.c.l.b16 %v1977
        %v2046 = vunpack.c.l.b16 %v1978
        %v2047 = vunpack.c.l.b16 %v1979
        %v2048 = vunpack.c.l.b16 %v1980
        %v2049 = vunpack.c.l.b16 %v1981
        %v2050 = vunpack.c.l.b16 %v1982
        %v2051 = vunpack.c.l.b16 %v1983
        %v2052 = vunpack.c.l.b16 %v1984
        %v2053 = vunpack.c.l.b16 %v1985
        %v2054 = vunpack.c.l.b16 %v1986
        %v2055 = vunpack.c.l.b16 %v1987
        %v2056 = vunpack.c.l.b16 %v1988
        %v2057 = vunpack.c.l.b16 %v1989
        %v2058 = vunpack.c.l.b16 %v1990
        %v2059 = vunpack.c.l.b16 %v1991
        %v2060 = vunpack.c.l.b16 %v1992
        %v2061 = vunpack.c.l.b16 %v1993
        %v2062 = vunpack.c.l.b16 %v1994
        %v2063 = vunpack.c.l.b16 %v1995
        %v2064 = vunpack.c.l.b16 %v1996
        %v2065 = vunpack.c.l.b16 %v1997
        %v2066 = vunpack.c.l.b16 %v1998
        %v2067 = vunpack.c.l.b16 %v1999
        %v2068 = vunpack.c.l.b16 %v2000
        %v2069 = vunpack.c.l.b16 %v2001
        %v2070 = vunpack.c.l.b16 %v2002
        %v2071 = vunpack.c.l.b16 %v2003
        %v2072 = vunpack.c.l.b16 %v2004
        %v2073 = vunpack.c.l.b16 %v2005
        %v2074 = vunpack.c.l.b16 %v2006
        %v2075 = vpack.c.b16 %v2044, %v2043
        %v2076 = vpack.c.b16 %v2046, %v2045
        %v2077 = vpack.c.b16 %v2048, %v2047
        %v2078 = vpack.c.b16 %v2050, %v2049
        %v2079 = vpack.c.b16 %v2052, %v2051
        %v2080 = vpack.c.b16 %v2054, %v2053
        %v2081 = vpack.c.b16 %v2056, %v2055
        %v2082 = vpack.c.b16 %v2058, %v2057
        %v2083 = vpack.c.b16 %v2060, %v2059
        %v2084 = vpack.c.b16 %v2062, %v2061
        %v2085 = vpack.c.b16 %v2064, %v2063
        %v2086 = vpack.c.b16 %v2066, %v2065
        %v2087 = vpack.c.b16 %v2068, %v2067
        %v2088 = vpack.c.b16 %v2070, %v2069
        %v2089 = vpack.c.b16 %v2072, %v2071
        %v2090 = vpack.c.b16 %v2074, %v2073
        %2107 = vmatpush.bf16.msra.mxu0 %v2082
        %2108 = vmatpush.bf16.msra.mxu0 %v2081
        %2109 = vmatpush.bf16.msra.mxu0 %v2080
        %2110 = vmatpush.bf16.msra.mxu0 %v2079
        %2111 = vmatpush.bf16.msra.mxu0 %v2078
        %2112 = vmatpush.bf16.msra.mxu0 %v2077
        %2113 = vmatpush.bf16.msra.mxu0 %v2076
        %2114 = vmatpush.bf16.msra.mxu0 %v2075
        %2115 = vmatmul.bf16.gmra.mxu0 %v1973
        %v2116 = vpop.f32.mrf.mxu0
        %v2117 = vadd.f32 %v2009, %v2116
        %v2118 = vpop.f32.mrf.mxu0
        %v2119 = vadd.f32 %v2009, %v2118
        %2120 = vdwg.mxu0
        %2121 = vmatpush.bf16.msra.mxu0 %v2090
        %2122 = vmatpush.bf16.msra.mxu0 %v2089
        %2123 = vmatpush.bf16.msra.mxu0 %v2088
        %2124 = vmatpush.bf16.msra.mxu0 %v2087
        %2125 = vmatpush.bf16.msra.mxu0 %v2086
        %2126 = vmatpush.bf16.msra.mxu0 %v2085
        %2127 = vmatpush.bf16.msra.mxu0 %v2084
        %2128 = vmatpush.bf16.msra.mxu0 %v2083
        %2129 = vmatmul.bf16.gmra.mxu0 %v1974
        %v2130 = vpop.f32.mrf.mxu0
        %v2131 = vadd.f32 %v2117, %v2130
        %v2132 = vpop.f32.mrf.mxu0
        %v2133 = vadd.f32 %v2119, %v2132
        %2134 = vdwg.mxu0
        %v2135 = vadd.f32 %v2131, %v1804
        %v2136 = vadd.f32 %v2133, %v1805
        %v2137 = vld [vmem:[%s16] sm:$0x1]
        %v2138 = vld [vmem:[%s17] sm:$0x1]
        %2139 = vadd.xlane.f32.xlu0 %v2135
        %v2140 = vpop.xlane.xlu0 %2139
        %2141 = vadd.xlane.f32.xlu0 %v2136
        %v2142 = vpop.xlane.xlu0 %2141
        %v2143 = vmul.f32 %v2140, %v1759
        %v2144 = vmul.f32 %v2142, %v1759
        %v2145 = vsub.f32 %v2135, %v2143
        %v2146 = vsub.f32 %v2136, %v2144
        %v2147 = vmul.f32 %v2145, %v2145
        %v2148 = vmul.f32 %v2146, %v2146
        %2149 = vadd.xlane.f32.xlu0 %v2147
        %v2150 = vpop.xlane.xlu0 %2149
        %2151 = vadd.xlane.f32.xlu0 %v2148
        %v2152 = vpop.xlane.xlu0 %2151
        %v2153 = vmul.f32 %v2150, %v1759
        %v2154 = vmul.f32 %v2152, %v1759
        %v2155 = vadd.f32 %v2153, 1e-12
        %v2156 = vadd.f32 %v2154, 1e-12
        %v2157 = vrsqrt.pop %v2155
        %v2158 = vmul.f32 %v2157, %v2155
        %v2159 = vmul.f32 %v2158, %v2157
        %v2160 = vmul.f32 0.5, %v2159
        %v2161 = vsub.f32 1.5, %v2160
        %v2162 = vmul.f32 %v2157, %v2161
        %vm2163 = vweird.f32 %v2155
        %vm2164 = vweird.f32 %v2157
        %vm2165 = vmor %vm2163, %vm2164
        %v2166 = vsel %vm2165, %v2157, %v2162
        %v2167 = vrsqrt.pop %v2156
        %v2168 = vmul.f32 %v2167, %v2156
        %v2169 = vmul.f32 %v2168, %v2167
        %v2170 = vmul.f32 0.5, %v2169
        %v2171 = vsub.f32 1.5, %v2170
        %v2172 = vmul.f32 %v2167, %v2171
        %vm2173 = vweird.f32 %v2156
        %vm2174 = vweird.f32 %v2167
        %vm2175 = vmor %vm2173, %vm2174
        %v2176 = vsel %vm2175, %v2167, %v2172
        %v2177 = vmul.f32 %v2145, %v2166
        %v2178 = vmul.f32 %v2146, %v2176
        %v2180 = vperm.slane %v2137, 0
        %v2182 = vmul.f32 %v2180, %v2177
        %v2183 = vmul.f32 %v2180, %v2178
        %v2185 = vperm.slane %v2138, 0
        %v2187 = vadd.f32 %v2182, %v2185
        %v2188 = vadd.f32 %v2183, %v2185
        %2189 = vst [vmem:[%s729] sm:$0xff] %v2187
        %2190 = vst [vmem:[%s729 + $0x8] sm:$0xff] %v2188
        %s2191 = sand.u32 %s437, 1
        %s2192 = scalar_lea.sflag [#allocation4], %s2191
        %s2193 = sand.u32 %s437, 1
        %s2194 = smul.addr %s2193, 16
        %s2195 = scalar_lea.vmem [#allocation16], %s2194
        // Predicated region
        $region125: #{tpu_custom_call.1} parent=91 // pred_check
          %p2196 = pneg %p447
        $region126: #{tpu_custom_call.1} parent=91 // pred_check_branch
          %2198 = sbr.rel (%p2196) target = $region128
        $region127: #{tpu_custom_call.1} parent=91 // pred_region
          %2200 = vsyncadd %s2192, 0
          %s2201 = smul.addr %s41, 2
          %s2202 = smul.addr %s2201, 8
          %s2203 = scalar_lea.hbm %s18, %s2202
          %s2204 = sshll.u32 %s2195, 4
          %s2205 = int_to_ptr.vmem [resolvable:$true] %s2204
          %s2206 = sshll.u32 %s2203, 4
          %s2207 = int_to_ptr.hbm [resolvable:$true] %s2206
          %2212 = dma.vmem_to_hbm [thread:$0]  %s2205, 256, %s2207, %s2192, 128, 128, 8
        $region128: #{tpu_custom_call.1} parent=91 // pred_fallthru
          _
      $region92: #{tpu_custom_call.1} parent=5 // pred_fallthru
        _
      %p2213 = scmp.le.s32.totalorder 2, %s36
      // Predicated region
      $region129: #{tpu_custom_call.1} parent=5 // pred_check
        %p2214 = pneg %p2213
      $region130: #{tpu_custom_call.1} parent=5 // pred_check_branch
        %2216 = sbr.rel (%p2214) target = $region132
      $region131: #{tpu_custom_call.1} parent=5 // pred_region
        %s2217 = ssub.s32 %s36, 2
        // Predicated region
        $region133: #{tpu_custom_call.1} parent=131 // pred_check
          %p2218 = pneg %p453
        $region134: #{tpu_custom_call.1} parent=131 // pred_check_branch
          %2220 = sbr.rel (%p2218) target = $region136
        $region135: #{tpu_custom_call.1} parent=131 // pred_region
          %s2221 = sand.u32 %s438, 1
          %s2222 = scalar_lea.sflag [#allocation4], %s2221
          %s2223 = sand.u32 %s438, 1
          %s2224 = smul.addr %s2223, 16
          %s2225 = scalar_lea.vmem [#allocation16], %s2224
          %2227 = dma.done %s2222, 256
        $region136: #{tpu_custom_call.1} parent=131 // pred_fallthru
          _
      $region132: #{tpu_custom_call.1} parent=5 // pred_fallthru
        _
    $region6: #{tpu_custom_call.1} parent=1 // loop_footer
      %s40 = sadd.s32 1, %s36
    $region7: #{tpu_custom_call.1} parent=1 // loop_footer_branch
      %35 = sbr.rel target = $region3
    $region8: #{tpu_custom_call.1} parent=1 // loop_exit
      _
    %2228 = vsyncpa [#allocation3], 1
    %s2229 = scalar_lea.sflag [#allocation3], 1
    %2230 = vsyncpa %s2229, 1
    %2231 = vsyncpa [#allocation6], 1
    %s2232 = scalar_lea.sflag [#allocation6], 1
    %2233 = vsyncpa %s2232, 1
    %2234 = vsyncpa [#allocation9], 1
    %2235 = vsyncpa [#allocation12], 1
    %2236 = vsyncpa [#allocation15], 1
    %2237 = vsyncpa [#allocation4], 1
    %s2238 = scalar_lea.sflag [#allocation4], 1
    %2239 = vsyncpa %s2238, 1

// kernel: tpu_custom_call.1
$region0: #{tpu_custom_call.1}
  #allocation0 [shape = 'u32[]', space=smem, size = 0x4, offset = 0x4, fixed_abs, tag = 'smem constant byte address 0x4 - core index']
  #allocation1 [shape = 'u32[72,128]{1,0:T(1,128)}', space=vmem, size = 0x9000, scoped, tag = 'internal scratch']
  %s0 = inlined_call_operand.hbm [shape: f32[2,16,128], index: 0, kind: input, shape index: {}]
  %s1 = inlined_call_operand.hbm [shape: f32[2,1,1,16], index: 1, kind: input, shape index: {}]
  %s2 = inlined_call_operand.hbm [shape: bf16[128,128], index: 2, kind: input, shape index: {}]
  %s3 = inlined_call_operand.vmem [shape: f32[1,128], index: 3, kind: input, shape index: {}]
  %s4 = inlined_call_operand.hbm [shape: bf16[128,128], index: 4, kind: input, shape index: {}]
  %s5 = inlined_call_operand.vmem [shape: f32[1,128], index: 5, kind: input, shape index: {}]
  %s6 = inlined_call_operand.hbm [shape: bf16[128,128], index: 6, kind: input, shape index: {}]
  %s7 = inlined_call_operand.vmem [shape: f32[1,128], index: 7, kind: input, shape index: {}]
  %s8 = inlined_call_operand.hbm [shape: bf16[128,128], index: 8, kind: input, shape index: {}]
  %s9 = inlined_call_operand.vmem [shape: f32[1,128], index: 9, kind: input, shape index: {}]
  %s10 = inlined_call_operand.vmem [shape: f32[1,128], index: 10, kind: input, shape index: {}]
  %s11 = inlined_call_operand.vmem [shape: f32[1,128], index: 11, kind: input, shape index: {}]
  %s12 = inlined_call_operand.hbm [shape: bf16[128,256], index: 12, kind: input, shape index: {}]
  %s13 = inlined_call_operand.vmem [shape: f32[1,256], index: 13, kind: input, shape index: {}]
  %s14 = inlined_call_operand.hbm [shape: bf16[256,128], index: 14, kind: input, shape index: {}]
  %s15 = inlined_call_operand.vmem [shape: f32[1,128], index: 15, kind: input, shape index: {}]
  %s16 = inlined_call_operand.vmem [shape: f32[1,128], index: 16, kind: input, shape index: {}]
  %s17 = inlined_call_operand.vmem [shape: f32[1,128], index: 17, kind: input, shape index: {}]
  %s18 = inlined_call_operand.hbm [shape: f32[2,16,128], index: 18, kind: output, shape index: {}]
  %s19 = sld [smem:[#allocation0]]
  $region137: #{tpu_custom_call.1} parent=0
    _
  %s21 = ssub.s32 1, %s19
  %s22 = scalar_select 0, %s21, %s19
  $region1: #{tpu_custom_call.1} parent=0
    #allocation2 [shape = 'u8[16384]{0}', space=vmem, size = 0x4000, scoped, tag = 'input window, operand 0']
    #allocation3 [shape = 's32[2]{0}', space=sflag, size = 0x8, scoped, tag = 'scoped memory for tpu_custom_call.1']
    #allocation4 [shape = 's32[2]{0}', space=sflag, size = 0x8, scoped, tag = 'scoped memory for tpu_custom_call.1']
    #allocation5 [shape = 'u8[1024]{0}', space=vmem, size = 0x400, scoped, tag = 'input window, operand 1']
    #allocation6 [shape = 's32[2]{0}', space=sflag, size = 0x8, scoped, tag = 'scoped memory for tpu_custom_call.1']
    #allocation7 [shape = 'u8[32768]{0}', space=vmem, size = 0x8000, scoped, tag = 'input window, operand 2, single buffered']
    #allocation8 [shape = 'u8[32768]{0}', space=vmem, size = 0x8000, scoped, tag = 'input window, operand 4, single buffered']
    #allocation9 [shape = 's32[1]{0}', space=sflag, size = 0x4, scoped, tag = 'scoped memory for tpu_custom_call.1']
    #allocation10 [shape = 'u8[32768]{0}', space=vmem, size = 0x8000, scoped, tag = 'input window, operand 6, single buffered']
    #allocation11 [shape = 'u8[32768]{0}', space=vmem, size = 0x8000, scoped, tag = 'input window, operand 8, single buffered']
    #allocation12 [shape = 's32[1]{0}', space=sflag, size = 0x4, scoped, tag = 'scoped memory for tpu_custom_call.1']
    #allocation13 [shape = 'u8[65536]{0}', space=vmem, size = 0x10000, scoped, tag = 'input window, operand 12, single buffered']
    #allocation14 [shape = 'u8[65536]{0}', space=vmem, size = 0x10000, scoped, tag = 'input window, operand 14, single buffered']
    #allocation15 [shape = 's32[1]{0}', space=sflag, size = 0x4, scoped, tag = 'scoped memory for tpu_custom_call.1']
    #allocation16 [shape = 'u8[16384]{0}', space=vmem, size = 0x4000, scoped, tag = 'output window, operand 0']
    %23 = vsyncpa [#allocation3], 0
    %s24 = scalar_lea.sflag [#allocation3], 1
    %25 = vsyncpa %s24, 0
    %26 = vsyncpa [#allocation6], 0
    %s27 = scalar_lea.sflag [#allocation6], 1
    %28 = vsyncpa %s27, 0
    %29 = vsyncpa [#allocation9], 0
    %30 = vsyncpa [#allocation12], 0
    %31 = vsyncpa [#allocation15], 0
    %32 = vsyncpa [#allocation4], 0
    %s33 = scalar_lea.sflag [#allocation4], 1
    %34 = vsyncpa %s33, 0
    loop: start=0, step=1, limit=4
    $region2: #{tpu_custom_call.1} parent=1 // loop_pre_header
      _
    $region3: #{tpu_custom_call.1} parent=1 // loop_header
      %s36 = sphi 0, %s40
      %p37 = scmp.ge.s32.totalorder %s36, 4
      %s46 = sphi 0, %s48
      %s49 = sphi 0, %s46
      %s50 = sphi 0, %s49
      %s66 = sphi 0, %s50
      %s72 = sphi 0, %s74
      %s75 = sphi 0, %s72
      %s76 = sphi 0, %s75
      %s92 = sphi 0, %s76
      %s96 = sphi 0, %s96
      %s98 = sphi 0, %s96
      %s99 = sphi 0, %s98
      %s113 = sphi 0, %s99
      %s117 = sphi 0, %s117
      %s119 = sphi 0, %s117
      %s120 = sphi 0, %s119
      %s134 = sphi 0, %s120
      %s138 = sphi 0, %s138
      %s140 = sphi 0, %s138
      %s141 = sphi 0, %s140
      %s155 = sphi 0, %s141
      %s159 = sphi 0, %s159
      %s161 = sphi 0, %s159
      %s162 = sphi 0, %s161
      %s176 = sphi 0, %s162
      %s180 = sphi 0, %s180
      %s182 = sphi 0, %s180
      %s183 = sphi 0, %s182
      %s197 = sphi 0, %s183
      %s201 = sphi 0, %s201
      %s203 = sphi 0, %s201
      %s204 = sphi 0, %s203
      %s218 = sphi 0, %s204
      %s222 = sphi 0, %s222
      %s224 = sphi 0, %s222
      %s225 = sphi 0, %s224
      %s239 = sphi 0, %s225
      %s243 = sphi 0, %s243
      %s245 = sphi 0, %s243
      %s246 = sphi 0, %s245
      %s260 = sphi 0, %s246
      %s264 = sphi 0, %s264
      %s266 = sphi 0, %s264
      %s267 = sphi 0, %s266
      %s281 = sphi 0, %s267
      %s285 = sphi 0, %s285
      %s287 = sphi 0, %s285
      %s288 = sphi 0, %s287
      %s302 = sphi 0, %s288
      %s306 = sphi 0, %s306
      %s308 = sphi 0, %s306
      %s309 = sphi 0, %s308
      %s323 = sphi 0, %s309
      %s327 = sphi 0, %s327
      %s329 = sphi 0, %s327
      %s330 = sphi 0, %s329
      %s344 = sphi 0, %s330
      %s348 = sphi 0, %s348
      %s350 = sphi 0, %s348
      %s351 = sphi 0, %s350
      %s365 = sphi 0, %s351
      %s369 = sphi 0, %s369
      %s371 = sphi 0, %s369
      %s372 = sphi 0, %s371
      %s386 = sphi 0, %s372
      %s390 = sphi 0, %s390
      %s392 = sphi 0, %s390
      %s393 = sphi 0, %s392
      %s407 = sphi 0, %s393
      %s411 = sphi 0, %s411
      %s413 = sphi 0, %s411
      %s414 = sphi 0, %s413
      %s428 = sphi 0, %s414
      %s434 = sphi 0, %s436
      %s437 = sphi 0, %s434
      %s438 = sphi 0, %s437
      %s454 = sphi 0, %s438
    $region4: #{tpu_custom_call.1} parent=1 // loop_header_branch
      %39 = sbr.rel (%p37) target = $region8
    $region5: #{tpu_custom_call.1} parent=1 // loop_body
      %s41 = ssub.s32 %s36, 1
      %s42 = ssub.s32 %s36, 2
      %s43 = sadd.s32 %s36, 1
      %s44 = ssub.s32 %s36, %s43
      %p45 = scmp.eq.s32.totalorder %s44, 0
      %s47 = sadd.s32 %s46, 1
      %s48 = scalar_select %p45, %s46, %s47
      %p51 = pneg %p45
      %p52 = scmp.eq.s32.totalorder %s36, 1
      %p53 = por %p51, %p52
      %p54 = scmp.ne.s32.totalorder %s46, %s49
      %p55 = scmp.eq.s32.totalorder %s36, 0
      %p56 = por %p54, %p55
      %p57 = scmp.ne.s32.totalorder %s46, %s49
      %p58 = scmp.eq.s32.totalorder %s41, 1
      %p59 = por %p57, %p58
      %p60 = scmp.ne.s32.totalorder %s49, %s50
      %p61 = scmp.eq.s32.totalorder %s41, 0
      %p62 = por %p60, %p61
      %p63 = scmp.ne.s32.totalorder %s49, %s50
      %p64 = scmp.eq.s32.totalorder %s42, 1
      %p65 = por %p63, %p64
      %p67 = scmp.ne.s32.totalorder %s50, %s66
      %p68 = scmp.eq.s32.totalorder %s42, 0
      %p69 = por %p67, %p68
      %s70 = ssub.s32 %s36, %s43
      %p71 = scmp.eq.s32.totalorder %s70, 0
      %s73 = sadd.s32 %s72, 1
      %s74 = scalar_select %p71, %s72, %s73
      %p77 = pneg %p71
      %p78 = scmp.eq.s32.totalorder %s36, 1
      %p79 = por %p77, %p78
      %p80 = scmp.ne.s32.totalorder %s72, %s75
      %p81 = scmp.eq.s32.totalorder %s36, 0
      %p82 = por %p80, %p81
      %p83 = scmp.ne.s32.totalorder %s72, %s75
      %p84 = scmp.eq.s32.totalorder %s41, 1
      %p85 = por %p83, %p84
      %p86 = scmp.ne.s32.totalorder %s75, %s76
      %p87 = scmp.eq.s32.totalorder %s41, 0
      %p88 = por %p86, %p87
      %p89 = scmp.ne.s32.totalorder %s75, %s76
      %p90 = scmp.eq.s32.totalorder %s42, 1
      %p91 = por %p89, %p90
      %p93 = scmp.ne.s32.totalorder %s76, %s92
      %p94 = scmp.eq.s32.totalorder %s42, 0
      %p95 = por %p93, %p94
      %s97 = sadd.s32 %s96, 1
      %p100 = scmp.eq.s32.totalorder %s36, 1
      %p101 = scmp.ne.s32.totalorder %s96, %s98
      %p102 = scmp.eq.s32.totalorder %s36, 0
      %p103 = por %p101, %p102
      %p104 = scmp.ne.s32.totalorder %s96, %s98
      %p105 = scmp.eq.s32.totalorder %s41, 1
      %p106 = por %p104, %p105
      %p107 = scmp.ne.s32.totalorder %s98, %s99
      %p108 = scmp.eq.s32.totalorder %s41, 0
      %p109 = por %p107, %p108
      %p110 = scmp.ne.s32.totalorder %s98, %s99
      %p111 = scmp.eq.s32.totalorder %s42, 1
      %p112 = por %p110, %p111
      %p114 = scmp.ne.s32.totalorder %s99, %s113
      %p115 = scmp.eq.s32.totalorder %s42, 0
      %p116 = por %p114, %p115
      %s118 = sadd.s32 %s117, 1
      %p121 = scmp.eq.s32.totalorder %s36, 1
      %p122 = scmp.ne.s32.totalorder %s117, %s119
      %p123 = scmp.eq.s32.totalorder %s36, 0
      %p124 = por %p122, %p123
      %p125 = scmp.ne.s32.totalorder %s117, %s119
      %p126 = scmp.eq.s32.totalorder %s41, 1
      %p127 = por %p125, %p126
      %p128 = scmp.ne.s32.totalorder %s119, %s120
      %p129 = scmp.eq.s32.totalorder %s41, 0
      %p130 = por %p128, %p129
      %p131 = scmp.ne.s32.totalorder %s119, %s120
      %p132 = scmp.eq.s32.totalorder %s42, 1
      %p133 = por %p131, %p132
      %p135 = scmp.ne.s32.totalorder %s120, %s134
      %p136 = scmp.eq.s32.totalorder %s42, 0
      %p137 = por %p135, %p136
      %s139 = sadd.s32 %s138, 1
      %p142 = scmp.eq.s32.totalorder %s36, 1
      %p143 = scmp.ne.s32.totalorder %s138, %s140
      %p144 = scmp.eq.s32.totalorder %s36, 0
      %p145 = por %p143, %p144
      %p146 = scmp.ne.s32.totalorder %s138, %s140
      %p147 = scmp.eq.s32.totalorder %s41, 1
      %p148 = por %p146, %p147
      %p149 = scmp.ne.s32.totalorder %s140, %s141
      %p150 = scmp.eq.s32.totalorder %s41, 0
      %p151 = por %p149, %p150
      %p152 = scmp.ne.s32.totalorder %s140, %s141
      %p153 = scmp.eq.s32.totalorder %s42, 1
      %p154 = por %p152, %p153
      %p156 = scmp.ne.s32.totalorder %s141, %s155
      %p157 = scmp.eq.s32.totalorder %s42, 0
      %p158 = por %p156, %p157
      %s160 = sadd.s32 %s159, 1
      %p163 = scmp.eq.s32.totalorder %s36, 1
      %p164 = scmp.ne.s32.totalorder %s159, %s161
      %p165 = scmp.eq.s32.totalorder %s36, 0
      %p166 = por %p164, %p165
      %p167 = scmp.ne.s32.totalorder %s159, %s161
      %p168 = scmp.eq.s32.totalorder %s41, 1
      %p169 = por %p167, %p168
      %p170 = scmp.ne.s32.totalorder %s161, %s162
      %p171 = scmp.eq.s32.totalorder %s41, 0
      %p172 = por %p170, %p171
      %p173 = scmp.ne.s32.totalorder %s161, %s162
      %p174 = scmp.eq.s32.totalorder %s42, 1
      %p175 = por %p173, %p174
      %p177 = scmp.ne.s32.totalorder %s162, %s176
      %p178 = scmp.eq.s32.totalorder %s42, 0
      %p179 = por %p177, %p178
      %s181 = sadd.s32 %s180, 1
      %p184 = scmp.eq.s32.totalorder %s36, 1
      %p185 = scmp.ne.s32.totalorder %s180, %s182
      %p186 = scmp.eq.s32.totalorder %s36, 0
      %p187 = por %p185, %p186
      %p188 = scmp.ne.s32.totalorder %s180, %s182
      %p189 = scmp.eq.s32.totalorder %s41, 1
      %p190 = por %p188, %p189
      %p191 = scmp.ne.s32.totalorder %s182, %s183
      %p192 = scmp.eq.s32.totalorder %s41, 0
      %p193 = por %p191, %p192
      %p194 = scmp.ne.s32.totalorder %s182, %s183
      %p195 = scmp.eq.s32.totalorder %s42, 1
      %p196 = por %p194, %p195
      %p198 = scmp.ne.s32.totalorder %s183, %s197
      %p199 = scmp.eq.s32.totalorder %s42, 0
      %p200 = por %p198, %p199
      %s202 = sadd.s32 %s201, 1
      %p205 = scmp.eq.s32.totalorder %s36, 1
      %p206 = scmp.ne.s32.totalorder %s201, %s203
      %p207 = scmp.eq.s32.totalorder %s36, 0
      %p208 = por %p206, %p207
      %p209 = scmp.ne.s32.totalorder %s201, %s203
      %p210 = scmp.eq.s32.totalorder %s41, 1
      %p211 = por %p209, %p210
      %p212 = scmp.ne.s32.totalorder %s203, %s204
      %p213 = scmp.eq.s32.totalorder %s41, 0
      %p214 = por %p212, %p213
      %p215 = scmp.ne.s32.totalorder %s203, %s204
      %p216 = scmp.eq.s32.totalorder %s42, 1
      %p217 = por %p215, %p216
      %p219 = scmp.ne.s32.totalorder %s204, %s218
      %p220 = scmp.eq.s32.totalorder %s42, 0
      %p221 = por %p219, %p220
      %s223 = sadd.s32 %s222, 1
      %p226 = scmp.eq.s32.totalorder %s36, 1
      %p227 = scmp.ne.s32.totalorder %s222, %s224
      %p228 = scmp.eq.s32.totalorder %s36, 0
      %p229 = por %p227, %p228
      %p230 = scmp.ne.s32.totalorder %s222, %s224
      %p231 = scmp.eq.s32.totalorder %s41, 1
      %p232 = por %p230, %p231
      %p233 = scmp.ne.s32.totalorder %s224, %s225
      %p234 = scmp.eq.s32.totalorder %s41, 0
      %p235 = por %p233, %p234
      %p236 = scmp.ne.s32.totalorder %s224, %s225
      %p237 = scmp.eq.s32.totalorder %s42, 1
      %p238 = por %p236, %p237
      %p240 = scmp.ne.s32.totalorder %s225, %s239
      %p241 = scmp.eq.s32.totalorder %s42, 0
      %p242 = por %p240, %p241
      %s244 = sadd.s32 %s243, 1
      %p247 = scmp.eq.s32.totalorder %s36, 1
      %p248 = scmp.ne.s32.totalorder %s243, %s245
      %p249 = scmp.eq.s32.totalorder %s36, 0
      %p250 = por %p248, %p249
      %p251 = scmp.ne.s32.totalorder %s243, %s245
      %p252 = scmp.eq.s32.totalorder %s41, 1
      %p253 = por %p251, %p252
      %p254 = scmp.ne.s32.totalorder %s245, %s246
      %p255 = scmp.eq.s32.totalorder %s41, 0
      %p256 = por %p254, %p255
      %p257 = scmp.ne.s32.totalorder %s245, %s246
      %p258 = scmp.eq.s32.totalorder %s42, 1
      %p259 = por %p257, %p258
      %p261 = scmp.ne.s32.totalorder %s246, %s260
      %p262 = scmp.eq.s32.totalorder %s42, 0
      %p263 = por %p261, %p262
      %s265 = sadd.s32 %s264, 1
      %p268 = scmp.eq.s32.totalorder %s36, 1
      %p269 = scmp.ne.s32.totalorder %s264, %s266
      %p270 = scmp.eq.s32.totalorder %s36, 0
      %p271 = por %p269, %p270
      %p272 = scmp.ne.s32.totalorder %s264, %s266
      %p273 = scmp.eq.s32.totalorder %s41, 1
      %p274 = por %p272, %p273
      %p275 = scmp.ne.s32.totalorder %s266, %s267
      %p276 = scmp.eq.s32.totalorder %s41, 0
      %p277 = por %p275, %p276
      %p278 = scmp.ne.s32.totalorder %s266, %s267
      %p279 = scmp.eq.s32.totalorder %s42, 1
      %p280 = por %p278, %p279
      %p282 = scmp.ne.s32.totalorder %s267, %s281
      %p283 = scmp.eq.s32.totalorder %s42, 0
      %p284 = por %p282, %p283
      %s286 = sadd.s32 %s285, 1
      %p289 = scmp.eq.s32.totalorder %s36, 1
      %p290 = scmp.ne.s32.totalorder %s285, %s287
      %p291 = scmp.eq.s32.totalorder %s36, 0
      %p292 = por %p290, %p291
      %p293 = scmp.ne.s32.totalorder %s285, %s287
      %p294 = scmp.eq.s32.totalorder %s41, 1
      %p295 = por %p293, %p294
      %p296 = scmp.ne.s32.totalorder %s287, %s288
      %p297 = scmp.eq.s32.totalorder %s41, 0
      %p298 = por %p296, %p297
      %p299 = scmp.ne.s32.totalorder %s287, %s288
      %p300 = scmp.eq.s32.totalorder %s42, 1
      %p301 = por %p299, %p300
      %p303 = scmp.ne.s32.totalorder %s288, %s302
      %p304 = scmp.eq.s32.totalorder %s42, 0
      %p305 = por %p303, %p304
      %s307 = sadd.s32 %s306, 1
      %p310 = scmp.eq.s32.totalorder %s36, 1
      %p311 = scmp.ne.s32.totalorder %s306, %s308
      %p312 = scmp.eq.s32.totalorder %s36, 0
      %p313 = por %p311, %p312
      %p314 = scmp.ne.s32.totalorder %s306, %s308
      %p315 = scmp.eq.s32.totalorder %s41, 1
      %p316 = por %p314, %p315
      %p317 = scmp.ne.s32.totalorder %s308, %s309
      %p318 = scmp.eq.s32.totalorder %s41, 0
      %p319 = por %p317, %p318
      %p320 = scmp.ne.s32.totalorder %s308, %s309
      %p321 = scmp.eq.s32.totalorder %s42, 1
      %p322 = por %p320, %p321
      %p324 = scmp.ne.s32.totalorder %s309, %s323
      %p325 = scmp.eq.s32.totalorder %s42, 0
      %p326 = por %p324, %p325
      %s328 = sadd.s32 %s327, 1
      %p331 = scmp.eq.s32.totalorder %s36, 1
      %p332 = scmp.ne.s32.totalorder %s327, %s329
      %p333 = scmp.eq.s32.totalorder %s36, 0
      %p334 = por %p332, %p333
      %p335 = scmp.ne.s32.totalorder %s327, %s329
      %p336 = scmp.eq.s32.totalorder %s41, 1
      %p337 = por %p335, %p336
      %p338 = scmp.ne.s32.totalorder %s329, %s330
      %p339 = scmp.eq.s32.totalorder %s41, 0
      %p340 = por %p338, %p339
      %p341 = scmp.ne.s32.totalorder %s329, %s330
      %p342 = scmp.eq.s32.totalorder %s42, 1
      %p343 = por %p341, %p342
      %p345 = scmp.ne.s32.totalorder %s330, %s344
      %p346 = scmp.eq.s32.totalorder %s42, 0
      %p347 = por %p345, %p346
      %s349 = sadd.s32 %s348, 1
      %p352 = scmp.eq.s32.totalorder %s36, 1
      %p353 = scmp.ne.s32.totalorder %s348, %s350
      %p354 = scmp.eq.s32.totalorder %s36, 0
      %p355 = por %p353, %p354
      %p356 = scmp.ne.s32.totalorder %s348, %s350
      %p357 = scmp.eq.s32.totalorder %s41, 1
      %p358 = por %p356, %p357
      %p359 = scmp.ne.s32.totalorder %s350, %s351
      %p360 = scmp.eq.s32.totalorder %s41, 0
      %p361 = por %p359, %p360
      %p362 = scmp.ne.s32.totalorder %s350, %s351
      %p363 = scmp.eq.s32.totalorder %s42, 1
      %p364 = por %p362, %p363
      %p366 = scmp.ne.s32.totalorder %s351, %s365
      %p367 = scmp.eq.s32.totalorder %s42, 0
      %p368 = por %p366, %p367
      %s370 = sadd.s32 %s369, 1
      %p373 = scmp.eq.s32.totalorder %s36, 1
      %p374 = scmp.ne.s32.totalorder %s369, %s371
      %p375 = scmp.eq.s32.totalorder %s36, 0
      %p376 = por %p374, %p375
      %p377 = scmp.ne.s32.totalorder %s369, %s371
      %p378 = scmp.eq.s32.totalorder %s41, 1
      %p379 = por %p377, %p378
      %p380 = scmp.ne.s32.totalorder %s371, %s372
      %p381 = scmp.eq.s32.totalorder %s41, 0
      %p382 = por %p380, %p381
      %p383 = scmp.ne.s32.totalorder %s371, %s372
      %p384 = scmp.eq.s32.totalorder %s42, 1
      %p385 = por %p383, %p384
      %p387 = scmp.ne.s32.totalorder %s372, %s386
      %p388 = scmp.eq.s32.totalorder %s42, 0
      %p389 = por %p387, %p388
      %s391 = sadd.s32 %s390, 1
      %p394 = scmp.eq.s32.totalorder %s36, 1
      %p395 = scmp.ne.s32.totalorder %s390, %s392
      %p396 = scmp.eq.s32.totalorder %s36, 0
      %p397 = por %p395, %p396
      %p398 = scmp.ne.s32.totalorder %s390, %s392
      %p399 = scmp.eq.s32.totalorder %s41, 1
      %p400 = por %p398, %p399
      %p401 = scmp.ne.s32.totalorder %s392, %s393
      %p402 = scmp.eq.s32.totalorder %s41, 0
      %p403 = por %p401, %p402
      %p404 = scmp.ne.s32.totalorder %s392, %s393
      %p405 = scmp.eq.s32.totalorder %s42, 1
      %p406 = por %p404, %p405
      %p408 = scmp.ne.s32.totalorder %s393, %s407
      %p409 = scmp.eq.s32.totalorder %s42, 0
      %p410 = por %p408, %p409
      %s412 = sadd.s32 %s411, 1
      %p415 = scmp.eq.s32.totalorder %s36, 1
      %p416 = scmp.ne.s32.totalorder %s411, %s413
      %p417 = scmp.eq.s32.totalorder %s36, 0
      %p418 = por %p416, %p417
      %p419 = scmp.ne.s32.totalorder %s411, %s413
      %p420 = scmp.eq.s32.totalorder %s41, 1
      %p421 = por %p419, %p420
      %p422 = scmp.ne.s32.totalorder %s413, %s414
      %p423 = scmp.eq.s32.totalorder %s41, 0
      %p424 = por %p422, %p423
      %p425 = scmp.ne.s32.totalorder %s413, %s414
      %p426 = scmp.eq.s32.totalorder %s42, 1
      %p427 = por %p425, %p426
      %p429 = scmp.ne.s32.totalorder %s414, %s428
      %p430 = scmp.eq.s32.totalorder %s42, 0
      %p431 = por %p429, %p430
      %s432 = ssub.s32 %s36, %s43
      %p433 = scmp.eq.s32.totalorder %s432, 0
      %s435 = sadd.s32 %s434, 1
      %s436 = scalar_select %p433, %s434, %s435
      %p439 = pneg %p433
      %p440 = scmp.eq.s32.totalorder %s36, 1
      %p441 = por %p439, %p440
      %p442 = scmp.ne.s32.totalorder %s434, %s437
      %p443 = scmp.eq.s32.totalorder %s36, 0
      %p444 = por %p442, %p443
      %p445 = scmp.ne.s32.totalorder %s434, %s437
      %p446 = scmp.eq.s32.totalorder %s41, 1
      %p447 = por %p445, %p446
      %p448 = scmp.ne.s32.totalorder %s437, %s438
      %p449 = scmp.eq.s32.totalorder %s41, 0
      %p450 = por %p448, %p449
      %p451 = scmp.ne.s32.totalorder %s437, %s438
      %p452 = scmp.eq.s32.totalorder %s42, 1
      %p453 = por %p451, %p452
      %p455 = scmp.ne.s32.totalorder %s438, %s454
      %p456 = scmp.eq.s32.totalorder %s42, 0
      %p457 = por %p455, %p456
      %p458 = scmp.le.s32.totalorder 1, %s36
      %p459 = scmp.lt.s32.totalorder %s36, 3
      %p460 = pnand %p458, %p459
      %p461 = pneg %p460
      // Predicated region
      $region9: #{tpu_custom_call.1} parent=5 // pred_check
        _
      $region10: #{tpu_custom_call.1} parent=5 // pred_check_branch
        %463 = sbr.rel (%p460) target = $region12
      $region11: #{tpu_custom_call.1} parent=5 // pred_region
        %s464 = ssub.s32 %s36, 1
        // Predicated region
        $region13: #{tpu_custom_call.1} parent=11 // pred_check
          %p465 = pneg %p109
        $region14: #{tpu_custom_call.1} parent=11 // pred_check_branch
          %467 = sbr.rel (%p465) target = $region16
        $region15: #{tpu_custom_call.1} parent=11 // pred_region
          %469 = vsyncadd [#allocation6], 0
          %s470 = sshll.u32 %s2, 4
          %s471 = int_to_ptr.hbm [resolvable:$true] %s470
          %s472 = sshll.u32 [#allocation7], 4
          %s473 = int_to_ptr.vmem [resolvable:$true] %s472
          %478 = dma.hbm_to_vmem [thread:$0]  %s471, 1024, %s473, [#allocation6], 64, 64, 4
        $region16: #{tpu_custom_call.1} parent=11 // pred_fallthru
          _
        // Predicated region
        $region17: #{tpu_custom_call.1} parent=11 // pred_check
          %p479 = pneg %p130
        $region18: #{tpu_custom_call.1} parent=11 // pred_check_branch
          %481 = sbr.rel (%p479) target = $region20
        $region19: #{tpu_custom_call.1} parent=11 // pred_region
          _
        $region20: #{tpu_custom_call.1} parent=11 // pred_fallthru
          _
        // Predicated region
        $region21: #{tpu_custom_call.1} parent=11 // pred_check
          %p482 = pneg %p151
        $region22: #{tpu_custom_call.1} parent=11 // pred_check_branch
          %484 = sbr.rel (%p482) target = $region24
        $region23: #{tpu_custom_call.1} parent=11 // pred_region
          %486 = vsyncadd [#allocation9], 0
          %s487 = sshll.u32 %s4, 4
          %s488 = int_to_ptr.hbm [resolvable:$true] %s487
          %s489 = sshll.u32 [#allocation8], 4
          %s490 = int_to_ptr.vmem [resolvable:$true] %s489
          %495 = dma.hbm_to_vmem [thread:$0]  %s488, 1024, %s490, [#allocation9], 64, 64, 4
        $region24: #{tpu_custom_call.1} parent=11 // pred_fallthru
          _
        // Predicated region
        $region25: #{tpu_custom_call.1} parent=11 // pred_check
          %p496 = pneg %p172
        $region26: #{tpu_custom_call.1} parent=11 // pred_check_branch
          %498 = sbr.rel (%p496) target = $region28
        $region27: #{tpu_custom_call.1} parent=11 // pred_region
          _
        $region28: #{tpu_custom_call.1} parent=11 // pred_fallthru
          _
        // Predicated region
        $region29: #{tpu_custom_call.1} parent=11 // pred_check
          %p499 = pneg %p193
        $region30: #{tpu_custom_call.1} parent=11 // pred_check_branch
          %501 = sbr.rel (%p499) target = $region32
        $region31: #{tpu_custom_call.1} parent=11 // pred_region
          %503 = vsyncadd [#allocation9], 0
          %s504 = sshll.u32 %s6, 4
          %s505 = int_to_ptr.hbm [resolvable:$true] %s504
          %s506 = sshll.u32 [#allocation10], 4
          %s507 = int_to_ptr.vmem [resolvable:$true] %s506
          %512 = dma.hbm_to_vmem [thread:$0]  %s505, 1024, %s507, [#allocation9], 64, 64, 4
        $region32: #{tpu_custom_call.1} parent=11 // pred_fallthru
          _
        // Predicated region
        $region33: #{tpu_custom_call.1} parent=11 // pred_check
          %p513 = pneg %p214
        $region34: #{tpu_custom_call.1} parent=11 // pred_check_branch
          %515 = sbr.rel (%p513) target = $region36
        $region35: #{tpu_custom_call.1} parent=11 // pred_region
          _
        $region36: #{tpu_custom_call.1} parent=11 // pred_fallthru
          _
        // Predicated region
        $region37: #{tpu_custom_call.1} parent=11 // pred_check
          %p516 = pneg %p235
        $region38: #{tpu_custom_call.1} parent=11 // pred_check_branch
          %518 = sbr.rel (%p516) target = $region40
        $region39: #{tpu_custom_call.1} parent=11 // pred_region
          %520 = vsyncadd [#allocation12], 0
          %s521 = sshll.u32 %s8, 4
          %s522 = int_to_ptr.hbm [resolvable:$true] %s521
          %s523 = sshll.u32 [#allocation11], 4
          %s524 = int_to_ptr.vmem [resolvable:$true] %s523
          %529 = dma.hbm_to_vmem [thread:$0]  %s522, 1024, %s524, [#allocation12], 64, 64, 4
        $region40: #{tpu_custom_call.1} parent=11 // pred_fallthru
          _
        // Predicated region
        $region41: #{tpu_custom_call.1} parent=11 // pred_check
          %p530 = pneg %p256
        $region42: #{tpu_custom_call.1} parent=11 // pred_check_branch
          %532 = sbr.rel (%p530) target = $region44
        $region43: #{tpu_custom_call.1} parent=11 // pred_region
          _
        $region44: #{tpu_custom_call.1} parent=11 // pred_fallthru
          _
        // Predicated region
        $region45: #{tpu_custom_call.1} parent=11 // pred_check
          %p533 = pneg %p277
        $region46: #{tpu_custom_call.1} parent=11 // pred_check_branch
          %535 = sbr.rel (%p533) target = $region48
        $region47: #{tpu_custom_call.1} parent=11 // pred_region
          _
        $region48: #{tpu_custom_call.1} parent=11 // pred_fallthru
          _
        // Predicated region
        $region49: #{tpu_custom_call.1} parent=11 // pred_check
          %p536 = pneg %p298
        $region50: #{tpu_custom_call.1} parent=11 // pred_check_branch
          %538 = sbr.rel (%p536) target = $region52
        $region51: #{tpu_custom_call.1} parent=11 // pred_region
          _
        $region52: #{tpu_custom_call.1} parent=11 // pred_fallthru
          _
        // Predicated region
        $region53: #{tpu_custom_call.1} parent=11 // pred_check
          %p539 = pneg %p319
        $region54: #{tpu_custom_call.1} parent=11 // pred_check_branch
          %541 = sbr.rel (%p539) target = $region56
        $region55: #{tpu_custom_call.1} parent=11 // pred_region
          %543 = vsyncadd [#allocation12], 0
          %s544 = sshll.u32 %s12, 4
          %s545 = int_to_ptr.hbm [resolvable:$true] %s544
          %s546 = sshll.u32 [#allocation13], 4
          %s547 = int_to_ptr.vmem [resolvable:$true] %s546
          %552 = dma.hbm_to_vmem [thread:$0]  %s545, 2048, %s547, [#allocation12], 128, 128, 8
        $region56: #{tpu_custom_call.1} parent=11 // pred_fallthru
          _
        // Predicated region
        $region57: #{tpu_custom_call.1} parent=11 // pred_check
          %p553 = pneg %p340
        $region58: #{tpu_custom_call.1} parent=11 // pred_check_branch
          %555 = sbr.rel (%p553) target = $region60
        $region59: #{tpu_custom_call.1} parent=11 // pred_region
          _
        $region60: #{tpu_custom_call.1} parent=11 // pred_fallthru
          _
        // Predicated region
        $region61: #{tpu_custom_call.1} parent=11 // pred_check
          %p556 = pneg %p361
        $region62: #{tpu_custom_call.1} parent=11 // pred_check_branch
          %558 = sbr.rel (%p556) target = $region64
        $region63: #{tpu_custom_call.1} parent=11 // pred_region
          %560 = vsyncadd [#allocation15], 0
          %s561 = sshll.u32 %s14, 4
          %s562 = int_to_ptr.hbm [resolvable:$true] %s561
          %s563 = sshll.u32 [#allocation14], 4
          %s564 = int_to_ptr.vmem [resolvable:$true] %s563
          %569 = dma.hbm_to_vmem [thread:$0]  %s562, 2048, %s564, [#allocation15], 64, 64, 4
        $region64: #{tpu_custom_call.1} parent=11 // pred_fallthru
          _
        // Predicated region
        $region65: #{tpu_custom_call.1} parent=11 // pred_check
          %p570 = pneg %p382
        $region66: #{tpu_custom_call.1} parent=11 // pred_check_branch
          %572 = sbr.rel (%p570) target = $region68
        $region67: #{tpu_custom_call.1} parent=11 // pred_region
          _
        $region68: #{tpu_custom_call.1} parent=11 // pred_fallthru
          _
        // Predicated region
        $region69: #{tpu_custom_call.1} parent=11 // pred_check
          %p573 = pneg %p403
        $region70: #{tpu_custom_call.1} parent=11 // pred_check_branch
          %575 = sbr.rel (%p573) target = $region72
        $region71: #{tpu_custom_call.1} parent=11 // pred_region
          _
        $region72: #{tpu_custom_call.1} parent=11 // pred_fallthru
          _
        // Predicated region
        $region73: #{tpu_custom_call.1} parent=11 // pred_check
          %p576 = pneg %p424
        $region74: #{tpu_custom_call.1} parent=11 // pred_check_branch
          %578 = sbr.rel (%p576) target = $region76
        $region75: #{tpu_custom_call.1} parent=11 // pred_region
          _
        $region76: #{tpu_custom_call.1} parent=11 // pred_fallthru
          _
      $region12: #{tpu_custom_call.1} parent=5 // pred_fallthru
        _
      %p579 = scmp.lt.s32.totalorder %s36, 2
      // Predicated region
      $region77: #{tpu_custom_call.1} parent=5 // pred_check
        %p580 = pneg %p579
      $region78: #{tpu_custom_call.1} parent=5 // pred_check_branch
        %582 = sbr.rel (%p580) target = $region80
      $region79: #{tpu_custom_call.1} parent=5 // pred_region
        // Predicated region
        $region81: #{tpu_custom_call.1} parent=79 // pred_check
          %p583 = pneg %p56
        $region82: #{tpu_custom_call.1} parent=79 // pred_check_branch
          %585 = sbr.rel (%p583) target = $region84
        $region83: #{tpu_custom_call.1} parent=79 // pred_region
          %s586 = sand.u32 %s46, 1
          %s587 = scalar_lea.sflag [#allocation3], %s586
          %s588 = sand.u32 %s46, 1
          %s589 = smul.addr %s588, 16
          %s590 = scalar_lea.vmem [#allocation2], %s589
          %592 = vsyncadd %s587, 0
          %s593 = smul.addr %s36, 2
          %s594 = smul.addr %s593, 8
          %s595 = scalar_lea.hbm %s0, %s594
          %s596 = sshll.u32 %s595, 4
          %s597 = int_to_ptr.hbm [resolvable:$true] %s596
          %s598 = sshll.u32 %s590, 4
          %s599 = int_to_ptr.vmem [resolvable:$true] %s598
          %604 = dma.hbm_to_vmem [thread:$0]  %s597, 256, %s599, %s587, 128, 128, 8
        $region84: #{tpu_custom_call.1} parent=79 // pred_fallthru
          _
        // Predicated region
        $region85: #{tpu_custom_call.1} parent=79 // pred_check
          %p605 = pneg %p82
        $region86: #{tpu_custom_call.1} parent=79 // pred_check_branch
          %607 = sbr.rel (%p605) target = $region88
        $region87: #{tpu_custom_call.1} parent=79 // pred_region
          %s608 = sand.u32 %s36, 1
          %s609 = scalar_lea.sflag [#allocation6], %s608
          %s610 = sand.u32 %s72, 1
          %s611 = scalar_lea.vmem [#allocation5], %s610
          %613 = vsyncadd %s609, 0
          %s614 = scalar_lea.hbm %s1, %s36
          %s616 = sshll.u32 %s614, 4
          %s617 = int_to_ptr.hbm [resolvable:$true] %s616
          %s618 = sshll.u32 %s611, 4
          %s619 = int_to_ptr.vmem [resolvable:$true] %s618
          %621 = dma.hbm_to_vmem [thread:$0]  %s617, 16, %s619, %s609
        $region88: #{tpu_custom_call.1} parent=79 // pred_fallthru
          _
      $region80: #{tpu_custom_call.1} parent=5 // pred_fallthru
        _
      %p622 = scmp.le.s32.totalorder 1, %s36
      %p623 = scmp.lt.s32.totalorder %s36, 3
      %p624 = pnand %p622, %p623
      %p625 = pneg %p624
      // Predicated region
      $region89: #{tpu_custom_call.1} parent=5 // pred_check
        _
      $region90: #{tpu_custom_call.1} parent=5 // pred_check_branch
        %627 = sbr.rel (%p624) target = $region92
      $region91: #{tpu_custom_call.1} parent=5 // pred_region
        %s628 = ssub.s32 %s36, 1
        %s629 = sand.u32 %s49, 1
        %s630 = scalar_lea.sflag [#allocation3], %s629
        %s631 = sand.u32 %s49, 1
        %s632 = smul.addr %s631, 16
        %s633 = scalar_lea.vmem [#allocation2], %s632
        // Predicated region
        $region93: #{tpu_custom_call.1} parent=91 // pred_check
          %p634 = pneg %p62
        $region94: #{tpu_custom_call.1} parent=91 // pred_check_branch
          %636 = sbr.rel (%p634) target = $region96
        $region95: #{tpu_custom_call.1} parent=91 // pred_region
          %638 = dma.done %s630, 256
        $region96: #{tpu_custom_call.1} parent=91 // pred_fallthru
          _
        %s639 = sand.u32 %s41, 1
        %s640 = scalar_lea.sflag [#allocation6], %s639
        %s641 = sand.u32 %s75, 1
        %s642 = scalar_lea.vmem [#allocation5], %s641
        // Predicated region
        $region97: #{tpu_custom_call.1} parent=91 // pred_check
          %p643 = pneg %p88
        $region98: #{tpu_custom_call.1} parent=91 // pred_check_branch
          %645 = sbr.rel (%p643) target = $region100
        $region99: #{tpu_custom_call.1} parent=91 // pred_region
          %647 = dma.done %s640, 16
        $region100: #{tpu_custom_call.1} parent=91 // pred_fallthru
          _
        // Predicated region
        $region101: #{tpu_custom_call.1} parent=91 // pred_check
          %p648 = pneg %p109
        $region102: #{tpu_custom_call.1} parent=91 // pred_check_branch
          %650 = sbr.rel (%p648) target = $region104
        $region103: #{tpu_custom_call.1} parent=91 // pred_region
          %652 = dma.done [#allocation6], 1024
        $region104: #{tpu_custom_call.1} parent=91 // pred_fallthru
          _
        // Predicated region
        $region105: #{tpu_custom_call.1} parent=91 // pred_check
          %p653 = pneg %p151
        $region106: #{tpu_custom_call.1} parent=91 // pred_check_branch
          %655 = sbr.rel (%p653) target = $region108
        $region107: #{tpu_custom_call.1} parent=91 // pred_region
          %657 = dma.done [#allocation9], 1024
        $region108: #{tpu_custom_call.1} parent=91 // pred_fallthru
          _
        // Predicated region
        $region109: #{tpu_custom_call.1} parent=91 // pred_check
          %p658 = pneg %p193
        $region110: #{tpu_custom_call.1} parent=91 // pred_check_branch
          %660 = sbr.rel (%p658) target = $region112
        $region111: #{tpu_custom_call.1} parent=91 // pred_region
          %662 = dma.done [#allocation9], 1024
        $region112: #{tpu_custom_call.1} parent=91 // pred_fallthru
          _
        // Predicated region
        $region113: #{tpu_custom_call.1} parent=91 // pred_check
          %p663 = pneg %p235
        $region114: #{tpu_custom_call.1} parent=91 // pred_check_branch
          %665 = sbr.rel (%p663) target = $region116
        $region115: #{tpu_custom_call.1} parent=91 // pred_region
          %667 = dma.done [#allocation12], 1024
        $region116: #{tpu_custom_call.1} parent=91 // pred_fallthru
          _
        // Predicated region
        $region117: #{tpu_custom_call.1} parent=91 // pred_check
          %p668 = pneg %p319
        $region118: #{tpu_custom_call.1} parent=91 // pred_check_branch
          %670 = sbr.rel (%p668) target = $region120
        $region119: #{tpu_custom_call.1} parent=91 // pred_region
          %672 = dma.done [#allocation12], 2048
        $region120: #{tpu_custom_call.1} parent=91 // pred_fallthru
          _
        // Predicated region
        $region121: #{tpu_custom_call.1} parent=91 // pred_check
          %p673 = pneg %p361
        $region122: #{tpu_custom_call.1} parent=91 // pred_check_branch
          %675 = sbr.rel (%p673) target = $region124
        $region123: #{tpu_custom_call.1} parent=91 // pred_region
          %677 = dma.done [#allocation15], 2048
        $region124: #{tpu_custom_call.1} parent=91 // pred_fallthru
          _
        %s678 = sand.u32 %s49, 1
        %s679 = scalar_lea.sflag [#allocation3], %s678
        %s680 = sand.u32 %s49, 1
        %s681 = smul.addr %s680, 16
        %s682 = scalar_lea.vmem [#allocation2], %s681
        %p683 = pneg %p62
        %p684 = pneg %p59
        %s685 = sand.u32 %s41, 1
        %s686 = scalar_lea.sflag [#allocation6], %s685
        %s687 = sand.u32 %s75, 1
        %s688 = scalar_lea.vmem [#allocation5], %s687
        %p689 = pneg %p88
        %p690 = pneg %p85
        %p691 = pneg %p109
        %p692 = pneg %p106
        %p693 = pneg %p130
        %p694 = pneg %p127
        %p695 = pneg %p151
        %p696 = pneg %p148
        %p697 = pneg %p172
        %p698 = pneg %p169
        %p699 = pneg %p193
        %p700 = pneg %p190
        %p701 = pneg %p214
        %p702 = pneg %p211
        %p703 = pneg %p235
        %p704 = pneg %p232
        %p705 = pneg %p256
        %p706 = pneg %p253
        %p707 = pneg %p277
        %p708 = pneg %p274
        %p709 = pneg %p298
        %p710 = pneg %p295
        %p711 = pneg %p319
        %p712 = pneg %p316
        %p713 = pneg %p340
        %p714 = pneg %p337
        %p715 = pneg %p361
        %p716 = pneg %p358
        %p717 = pneg %p382
        %p718 = pneg %p379
        %p719 = pneg %p403
        %p720 = pneg %p400
        %p721 = pneg %p424
        %p722 = pneg %p421
        %p723 = pneg %p450
        %p724 = pneg %p447
        %s725 = sand.u32 %s437, 1
        %s726 = scalar_lea.sflag [#allocation4], %s725
        %s727 = sand.u32 %s437, 1
        %s728 = smul.addr %s727, 16
        %s729 = scalar_lea.vmem [#allocation16], %s728
        %v731 = vld [vmem:[%s633] sm:$0xff]
        %v732 = vld [vmem:[%s633 + $0x8] sm:$0xff]
        %v733 = vpack.c.bf16 %v732, %v731
        %v734 = vld [vmem:[#allocation7] sm:$0xf]
        %v735 = vld [vmem:[#allocation7 + $0x4] sm:$0xf]
        %v736 = vld [vmem:[#allocation7 + $0x8] sm:$0xf]
        %v737 = vld [vmem:[#allocation7 + $0xc] sm:$0xf]
        %v738 = vld [vmem:[#allocation7 + $0x10] sm:$0xf]
        %v739 = vld [vmem:[#allocation7 + $0x14] sm:$0xf]
        %v740 = vld [vmem:[#allocation7 + $0x18] sm:$0xf]
        %v741 = vld [vmem:[#allocation7 + $0x1c] sm:$0xf]
        %v742 = vld [vmem:[#allocation7 + $0x20] sm:$0xf]
        %v743 = vld [vmem:[#allocation7 + $0x24] sm:$0xf]
        %v744 = vld [vmem:[#allocation7 + $0x28] sm:$0xf]
        %v745 = vld [vmem:[#allocation7 + $0x2c] sm:$0xf]
        %v746 = vld [vmem:[#allocation7 + $0x30] sm:$0xf]
        %v747 = vld [vmem:[#allocation7 + $0x34] sm:$0xf]
        %v748 = vld [vmem:[#allocation7 + $0x38] sm:$0xf]
        %v749 = vld [vmem:[#allocation7 + $0x3c] sm:$0xf]
        %v750 = vld [vmem:[%s3] sm:$0x1]
        %v752 = vperm.slane %v750, 0
        %v770 = vunpack.c.l.b16 %v734
        %v771 = vunpack.c.l.b16 %v735
        %v772 = vunpack.c.l.b16 %v736
        %v773 = vunpack.c.l.b16 %v737
        %v774 = vunpack.c.l.b16 %v738
        %v775 = vunpack.c.l.b16 %v739
        %v776 = vunpack.c.l.b16 %v740
        %v777 = vunpack.c.l.b16 %v741
        %v778 = vunpack.c.l.b16 %v742
        %v779 = vunpack.c.l.b16 %v743
        %v780 = vunpack.c.l.b16 %v744
        %v781 = vunpack.c.l.b16 %v745
        %v782 = vunpack.c.l.b16 %v746
        %v783 = vunpack.c.l.b16 %v747
        %v784 = vunpack.c.l.b16 %v748
        %v785 = vunpack.c.l.b16 %v749
        %v786 = vpack.c.b16 %v771, %v770
        %v787 = vpack.c.b16 %v773, %v772
        %v788 = vpack.c.b16 %v775, %v774
        %v789 = vpack.c.b16 %v777, %v776
        %v790 = vpack.c.b16 %v779, %v778
        %v791 = vpack.c.b16 %v781, %v780
        %v792 = vpack.c.b16 %v783, %v782
        %v793 = vpack.c.b16 %v785, %v784
        %802 = vmatpush.bf16.msra.mxu0 %v793
        %803 = vmatpush.bf16.msra.mxu0 %v792
        %804 = vmatpush.bf16.msra.mxu0 %v791
        %805 = vmatpush.bf16.msra.mxu0 %v790
        %806 = vmatpush.bf16.msra.mxu0 %v789
        %807 = vmatpush.bf16.msra.mxu0 %v788
        %808 = vmatpush.bf16.msra.mxu0 %v787
        %809 = vmatpush.bf16.msra.mxu0 %v786
        %810 = vmatmul.bf16.gmra.mxu0 %v733
        %v811 = vpop.f32.mrf.mxu0
        %v812 = vadd.f32 %v752, %v811
        %v813 = vpop.f32.mrf.mxu0
        %v814 = vadd.f32 %v752, %v813
        %815 = vdwg.mxu0
        %v816 = vmul.f32 %v812, 0.25
        %v817 = vmul.f32 %v814, 0.25
        %v818 = vpack.c.bf16 %v816, %v816
        %v819 = vpack.c.bf16 %v817, %v817
        %v820 = vld [vmem:[#allocation8] sm:$0xf]
        %v821 = vld [vmem:[#allocation8 + $0x4] sm:$0xf]
        %v822 = vld [vmem:[#allocation8 + $0x8] sm:$0xf]
        %v823 = vld [vmem:[#allocation8 + $0xc] sm:$0xf]
        %v824 = vld [vmem:[#allocation8 + $0x10] sm:$0xf]
        %v825 = vld [vmem:[#allocation8 + $0x14] sm:$0xf]
        %v826 = vld [vmem:[#allocation8 + $0x18] sm:$0xf]
        %v827 = vld [vmem:[#allocation8 + $0x1c] sm:$0xf]
        %v828 = vld [vmem:[#allocation8 + $0x20] sm:$0xf]
        %v829 = vld [vmem:[#allocation8 + $0x24] sm:$0xf]
        %v830 = vld [vmem:[#allocation8 + $0x28] sm:$0xf]
        %v831 = vld [vmem:[#allocation8 + $0x2c] sm:$0xf]
        %v832 = vld [vmem:[#allocation8 + $0x30] sm:$0xf]
        %v833 = vld [vmem:[#allocation8 + $0x34] sm:$0xf]
        %v834 = vld [vmem:[#allocation8 + $0x38] sm:$0xf]
        %v835 = vld [vmem:[#allocation8 + $0x3c] sm:$0xf]
        %v836 = vld [vmem:[%s5] sm:$0x1]
        %v838 = vperm.slane %v836, 0
        %v856 = vunpack.c.l.b16 %v820
        %v857 = vunpack.c.l.b16 %v821
        %v858 = vunpack.c.l.b16 %v822
        %v859 = vunpack.c.l.b16 %v823
        %v860 = vunpack.c.l.b16 %v824
        %v861 = vunpack.c.l.b16 %v825
        %v862 = vunpack.c.l.b16 %v826
        %v863 = vunpack.c.l.b16 %v827
        %v864 = vunpack.c.l.b16 %v828
        %v865 = vunpack.c.l.b16 %v829
        %v866 = vunpack.c.l.b16 %v830
        %v867 = vunpack.c.l.b16 %v831
        %v868 = vunpack.c.l.b16 %v832
        %v869 = vunpack.c.l.b16 %v833
        %v870 = vunpack.c.l.b16 %v834
        %v871 = vunpack.c.l.b16 %v835
        %v872 = vpack.c.b16 %v857, %v856
        %v873 = vpack.c.b16 %v859, %v858
        %v874 = vpack.c.b16 %v861, %v860
        %v875 = vpack.c.b16 %v863, %v862
        %v876 = vpack.c.b16 %v865, %v864
        %v877 = vpack.c.b16 %v867, %v866
        %v878 = vpack.c.b16 %v869, %v868
        %v879 = vpack.c.b16 %v871, %v870
        %888 = vmatpush.bf16.msra.mxu0 %v879
        %889 = vmatpush.bf16.msra.mxu0 %v878
        %890 = vmatpush.bf16.msra.mxu0 %v877
        %891 = vmatpush.bf16.msra.mxu0 %v876
        %892 = vmatpush.bf16.msra.mxu0 %v875
        %893 = vmatpush.bf16.msra.mxu0 %v874
        %894 = vmatpush.bf16.msra.mxu0 %v873
        %895 = vmatpush.bf16.msra.mxu0 %v872
        %896 = vmatmul.bf16.gmra.mxu0 %v733
        %v897 = vpop.f32.mrf.mxu0
        %v898 = vadd.f32 %v838, %v897
        %v899 = vpop.f32.mrf.mxu0
        %v900 = vadd.f32 %v838, %v899
        %901 = vdwg.mxu0
        %v902 = vpack.c.bf16 %v898, %v898
        %v903 = vpack.c.bf16 %v900, %v900
        %v904 = vld [vmem:[#allocation10] sm:$0xf]
        %v905 = vld [vmem:[#allocation10 + $0x4] sm:$0xf]
        %v906 = vld [vmem:[#allocation10 + $0x8] sm:$0xf]
        %v907 = vld [vmem:[#allocation10 + $0xc] sm:$0xf]
        %v908 = vld [vmem:[#allocation10 + $0x10] sm:$0xf]
        %v909 = vld [vmem:[#allocation10 + $0x14] sm:$0xf]
        %v910 = vld [vmem:[#allocation10 + $0x18] sm:$0xf]
        %v911 = vld [vmem:[#allocation10 + $0x1c] sm:$0xf]
        %v912 = vld [vmem:[#allocation10 + $0x20] sm:$0xf]
        %v913 = vld [vmem:[#allocation10 + $0x24] sm:$0xf]
        %v914 = vld [vmem:[#allocation10 + $0x28] sm:$0xf]
        %v915 = vld [vmem:[#allocation10 + $0x2c] sm:$0xf]
        %v916 = vld [vmem:[#allocation10 + $0x30] sm:$0xf]
        %v917 = vld [vmem:[#allocation10 + $0x34] sm:$0xf]
        %v918 = vld [vmem:[#allocation10 + $0x38] sm:$0xf]
        %v919 = vld [vmem:[#allocation10 + $0x3c] sm:$0xf]
        %v920 = vld [vmem:[%s7] sm:$0x1]
        %v922 = vperm.slane %v920, 0
        %v940 = vunpack.c.l.b16 %v904
        %v941 = vunpack.c.l.b16 %v905
        %v942 = vunpack.c.l.b16 %v906
        %v943 = vunpack.c.l.b16 %v907
        %v944 = vunpack.c.l.b16 %v908
        %v945 = vunpack.c.l.b16 %v909
        %v946 = vunpack.c.l.b16 %v910
        %v947 = vunpack.c.l.b16 %v911
        %v948 = vunpack.c.l.b16 %v912
        %v949 = vunpack.c.l.b16 %v913
        %v950 = vunpack.c.l.b16 %v914
        %v951 = vunpack.c.l.b16 %v915
        %v952 = vunpack.c.l.b16 %v916
        %v953 = vunpack.c.l.b16 %v917
        %v954 = vunpack.c.l.b16 %v918
        %v955 = vunpack.c.l.b16 %v919
        %v956 = vpack.c.b16 %v941, %v940
        %v957 = vpack.c.b16 %v943, %v942
        %v958 = vpack.c.b16 %v945, %v944
        %v959 = vpack.c.b16 %v947, %v946
        %v960 = vpack.c.b16 %v949, %v948
        %v961 = vpack.c.b16 %v951, %v950
        %v962 = vpack.c.b16 %v953, %v952
        %v963 = vpack.c.b16 %v955, %v954
        %972 = vmatpush.bf16.msra.mxu0 %v963
        %973 = vmatpush.bf16.msra.mxu0 %v962
        %974 = vmatpush.bf16.msra.mxu0 %v961
        %975 = vmatpush.bf16.msra.mxu0 %v960
        %976 = vmatpush.bf16.msra.mxu0 %v959
        %977 = vmatpush.bf16.msra.mxu0 %v958
        %978 = vmatpush.bf16.msra.mxu0 %v957
        %979 = vmatpush.bf16.msra.mxu0 %v956
        %980 = vmatmul.bf16.gmra.mxu0 %v733
        %v981 = vpop.f32.mrf.mxu0
        %v982 = vadd.f32 %v922, %v981
        %v983 = vpop.f32.mrf.mxu0
        %v984 = vadd.f32 %v922, %v983
        %985 = vdwg.mxu0
        %v986 = vpack.c.bf16 %v982, %v982
        %v987 = vpack.c.bf16 %v984, %v984
        %v988 = vld [vmem:[%s642] sm:$0x1]
        %v990 = vperm.slane %v988, 0
        %v994 = vunpack.c.l.b16 %v818
        %v995 = vunpack.c.l.b16 %v819
        %v996 = vpack.c.b16 %v995, %v994
        %v999 = vunpack.c.l.b16 %v902
        %v1000 = vunpack.c.l.b16 %v903
        %v1001 = vpack.c.b16 %v1000, %v999
        %vm1002 = vcmask 130048
        %v1004 = vsel %vm1002, %v996, 0
        %v1007 = vsel %vm1002, %v1001, 0
        %1009 = vmatpush.bf16.xpose.msra.mxu0 0
        %1010 = vmatpush.bf16.xpose.msra.mxu0 0
        %1011 = vmatpush.bf16.xpose.msra.mxu0 0
        %1012 = vmatpush.bf16.xpose.msra.mxu0 0
        %1013 = vmatpush.bf16.xpose.msra.mxu0 0
        %1014 = vmatpush.bf16.xpose.msra.mxu0 0
        %1015 = vmatpush.bf16.xpose.msra.mxu0 0
        %1016 = vmatpush.bf16.xpose.msra.mxu0 %v1007
        %1017 = vmatmul.bf16.gmra.mxu0 %v1004
        %v1018 = vpop.f32.mrf.mxu0
        %v1019 = vadd.f32 %v990, %v1018
        %v1020 = vpop.f32.mrf.mxu0
        %v1021 = vadd.f32 %v990, %v1020
        %1022 = vdwg.mxu0
        %v1023 = vsel %vm1002, %v1019, -inf
        %1024 = vmax.xlane.f32.xlu0 %v1023
        %v1025 = vpop.xlane.xlu0 %1024
        %v1026 = vsel %vm1002, %v1021, -inf
        %1027 = vmax.xlane.f32.xlu0 %v1026
        %v1028 = vpop.xlane.xlu0 %1027
        %v1029 = vsub.f32 %v1019, %v1025
        %v1030 = vsub.f32 %v1021, %v1028
        %v1031 = vmul.f32 %v1029, 1.442695
        %v1032 = vpow.pop %v1031
        %v1033 = vmul.f32 %v1030, 1.442695
        %v1034 = vpow.pop %v1033
        %v1035 = vsel %vm1002, %v1032, 0.0
        %1036 = vadd.xlane.f32.xlu0 %v1035
        %v1037 = vpop.xlane.xlu0 %1036
        %v1038 = vsel %vm1002, %v1034, 0.0
        %1039 = vadd.xlane.f32.xlu0 %v1038
        %v1040 = vpop.xlane.xlu0 %1039
        %v1041 = vrcp.pop %v1037
        %v1042 = vrcp.pop %v1040
        %v1043 = vmul.f32 %v1032, %v1041
        %v1044 = vmul.f32 %v1034, %v1042
        %v1045 = vpack.c.bf16 %v1043, %v1043
        %v1046 = vpack.c.bf16 %v1044, %v1044
        %v1049 = vunpack.c.l.b16 %v1045
        %v1050 = vunpack.c.l.b16 %v1046
        %v1051 = vpack.c.b16 %v1050, %v1049
        %v1054 = vunpack.c.l.b16 %v986
        %v1055 = vunpack.c.l.b16 %v987
        %v1056 = vpack.c.b16 %v1055, %v1054
        %v1059 = vsel %vm1002, %v1051, 0
        %1061 = vmatpush.bf16.msra.mxu0 0
        %1062 = vmatpush.bf16.msra.mxu0 0
        %1063 = vmatpush.bf16.msra.mxu0 0
        %1064 = vmatpush.bf16.msra.mxu0 0
        %1065 = vmatpush.bf16.msra.mxu0 0
        %1066 = vmatpush.bf16.msra.mxu0 0
        %1067 = vmatpush.bf16.msra.mxu0 0
        %1068 = vmatpush.bf16.msra.mxu0 %v1056
        %1069 = vmatmul.bf16.gmra.mxu0 %v1059
        %v1070 = vpop.f32.mrf.mxu0
        %v1071 = vadd.f32 0.0, %v1070
        %v1072 = vpop.f32.mrf.mxu0
        %v1073 = vadd.f32 0.0, %v1072
        %1074 = vdwg.mxu0
        %1075 = vrot.lane.b32.xlu0 %v996, 112
        %v1076 = vpop.permute.xlu0 %1075
        %1077 = vrot.lane.b32.xlu0 %v1001, 112
        %v1078 = vpop.permute.xlu0 %1077
        %v1080 = vsel %vm1002, %v1076, 0
        %v1083 = vsel %vm1002, %v1078, 0
        %1085 = vmatpush.bf16.xpose.msra.mxu0 0
        %1086 = vmatpush.bf16.xpose.msra.mxu0 0
        %1087 = vmatpush.bf16.xpose.msra.mxu0 0
        %1088 = vmatpush.bf16.xpose.msra.mxu0 0
        %1089 = vmatpush.bf16.xpose.msra.mxu0 0
        %1090 = vmatpush.bf16.xpose.msra.mxu0 0
        %1091 = vmatpush.bf16.xpose.msra.mxu0 0
        %1092 = vmatpush.bf16.xpose.msra.mxu0 %v1083
        %1093 = vmatmul.bf16.gmra.mxu0 %v1080
        %v1094 = vpop.f32.mrf.mxu0
        %v1095 = vadd.f32 %v990, %v1094
        %v1096 = vpop.f32.mrf.mxu0
        %v1097 = vadd.f32 %v990, %v1096
        %1098 = vdwg.mxu0
        %v1099 = vsel %vm1002, %v1095, -inf
        %1100 = vmax.xlane.f32.xlu0 %v1099
        %v1101 = vpop.xlane.xlu0 %1100
        %v1102 = vsel %vm1002, %v1097, -inf
        %1103 = vmax.xlane.f32.xlu0 %v1102
        %v1104 = vpop.xlane.xlu0 %1103
        %v1105 = vsub.f32 %v1095, %v1101
        %v1106 = vsub.f32 %v1097, %v1104
        %v1107 = vmul.f32 %v1105, 1.442695
        %v1108 = vpow.pop %v1107
        %v1109 = vmul.f32 %v1106, 1.442695
        %v1110 = vpow.pop %v1109
        %v1111 = vsel %vm1002, %v1108, 0.0
        %1112 = vadd.xlane.f32.xlu0 %v1111
        %v1113 = vpop.xlane.xlu0 %1112
        %v1114 = vsel %vm1002, %v1110, 0.0
        %1115 = vadd.xlane.f32.xlu0 %v1114
        %v1116 = vpop.xlane.xlu0 %1115
        %v1117 = vrcp.pop %v1113
        %v1118 = vrcp.pop %v1116
        %v1119 = vmul.f32 %v1108, %v1117
        %v1120 = vmul.f32 %v1110, %v1118
        %v1121 = vpack.c.bf16 %v1119, %v1119
        %v1122 = vpack.c.bf16 %v1120, %v1120
        %v1125 = vunpack.c.l.b16 %v1121
        %v1126 = vunpack.c.l.b16 %v1122
        %v1127 = vpack.c.b16 %v1126, %v1125
        %1128 = vrot.lane.b32.xlu0 %v1056, 112
        %v1129 = vpop.permute.xlu0 %1128
        %v1132 = vsel %vm1002, %v1127, 0
        %1134 = vmatpush.bf16.msra.mxu0 0
        %1135 = vmatpush.bf16.msra.mxu0 0
        %1136 = vmatpush.bf16.msra.mxu0 0
        %1137 = vmatpush.bf16.msra.mxu0 0
        %1138 = vmatpush.bf16.msra.mxu0 0
        %1139 = vmatpush.bf16.msra.mxu0 0
        %1140 = vmatpush.bf16.msra.mxu0 0
        %1141 = vmatpush.bf16.msra.mxu0 %v1129
        %1142 = vmatmul.bf16.gmra.mxu0 %v1132
        %v1143 = vpop.f32.mrf.mxu0
        %v1144 = vadd.f32 0.0, %v1143
        %v1145 = vpop.f32.mrf.mxu0
        %v1146 = vadd.f32 0.0, %v1145
        %1147 = vdwg.mxu0
        %1148 = vrot.lane.b32.xlu0 %v996, 96
        %v1149 = vpop.permute.xlu0 %1148
        %1150 = vrot.lane.b32.xlu0 %v1001, 96
        %v1151 = vpop.permute.xlu0 %1150
        %v1153 = vsel %vm1002, %v1149, 0
        %v1156 = vsel %vm1002, %v1151, 0
        %1158 = vmatpush.bf16.xpose.msra.mxu0 0
        %1159 = vmatpush.bf16.xpose.msra.mxu0 0
        %1160 = vmatpush.bf16.xpose.msra.mxu0 0
        %1161 = vmatpush.bf16.xpose.msra.mxu0 0
        %1162 = vmatpush.bf16.xpose.msra.mxu0 0
        %1163 = vmatpush.bf16.xpose.msra.mxu0 0
        %1164 = vmatpush.bf16.xpose.msra.mxu0 0
        %1165 = vmatpush.bf16.xpose.msra.mxu0 %v1156
        %1166 = vmatmul.bf16.gmra.mxu0 %v1153
        %v1167 = vpop.f32.mrf.mxu0
        %v1168 = vadd.f32 %v990, %v1167
        %v1169 = vpop.f32.mrf.mxu0
        %v1170 = vadd.f32 %v990, %v1169
        %1171 = vdwg.mxu0
        %v1172 = vsel %vm1002, %v1168, -inf
        %1173 = vmax.xlane.f32.xlu0 %v1172
        %v1174 = vpop.xlane.xlu0 %1173
        %v1175 = vsel %vm1002, %v1170, -inf
        %1176 = vmax.xlane.f32.xlu0 %v1175
        %v1177 = vpop.xlane.xlu0 %1176
        %v1178 = vsub.f32 %v1168, %v1174
        %v1179 = vsub.f32 %v1170, %v1177
        %v1180 = vmul.f32 %v1178, 1.442695
        %v1181 = vpow.pop %v1180
        %v1182 = vmul.f32 %v1179, 1.442695
        %v1183 = vpow.pop %v1182
        %v1184 = vsel %vm1002, %v1181, 0.0
        %1185 = vadd.xlane.f32.xlu0 %v1184
        %v1186 = vpop.xlane.xlu0 %1185
        %v1187 = vsel %vm1002, %v1183, 0.0
        %1188 = vadd.xlane.f32.xlu0 %v1187
        %v1189 = vpop.xlane.xlu0 %1188
        %v1190 = vrcp.pop %v1186
        %v1191 = vrcp.pop %v1189
        %v1192 = vmul.f32 %v1181, %v1190
        %v1193 = vmul.f32 %v1183, %v1191
        %v1194 = vpack.c.bf16 %v1192, %v1192
        %v1195 = vpack.c.bf16 %v1193, %v1193
        %v1198 = vunpack.c.l.b16 %v1194
        %v1199 = vunpack.c.l.b16 %v1195
        %v1200 = vpack.c.b16 %v1199, %v1198
        %1201 = vrot.lane.b32.xlu0 %v1056, 96
        %v1202 = vpop.permute.xlu0 %1201
        %v1205 = vsel %vm1002, %v1200, 0
        %1207 = vmatpush.bf16.msra.mxu0 0
        %1208 = vmatpush.bf16.msra.mxu0 0
        %1209 = vmatpush.bf16.msra.mxu0 0
        %1210 = vmatpush.bf16.msra.mxu0 0
        %1211 = vmatpush.bf16.msra.mxu0 0
        %1212 = vmatpush.bf16.msra.mxu0 0
        %1213 = vmatpush.bf16.msra.mxu0 0
        %1214 = vmatpush.bf16.msra.mxu0 %v1202
        %1215 = vmatmul.bf16.gmra.mxu0 %v1205
        %v1216 = vpop.f32.mrf.mxu0
        %v1217 = vadd.f32 0.0, %v1216
        %v1218 = vpop.f32.mrf.mxu0
        %v1219 = vadd.f32 0.0, %v1218
        %1220 = vdwg.mxu0
        %1221 = vrot.lane.b32.xlu0 %v996, 80
        %v1222 = vpop.permute.xlu0 %1221
        %1223 = vrot.lane.b32.xlu0 %v1001, 80
        %v1224 = vpop.permute.xlu0 %1223
        %v1226 = vsel %vm1002, %v1222, 0
        %v1229 = vsel %vm1002, %v1224, 0
        %1231 = vmatpush.bf16.xpose.msra.mxu0 0
        %1232 = vmatpush.bf16.xpose.msra.mxu0 0
        %1233 = vmatpush.bf16.xpose.msra.mxu0 0
        %1234 = vmatpush.bf16.xpose.msra.mxu0 0
        %1235 = vmatpush.bf16.xpose.msra.mxu0 0
        %1236 = vmatpush.bf16.xpose.msra.mxu0 0
        %1237 = vmatpush.bf16.xpose.msra.mxu0 0
        %1238 = vmatpush.bf16.xpose.msra.mxu0 %v1229
        %1239 = vmatmul.bf16.gmra.mxu0 %v1226
        %v1240 = vpop.f32.mrf.mxu0
        %v1241 = vadd.f32 %v990, %v1240
        %v1242 = vpop.f32.mrf.mxu0
        %v1243 = vadd.f32 %v990, %v1242
        %1244 = vdwg.mxu0
        %v1245 = vsel %vm1002, %v1241, -inf
        %1246 = vmax.xlane.f32.xlu0 %v1245
        %v1247 = vpop.xlane.xlu0 %1246
        %v1248 = vsel %vm1002, %v1243, -inf
        %1249 = vmax.xlane.f32.xlu0 %v1248
        %v1250 = vpop.xlane.xlu0 %1249
        %v1251 = vsub.f32 %v1241, %v1247
        %v1252 = vsub.f32 %v1243, %v1250
        %v1253 = vmul.f32 %v1251, 1.442695
        %v1254 = vpow.pop %v1253
        %v1255 = vmul.f32 %v1252, 1.442695
        %v1256 = vpow.pop %v1255
        %v1257 = vsel %vm1002, %v1254, 0.0
        %1258 = vadd.xlane.f32.xlu0 %v1257
        %v1259 = vpop.xlane.xlu0 %1258
        %v1260 = vsel %vm1002, %v1256, 0.0
        %1261 = vadd.xlane.f32.xlu0 %v1260
        %v1262 = vpop.xlane.xlu0 %1261
        %v1263 = vrcp.pop %v1259
        %v1264 = vrcp.pop %v1262
        %v1265 = vmul.f32 %v1254, %v1263
        %v1266 = vmul.f32 %v1256, %v1264
        %v1267 = vpack.c.bf16 %v1265, %v1265
        %v1268 = vpack.c.bf16 %v1266, %v1266
        %v1271 = vunpack.c.l.b16 %v1267
        %v1272 = vunpack.c.l.b16 %v1268
        %v1273 = vpack.c.b16 %v1272, %v1271
        %1274 = vrot.lane.b32.xlu0 %v1056, 80
        %v1275 = vpop.permute.xlu0 %1274
        %v1278 = vsel %vm1002, %v1273, 0
        %1280 = vmatpush.bf16.msra.mxu0 0
        %1281 = vmatpush.bf16.msra.mxu0 0
        %1282 = vmatpush.bf16.msra.mxu0 0
        %1283 = vmatpush.bf16.msra.mxu0 0
        %1284 = vmatpush.bf16.msra.mxu0 0
        %1285 = vmatpush.bf16.msra.mxu0 0
        %1286 = vmatpush.bf16.msra.mxu0 0
        %1287 = vmatpush.bf16.msra.mxu0 %v1275
        %1288 = vmatmul.bf16.gmra.mxu0 %v1278
        %v1289 = vpop.f32.mrf.mxu0
        %v1290 = vadd.f32 0.0, %v1289
        %v1291 = vpop.f32.mrf.mxu0
        %v1292 = vadd.f32 0.0, %v1291
        %1293 = vdwg.mxu0
        %1294 = vrot.lane.b32.xlu0 %v996, 64
        %v1295 = vpop.permute.xlu0 %1294
        %1296 = vrot.lane.b32.xlu0 %v1001, 64
        %v1297 = vpop.permute.xlu0 %1296
        %v1299 = vsel %vm1002, %v1295, 0
        %v1302 = vsel %vm1002, %v1297, 0
        %1304 = vmatpush.bf16.xpose.msra.mxu0 0
        %1305 = vmatpush.bf16.xpose.msra.mxu0 0
        %1306 = vmatpush.bf16.xpose.msra.mxu0 0
        %1307 = vmatpush.bf16.xpose.msra.mxu0 0
        %1308 = vmatpush.bf16.xpose.msra.mxu0 0
        %1309 = vmatpush.bf16.xpose.msra.mxu0 0
        %1310 = vmatpush.bf16.xpose.msra.mxu0 0
        %1311 = vmatpush.bf16.xpose.msra.mxu0 %v1302
        %1312 = vmatmul.bf16.gmra.mxu0 %v1299
        %v1313 = vpop.f32.mrf.mxu0
        %v1314 = vadd.f32 %v990, %v1313
        %v1315 = vpop.f32.mrf.mxu0
        %v1316 = vadd.f32 %v990, %v1315
        %1317 = vdwg.mxu0
        %v1318 = vsel %vm1002, %v1314, -inf
        %1319 = vmax.xlane.f32.xlu0 %v1318
        %v1320 = vpop.xlane.xlu0 %1319
        %v1321 = vsel %vm1002, %v1316, -inf
        %1322 = vmax.xlane.f32.xlu0 %v1321
        %v1323 = vpop.xlane.xlu0 %1322
        %v1324 = vsub.f32 %v1314, %v1320
        %v1325 = vsub.f32 %v1316, %v1323
        %v1326 = vmul.f32 %v1324, 1.442695
        %v1327 = vpow.pop %v1326
        %v1328 = vmul.f32 %v1325, 1.442695
        %v1329 = vpow.pop %v1328
        %v1330 = vsel %vm1002, %v1327, 0.0
        %1331 = vadd.xlane.f32.xlu0 %v1330
        %v1332 = vpop.xlane.xlu0 %1331
        %v1333 = vsel %vm1002, %v1329, 0.0
        %1334 = vadd.xlane.f32.xlu0 %v1333
        %v1335 = vpop.xlane.xlu0 %1334
        %v1336 = vrcp.pop %v1332
        %v1337 = vrcp.pop %v1335
        %v1338 = vmul.f32 %v1327, %v1336
        %v1339 = vmul.f32 %v1329, %v1337
        %v1340 = vpack.c.bf16 %v1338, %v1338
        %v1341 = vpack.c.bf16 %v1339, %v1339
        %v1344 = vunpack.c.l.b16 %v1340
        %v1345 = vunpack.c.l.b16 %v1341
        %v1346 = vpack.c.b16 %v1345, %v1344
        %1347 = vrot.lane.b32.xlu0 %v1056, 64
        %v1348 = vpop.permute.xlu0 %1347
        %v1351 = vsel %vm1002, %v1346, 0
        %1353 = vmatpush.bf16.msra.mxu0 0
        %1354 = vmatpush.bf16.msra.mxu0 0
        %1355 = vmatpush.bf16.msra.mxu0 0
        %1356 = vmatpush.bf16.msra.mxu0 0
        %1357 = vmatpush.bf16.msra.mxu0 0
        %1358 = vmatpush.bf16.msra.mxu0 0
        %1359 = vmatpush.bf16.msra.mxu0 0
        %1360 = vmatpush.bf16.msra.mxu0 %v1348
        %1361 = vmatmul.bf16.gmra.mxu0 %v1351
        %v1362 = vpop.f32.mrf.mxu0
        %v1363 = vadd.f32 0.0, %v1362
        %v1364 = vpop.f32.mrf.mxu0
        %v1365 = vadd.f32 0.0, %v1364
        %1366 = vdwg.mxu0
        %1367 = vrot.lane.b32.xlu0 %v996, 48
        %v1368 = vpop.permute.xlu0 %1367
        %1369 = vrot.lane.b32.xlu0 %v1001, 48
        %v1370 = vpop.permute.xlu0 %1369
        %v1372 = vsel %vm1002, %v1368, 0
        %v1375 = vsel %vm1002, %v1370, 0
        %1377 = vmatpush.bf16.xpose.msra.mxu0 0
        %1378 = vmatpush.bf16.xpose.msra.mxu0 0
        %1379 = vmatpush.bf16.xpose.msra.mxu0 0
        %1380 = vmatpush.bf16.xpose.msra.mxu0 0
        %1381 = vmatpush.bf16.xpose.msra.mxu0 0
        %1382 = vmatpush.bf16.xpose.msra.mxu0 0
        %1383 = vmatpush.bf16.xpose.msra.mxu0 0
        %1384 = vmatpush.bf16.xpose.msra.mxu0 %v1375
        %1385 = vmatmul.bf16.gmra.mxu0 %v1372
        %v1386 = vpop.f32.mrf.mxu0
        %v1387 = vadd.f32 %v990, %v1386
        %v1388 = vpop.f32.mrf.mxu0
        %v1389 = vadd.f32 %v990, %v1388
        %1390 = vdwg.mxu0
        %v1391 = vsel %vm1002, %v1387, -inf
        %1392 = vmax.xlane.f32.xlu0 %v1391
        %v1393 = vpop.xlane.xlu0 %1392
        %v1394 = vsel %vm1002, %v1389, -inf
        %1395 = vmax.xlane.f32.xlu0 %v1394
        %v1396 = vpop.xlane.xlu0 %1395
        %v1397 = vsub.f32 %v1387, %v1393
        %v1398 = vsub.f32 %v1389, %v1396
        %v1399 = vmul.f32 %v1397, 1.442695
        %v1400 = vpow.pop %v1399
        %v1401 = vmul.f32 %v1398, 1.442695
        %v1402 = vpow.pop %v1401
        %v1403 = vsel %vm1002, %v1400, 0.0
        %1404 = vadd.xlane.f32.xlu0 %v1403
        %v1405 = vpop.xlane.xlu0 %1404
        %v1406 = vsel %vm1002, %v1402, 0.0
        %1407 = vadd.xlane.f32.xlu0 %v1406
        %v1408 = vpop.xlane.xlu0 %1407
        %v1409 = vrcp.pop %v1405
        %v1410 = vrcp.pop %v1408
        %v1411 = vmul.f32 %v1400, %v1409
        %v1412 = vmul.f32 %v1402, %v1410
        %v1413 = vpack.c.bf16 %v1411, %v1411
        %v1414 = vpack.c.bf16 %v1412, %v1412
        %v1417 = vunpack.c.l.b16 %v1413
        %v1418 = vunpack.c.l.b16 %v1414
        %v1419 = vpack.c.b16 %v1418, %v1417
        %1420 = vrot.lane.b32.xlu0 %v1056, 48
        %v1421 = vpop.permute.xlu0 %1420
        %v1424 = vsel %vm1002, %v1419, 0
        %1426 = vmatpush.bf16.msra.mxu0 0
        %1427 = vmatpush.bf16.msra.mxu0 0
        %1428 = vmatpush.bf16.msra.mxu0 0
        %1429 = vmatpush.bf16.msra.mxu0 0
        %1430 = vmatpush.bf16.msra.mxu0 0
        %1431 = vmatpush.bf16.msra.mxu0 0
        %1432 = vmatpush.bf16.msra.mxu0 0
        %1433 = vmatpush.bf16.msra.mxu0 %v1421
        %1434 = vmatmul.bf16.gmra.mxu0 %v1424
        %v1435 = vpop.f32.mrf.mxu0
        %v1436 = vadd.f32 0.0, %v1435
        %v1437 = vpop.f32.mrf.mxu0
        %v1438 = vadd.f32 0.0, %v1437
        %1439 = vdwg.mxu0
        %1440 = vrot.lane.b32.xlu0 %v996, 32
        %v1441 = vpop.permute.xlu0 %1440
        %1442 = vrot.lane.b32.xlu0 %v1001, 32
        %v1443 = vpop.permute.xlu0 %1442
        %v1445 = vsel %vm1002, %v1441, 0
        %v1448 = vsel %vm1002, %v1443, 0
        %1450 = vmatpush.bf16.xpose.msra.mxu0 0
        %1451 = vmatpush.bf16.xpose.msra.mxu0 0
        %1452 = vmatpush.bf16.xpose.msra.mxu0 0
        %1453 = vmatpush.bf16.xpose.msra.mxu0 0
        %1454 = vmatpush.bf16.xpose.msra.mxu0 0
        %1455 = vmatpush.bf16.xpose.msra.mxu0 0
        %1456 = vmatpush.bf16.xpose.msra.mxu0 0
        %1457 = vmatpush.bf16.xpose.msra.mxu0 %v1448
        %1458 = vmatmul.bf16.gmra.mxu0 %v1445
        %v1459 = vpop.f32.mrf.mxu0
        %v1460 = vadd.f32 %v990, %v1459
        %v1461 = vpop.f32.mrf.mxu0
        %v1462 = vadd.f32 %v990, %v1461
        %1463 = vdwg.mxu0
        %v1464 = vsel %vm1002, %v1460, -inf
        %1465 = vmax.xlane.f32.xlu0 %v1464
        %v1466 = vpop.xlane.xlu0 %1465
        %v1467 = vsel %vm1002, %v1462, -inf
        %1468 = vmax.xlane.f32.xlu0 %v1467
        %v1469 = vpop.xlane.xlu0 %1468
        %v1470 = vsub.f32 %v1460, %v1466
        %v1471 = vsub.f32 %v1462, %v1469
        %v1472 = vmul.f32 %v1470, 1.442695
        %v1473 = vpow.pop %v1472
        %v1474 = vmul.f32 %v1471, 1.442695
        %v1475 = vpow.pop %v1474
        %v1476 = vsel %vm1002, %v1473, 0.0
        %1477 = vadd.xlane.f32.xlu0 %v1476
        %v1478 = vpop.xlane.xlu0 %1477
        %v1479 = vsel %vm1002, %v1475, 0.0
        %1480 = vadd.xlane.f32.xlu0 %v1479
        %v1481 = vpop.xlane.xlu0 %1480
        %v1482 = vrcp.pop %v1478
        %v1483 = vrcp.pop %v1481
        %v1484 = vmul.f32 %v1473, %v1482
        %v1485 = vmul.f32 %v1475, %v1483
        %v1486 = vpack.c.bf16 %v1484, %v1484
        %v1487 = vpack.c.bf16 %v1485, %v1485
        %v1490 = vunpack.c.l.b16 %v1486
        %v1491 = vunpack.c.l.b16 %v1487
        %v1492 = vpack.c.b16 %v1491, %v1490
        %1493 = vrot.lane.b32.xlu0 %v1056, 32
        %v1494 = vpop.permute.xlu0 %1493
        %v1497 = vsel %vm1002, %v1492, 0
        %1499 = vmatpush.bf16.msra.mxu0 0
        %1500 = vmatpush.bf16.msra.mxu0 0
        %1501 = vmatpush.bf16.msra.mxu0 0
        %1502 = vmatpush.bf16.msra.mxu0 0
        %1503 = vmatpush.bf16.msra.mxu0 0
        %1504 = vmatpush.bf16.msra.mxu0 0
        %1505 = vmatpush.bf16.msra.mxu0 0
        %1506 = vmatpush.bf16.msra.mxu0 %v1494
        %1507 = vmatmul.bf16.gmra.mxu0 %v1497
        %v1508 = vpop.f32.mrf.mxu0
        %v1509 = vadd.f32 0.0, %v1508
        %v1510 = vpop.f32.mrf.mxu0
        %v1511 = vadd.f32 0.0, %v1510
        %1512 = vdwg.mxu0
        %1513 = vrot.lane.b32.xlu0 %v996, 16
        %v1514 = vpop.permute.xlu0 %1513
        %1515 = vrot.lane.b32.xlu0 %v1001, 16
        %v1516 = vpop.permute.xlu0 %1515
        %v1518 = vsel %vm1002, %v1514, 0
        %v1521 = vsel %vm1002, %v1516, 0
        %1523 = vmatpush.bf16.xpose.msra.mxu0 0
        %1524 = vmatpush.bf16.xpose.msra.mxu0 0
        %1525 = vmatpush.bf16.xpose.msra.mxu0 0
        %1526 = vmatpush.bf16.xpose.msra.mxu0 0
        %1527 = vmatpush.bf16.xpose.msra.mxu0 0
        %1528 = vmatpush.bf16.xpose.msra.mxu0 0
        %1529 = vmatpush.bf16.xpose.msra.mxu0 0
        %1530 = vmatpush.bf16.xpose.msra.mxu0 %v1521
        %1531 = vmatmul.bf16.gmra.mxu0 %v1518
        %v1532 = vpop.f32.mrf.mxu0
        %v1533 = vadd.f32 %v990, %v1532
        %v1534 = vpop.f32.mrf.mxu0
        %v1535 = vadd.f32 %v990, %v1534
        %1536 = vdwg.mxu0
        %v1537 = vsel %vm1002, %v1533, -inf
        %1538 = vmax.xlane.f32.xlu0 %v1537
        %v1539 = vpop.xlane.xlu0 %1538
        %v1540 = vsel %vm1002, %v1535, -inf
        %1541 = vmax.xlane.f32.xlu0 %v1540
        %v1542 = vpop.xlane.xlu0 %1541
        %v1543 = vsub.f32 %v1533, %v1539
        %v1544 = vsub.f32 %v1535, %v1542
        %v1545 = vmul.f32 %v1543, 1.442695
        %v1546 = vpow.pop %v1545
        %v1547 = vmul.f32 %v1544, 1.442695
        %v1548 = vpow.pop %v1547
        %v1549 = vsel %vm1002, %v1546, 0.0
        %1550 = vadd.xlane.f32.xlu0 %v1549
        %v1551 = vpop.xlane.xlu0 %1550
        %v1552 = vsel %vm1002, %v1548, 0.0
        %1553 = vadd.xlane.f32.xlu0 %v1552
        %v1554 = vpop.xlane.xlu0 %1553
        %v1555 = vrcp.pop %v1551
        %v1556 = vrcp.pop %v1554
        %v1557 = vmul.f32 %v1546, %v1555
        %v1558 = vmul.f32 %v1548, %v1556
        %v1559 = vpack.c.bf16 %v1557, %v1557
        %v1560 = vpack.c.bf16 %v1558, %v1558
        %v1563 = vunpack.c.l.b16 %v1559
        %v1564 = vunpack.c.l.b16 %v1560
        %v1565 = vpack.c.b16 %v1564, %v1563
        %1566 = vrot.lane.b32.xlu0 %v1056, 16
        %v1567 = vpop.permute.xlu0 %1566
        %v1570 = vsel %vm1002, %v1565, 0
        %1572 = vmatpush.bf16.msra.mxu0 0
        %1573 = vmatpush.bf16.msra.mxu0 0
        %1574 = vmatpush.bf16.msra.mxu0 0
        %1575 = vmatpush.bf16.msra.mxu0 0
        %1576 = vmatpush.bf16.msra.mxu0 0
        %1577 = vmatpush.bf16.msra.mxu0 0
        %1578 = vmatpush.bf16.msra.mxu0 0
        %1579 = vmatpush.bf16.msra.mxu0 %v1567
        %1580 = vmatmul.bf16.gmra.mxu0 %v1570
        %v1581 = vpop.f32.mrf.mxu0
        %v1582 = vadd.f32 0.0, %v1581
        %v1583 = vpop.f32.mrf.mxu0
        %v1584 = vadd.f32 0.0, %v1583
        %1585 = vdwg.mxu0
        %1588 = vrot.lane.b32.xlu0 %v1144, 16
        %v1589 = vpop.permute.xlu0 %1588
        %1590 = vrot.lane.b32.xlu0 %v1146, 16
        %v1591 = vpop.permute.xlu0 %1590
        %1596 = vrot.lane.b32.xlu0 %v1217, 32
        %v1597 = vpop.permute.xlu0 %1596
        %1598 = vrot.lane.b32.xlu0 %v1219, 32
        %v1599 = vpop.permute.xlu0 %1598
        %1604 = vrot.lane.b32.xlu0 %v1290, 48
        %v1605 = vpop.permute.xlu0 %1604
        %1606 = vrot.lane.b32.xlu0 %v1292, 48
        %v1607 = vpop.permute.xlu0 %1606
        %1612 = vrot.lane.b32.xlu0 %v1363, 64
        %v1613 = vpop.permute.xlu0 %1612
        %1614 = vrot.lane.b32.xlu0 %v1365, 64
        %v1615 = vpop.permute.xlu0 %1614
        %1620 = vrot.lane.b32.xlu0 %v1436, 80
        %v1621 = vpop.permute.xlu0 %1620
        %1622 = vrot.lane.b32.xlu0 %v1438, 80
        %v1623 = vpop.permute.xlu0 %1622
        %1628 = vrot.lane.b32.xlu0 %v1509, 96
        %v1629 = vpop.permute.xlu0 %1628
        %1630 = vrot.lane.b32.xlu0 %v1511, 96
        %v1631 = vpop.permute.xlu0 %1630
        %1636 = vrot.lane.b32.xlu0 %v1582, 112
        %v1637 = vpop.permute.xlu0 %1636
        %1638 = vrot.lane.b32.xlu0 %v1584, 112
        %v1639 = vpop.permute.xlu0 %1638
        %v1642 = vsel %vm1002, %v1071, %v1589
        %v1643 = vsel %vm1002, %v1073, %v1591
        %vm1644 = vcmask 261120
        %v1645 = vsel %vm1644, %v1642, %v1597
        %v1646 = vsel %vm1644, %v1643, %v1599
        %vm1647 = vcmask 392192
        %v1648 = vsel %vm1647, %v1645, %v1605
        %v1649 = vsel %vm1647, %v1646, %v1607
        %vm1650 = vcmask 523264
        %v1651 = vsel %vm1650, %v1648, %v1613
        %v1652 = vsel %vm1650, %v1649, %v1615
        %vm1653 = vcmask 654336
        %v1654 = vsel %vm1653, %v1651, %v1621
        %v1655 = vsel %vm1653, %v1652, %v1623
        %vm1656 = vcmask 785408
        %v1657 = vsel %vm1656, %v1654, %v1629
        %v1658 = vsel %vm1656, %v1655, %v1631
        %vm1659 = vcmask 916480
        %v1660 = vsel %vm1659, %v1657, %v1637
        %v1661 = vsel %vm1659, %v1658, %v1639
        %v1662 = vpack.c.bf16 %v1661, %v1660
        %v1663 = vld [vmem:[#allocation11] sm:$0xf]
        %v1664 = vld [vmem:[#allocation11 + $0x4] sm:$0xf]
        %v1665 = vld [vmem:[#allocation11 + $0x8] sm:$0xf]
        %v1666 = vld [vmem:[#allocation11 + $0xc] sm:$0xf]
        %v1667 = vld [vmem:[#allocation11 + $0x10] sm:$0xf]
        %v1668 = vld [vmem:[#allocation11 + $0x14] sm:$0xf]
        %v1669 = vld [vmem:[#allocation11 + $0x18] sm:$0xf]
        %v1670 = vld [vmem:[#allocation11 + $0x1c] sm:$0xf]
        %v1671 = vld [vmem:[#allocation11 + $0x20] sm:$0xf]
        %v1672 = vld [vmem:[#allocation11 + $0x24] sm:$0xf]
        %v1673 = vld [vmem:[#allocation11 + $0x28] sm:$0xf]
        %v1674 = vld [vmem:[#allocation11 + $0x2c] sm:$0xf]
        %v1675 = vld [vmem:[#allocation11 + $0x30] sm:$0xf]
        %v1676 = vld [vmem:[#allocation11 + $0x34] sm:$0xf]
        %v1677 = vld [vmem:[#allocation11 + $0x38] sm:$0xf]
        %v1678 = vld [vmem:[#allocation11 + $0x3c] sm:$0xf]
        %v1679 = vld [vmem:[%s9] sm:$0x1]
        %v1681 = vperm.slane %v1679, 0
        %v1699 = vunpack.c.l.b16 %v1663
        %v1700 = vunpack.c.l.b16 %v1664
        %v1701 = vunpack.c.l.b16 %v1665
        %v1702 = vunpack.c.l.b16 %v1666
        %v1703 = vunpack.c.l.b16 %v1667
        %v1704 = vunpack.c.l.b16 %v1668
        %v1705 = vunpack.c.l.b16 %v1669
        %v1706 = vunpack.c.l.b16 %v1670
        %v1707 = vunpack.c.l.b16 %v1671
        %v1708 = vunpack.c.l.b16 %v1672
        %v1709 = vunpack.c.l.b16 %v1673
        %v1710 = vunpack.c.l.b16 %v1674
        %v1711 = vunpack.c.l.b16 %v1675
        %v1712 = vunpack.c.l.b16 %v1676
        %v1713 = vunpack.c.l.b16 %v1677
        %v1714 = vunpack.c.l.b16 %v1678
        %v1715 = vpack.c.b16 %v1700, %v1699
        %v1716 = vpack.c.b16 %v1702, %v1701
        %v1717 = vpack.c.b16 %v1704, %v1703
        %v1718 = vpack.c.b16 %v1706, %v1705
        %v1719 = vpack.c.b16 %v1708, %v1707
        %v1720 = vpack.c.b16 %v1710, %v1709
        %v1721 = vpack.c.b16 %v1712, %v1711
        %v1722 = vpack.c.b16 %v1714, %v1713
        %1731 = vmatpush.bf16.msra.mxu0 %v1722
        %1732 = vmatpush.bf16.msra.mxu0 %v1721
        %1733 = vmatpush.bf16.msra.mxu0 %v1720
        %1734 = vmatpush.bf16.msra.mxu0 %v1719
        %1735 = vmatpush.bf16.msra.mxu0 %v1718
        %1736 = vmatpush.bf16.msra.mxu0 %v1717
        %1737 = vmatpush.bf16.msra.mxu0 %v1716
        %1738 = vmatpush.bf16.msra.mxu0 %v1715
        %1739 = vmatmul.bf16.gmra.mxu0 %v1662
        %v1740 = vpop.f32.mrf.mxu0
        %v1741 = vadd.f32 %v1681, %v1740
        %v1742 = vpop.f32.mrf.mxu0
        %v1743 = vadd.f32 %v1681, %v1742
        %1744 = vdwg.mxu0
        %v1745 = vadd.f32 %v1741, %v731
        %v1746 = vadd.f32 %v1743, %v732
        %v1747 = vld [vmem:[%s10] sm:$0x1]
        %v1748 = vld [vmem:[%s11] sm:$0x1]
        %1749 = vadd.xlane.f32.xlu0 %v1745
        %v1750 = vpop.xlane.xlu0 %1749
        %1751 = vadd.xlane.f32.xlu0 %v1746
        %v1752 = vpop.xlane.xlu0 %1751
        %v1753 = vrcp.pop 128.0
        %v1754 = vmul.f32 128.0, %v1753
        %v1755 = vsub.f32 1.0, %v1754
        %v1756 = vmul.f32 %v1753, %v1755
        %v1757 = vadd.f32 %v1753, %v1756
        %vm1758 = vweird.f32 %v1753
        %v1759 = vsel %vm1758, %v1753, %v1757
        %v1760 = vmul.f32 %v1750, %v1759
        %v1761 = vmul.f32 %v1752, %v1759
        %v1762 = vsub.f32 %v1745, %v1760
        %v1763 = vsub.f32 %v1746, %v1761
        %v1764 = vmul.f32 %v1762, %v1762
        %v1765 = vmul.f32 %v1763, %v1763
        %1766 = vadd.xlane.f32.xlu0 %v1764
        %v1767 = vpop.xlane.xlu0 %1766
        %1768 = vadd.xlane.f32.xlu0 %v1765
        %v1769 = vpop.xlane.xlu0 %1768
        %v1770 = vmul.f32 %v1767, %v1759
        %v1771 = vmul.f32 %v1769, %v1759
        %v1772 = vadd.f32 %v1770, 1e-12
        %v1773 = vadd.f32 %v1771, 1e-12
        %v1774 = vrsqrt.pop %v1772
        %v1775 = vmul.f32 %v1774, %v1772
        %v1776 = vmul.f32 %v1775, %v1774
        %v1777 = vmul.f32 0.5, %v1776
        %v1778 = vsub.f32 1.5, %v1777
        %v1779 = vmul.f32 %v1774, %v1778
        %vm1780 = vweird.f32 %v1772
        %vm1781 = vweird.f32 %v1774
        %vm1782 = vmor %vm1780, %vm1781
        %v1783 = vsel %vm1782, %v1774, %v1779
        %v1784 = vrsqrt.pop %v1773
        %v1785 = vmul.f32 %v1784, %v1773
        %v1786 = vmul.f32 %v1785, %v1784
        %v1787 = vmul.f32 0.5, %v1786
        %v1788 = vsub.f32 1.5, %v1787
        %v1789 = vmul.f32 %v1784, %v1788
        %vm1790 = vweird.f32 %v1773
        %vm1791 = vweird.f32 %v1784
        %vm1792 = vmor %vm1790, %vm1791
        %v1793 = vsel %vm1792, %v1784, %v1789
        %v1794 = vmul.f32 %v1762, %v1783
        %v1795 = vmul.f32 %v1763, %v1793
        %v1797 = vperm.slane %v1747, 0
        %v1799 = vmul.f32 %v1797, %v1794
        %v1800 = vmul.f32 %v1797, %v1795
        %v1802 = vperm.slane %v1748, 0
        %v1804 = vadd.f32 %v1799, %v1802
        %v1805 = vadd.f32 %v1800, %v1802
        %v1806 = vpack.c.bf16 %v1805, %v1804
        %v1807 = vld [vmem:[#allocation13] sm:$0xff]
        %v1808 = vld [vmem:[#allocation13 + $0x8] sm:$0xff]
        %v1809 = vld [vmem:[#allocation13 + $0x10] sm:$0xff]
        %v1810 = vld [vmem:[#allocation13 + $0x18] sm:$0xff]
        %v1811 = vld [vmem:[#allocation13 + $0x20] sm:$0xff]
        %v1812 = vld [vmem:[#allocation13 + $0x28] sm:$0xff]
        %v1813 = vld [vmem:[#allocation13 + $0x30] sm:$0xff]
        %v1814 = vld [vmem:[#allocation13 + $0x38] sm:$0xff]
        %v1815 = vld [vmem:[#allocation13 + $0x40] sm:$0xff]
        %v1816 = vld [vmem:[#allocation13 + $0x48] sm:$0xff]
        %v1817 = vld [vmem:[#allocation13 + $0x50] sm:$0xff]
        %v1818 = vld [vmem:[#allocation13 + $0x58] sm:$0xff]
        %v1819 = vld [vmem:[#allocation13 + $0x60] sm:$0xff]
        %v1820 = vld [vmem:[#allocation13 + $0x68] sm:$0xff]
        %v1821 = vld [vmem:[#allocation13 + $0x70] sm:$0xff]
        %v1822 = vld [vmem:[#allocation13 + $0x78] sm:$0xff]
        %v1823 = vld [vmem:[%s13] sm:$0x3]
        %v1825 = vperm.slane %v1823, 0
        %v1826 = vperm.slane %v1823, 1
        %v1845 = vunpack.c.l.b16 %v1807
        %v1846 = vunpack.c.h.b16 %v1807
        %v1847 = vunpack.c.l.b16 %v1808
        %v1848 = vunpack.c.h.b16 %v1808
        %v1849 = vunpack.c.l.b16 %v1809
        %v1850 = vunpack.c.h.b16 %v1809
        %v1851 = vunpack.c.l.b16 %v1810
        %v1852 = vunpack.c.h.b16 %v1810
        %v1853 = vunpack.c.l.b16 %v1811
        %v1854 = vunpack.c.h.b16 %v1811
        %v1855 = vunpack.c.l.b16 %v1812
        %v1856 = vunpack.c.h.b16 %v1812
        %v1857 = vunpack.c.l.b16 %v1813
        %v1858 = vunpack.c.h.b16 %v1813
        %v1859 = vunpack.c.l.b16 %v1814
        %v1860 = vunpack.c.h.b16 %v1814
        %v1861 = vunpack.c.l.b16 %v1815
        %v1862 = vunpack.c.h.b16 %v1815
        %v1863 = vunpack.c.l.b16 %v1816
        %v1864 = vunpack.c.h.b16 %v1816
        %v1865 = vunpack.c.l.b16 %v1817
        %v1866 = vunpack.c.h.b16 %v1817
        %v1867 = vunpack.c.l.b16 %v1818
        %v1868 = vunpack.c.h.b16 %v1818
        %v1869 = vunpack.c.l.b16 %v1819
        %v1870 = vunpack.c.h.b16 %v1819
        %v1871 = vunpack.c.l.b16 %v1820
        %v1872 = vunpack.c.h.b16 %v1820
        %v1873 = vunpack.c.l.b16 %v1821
        %v1874 = vunpack.c.h.b16 %v1821
        %v1875 = vunpack.c.l.b16 %v1822
        %v1876 = vunpack.c.h.b16 %v1822
        %v1877 = vpack.c.b16 %v1847, %v1845
        %v1878 = vpack.c.b16 %v1848, %v1846
        %v1879 = vpack.c.b16 %v1851, %v1849
        %v1880 = vpack.c.b16 %v1852, %v1850
        %v1881 = vpack.c.b16 %v1855, %v1853
        %v1882 = vpack.c.b16 %v1856, %v1854
        %v1883 = vpack.c.b16 %v1859, %v1857
        %v1884 = vpack.c.b16 %v1860, %v1858
        %v1885 = vpack.c.b16 %v1863, %v1861
        %v1886 = vpack.c.b16 %v1864, %v1862
        %v1887 = vpack.c.b16 %v1867, %v1865
        %v1888 = vpack.c.b16 %v1868, %v1866
        %v1889 = vpack.c.b16 %v1871, %v1869
        %v1890 = vpack.c.b16 %v1872, %v1870
        %v1891 = vpack.c.b16 %v1875, %v1873
        %v1892 = vpack.c.b16 %v1876, %v1874
        %1909 = vmatpush.bf16.msra.mxu0 %v1891
        %1910 = vmatpush.bf16.msra.mxu0 %v1889
        %1911 = vmatpush.bf16.msra.mxu0 %v1887
        %1912 = vmatpush.bf16.msra.mxu0 %v1885
        %1913 = vmatpush.bf16.msra.mxu0 %v1883
        %1914 = vmatpush.bf16.msra.mxu0 %v1881
        %1915 = vmatpush.bf16.msra.mxu0 %v1879
        %1916 = vmatpush.bf16.msra.mxu0 %v1877
        %1917 = vmatmul.bf16.gmra.mxu0 %v1806
        %v1918 = vpop.f32.mrf.mxu0
        %v1919 = vadd.f32 %v1825, %v1918
        %v1920 = vpop.f32.mrf.mxu0
        %v1921 = vadd.f32 %v1825, %v1920
        %1922 = vdwg.mxu0
        %1923 = vmatpush.bf16.msra.mxu0 %v1892
        %1924 = vmatpush.bf16.msra.mxu0 %v1890
        %1925 = vmatpush.bf16.msra.mxu0 %v1888
        %1926 = vmatpush.bf16.msra.mxu0 %v1886
        %1927 = vmatpush.bf16.msra.mxu0 %v1884
        %1928 = vmatpush.bf16.msra.mxu0 %v1882
        %1929 = vmatpush.bf16.msra.mxu0 %v1880
        %1930 = vmatpush.bf16.msra.mxu0 %v1878
        %1931 = vmatmul.bf16.gmra.mxu0 %v1806
        %v1932 = vpop.f32.mrf.mxu0
        %v1933 = vadd.f32 %v1826, %v1932
        %v1934 = vpop.f32.mrf.mxu0
        %v1935 = vadd.f32 %v1826, %v1934
        %1936 = vdwg.mxu0
        %v1937 = vmul.f32 %v1919, 0.5
        %v1938 = vmul.f32 %v1933, 0.5
        %v1939 = vmul.f32 %v1921, 0.5
        %v1940 = vmul.f32 %v1935, 0.5
        %v1941 = vmul.f32 %v1919, 0.044715
        %v1942 = vmul.f32 %v1933, 0.044715
        %v1943 = vmul.f32 %v1921, 0.044715
        %v1944 = vmul.f32 %v1935, 0.044715
        %v1945 = vmul.f32 %v1941, %v1919
        %v1946 = vmul.f32 %v1942, %v1933
        %v1947 = vmul.f32 %v1943, %v1921
        %v1948 = vmul.f32 %v1944, %v1935
        %v1949 = vmul.f32 %v1945, %v1919
        %v1950 = vmul.f32 %v1946, %v1933
        %v1951 = vmul.f32 %v1947, %v1921
        %v1952 = vmul.f32 %v1948, %v1935
        %v1953 = vadd.f32 %v1919, %v1949
        %v1954 = vadd.f32 %v1933, %v1950
        %v1955 = vadd.f32 %v1921, %v1951
        %v1956 = vadd.f32 %v1935, %v1952
        %v1957 = vmul.f32 %v1953, 0.7978846
        %v1958 = vmul.f32 %v1954, 0.7978846
        %v1959 = vmul.f32 %v1955, 0.7978846
        %v1960 = vmul.f32 %v1956, 0.7978846
        %v1961 = vtanh.pop %v1957
        %v1962 = vtanh.pop %v1958
        %v1963 = vtanh.pop %v1959
        %v1964 = vtanh.pop %v1960
        %v1965 = vadd.f32 %v1961, 1.0
        %v1966 = vadd.f32 %v1962, 1.0
        %v1967 = vadd.f32 %v1963, 1.0
        %v1968 = vadd.f32 %v1964, 1.0
        %v1969 = vmul.f32 %v1937, %v1965
        %v1970 = vmul.f32 %v1938, %v1966
        %v1971 = vmul.f32 %v1939, %v1967
        %v1972 = vmul.f32 %v1940, %v1968
        %v1973 = vpack.c.bf16 %v1971, %v1969
        %v1974 = vpack.c.bf16 %v1972, %v1970
        %v1975 = vld [vmem:[#allocation14] sm:$0xf]
        %v1976 = vld [vmem:[#allocation14 + $0x4] sm:$0xf]
        %v1977 = vld [vmem:[#allocation14 + $0x8] sm:$0xf]
        %v1978 = vld [vmem:[#allocation14 + $0xc] sm:$0xf]
        %v1979 = vld [vmem:[#allocation14 + $0x10] sm:$0xf]
        %v1980 = vld [vmem:[#allocation14 + $0x14] sm:$0xf]
        %v1981 = vld [vmem:[#allocation14 + $0x18] sm:$0xf]
        %v1982 = vld [vmem:[#allocation14 + $0x1c] sm:$0xf]
        %v1983 = vld [vmem:[#allocation14 + $0x20] sm:$0xf]
        %v1984 = vld [vmem:[#allocation14 + $0x24] sm:$0xf]
        %v1985 = vld [vmem:[#allocation14 + $0x28] sm:$0xf]
        %v1986 = vld [vmem:[#allocation14 + $0x2c] sm:$0xf]
        %v1987 = vld [vmem:[#allocation14 + $0x30] sm:$0xf]
        %v1988 = vld [vmem:[#allocation14 + $0x34] sm:$0xf]
        %v1989 = vld [vmem:[#allocation14 + $0x38] sm:$0xf]
        %v1990 = vld [vmem:[#allocation14 + $0x3c] sm:$0xf]
        %v1991 = vld [vmem:[#allocation14 + $0x40] sm:$0xf]
        %v1992 = vld [vmem:[#allocation14 + $0x44] sm:$0xf]
        %v1993 = vld [vmem:[#allocation14 + $0x48] sm:$0xf]
        %v1994 = vld [vmem:[#allocation14 + $0x4c] sm:$0xf]
        %v1995 = vld [vmem:[#allocation14 + $0x50] sm:$0xf]
        %v1996 = vld [vmem:[#allocation14 + $0x54] sm:$0xf]
        %v1997 = vld [vmem:[#allocation14 + $0x58] sm:$0xf]
        %v1998 = vld [vmem:[#allocation14 + $0x5c] sm:$0xf]
        %v1999 = vld [vmem:[#allocation14 + $0x60] sm:$0xf]
        %v2000 = vld [vmem:[#allocation14 + $0x64] sm:$0xf]
        %v2001 = vld [vmem:[#allocation14 + $0x68] sm:$0xf]
        %v2002 = vld [vmem:[#allocation14 + $0x6c] sm:$0xf]
        %v2003 = vld [vmem:[#allocation14 + $0x70] sm:$0xf]
        %v2004 = vld [vmem:[#allocation14 + $0x74] sm:$0xf]
        %v2005 = vld [vmem:[#allocation14 + $0x78] sm:$0xf]
        %v2006 = vld [vmem:[#allocation14 + $0x7c] sm:$0xf]
        %v2007 = vld [vmem:[%s15] sm:$0x1]
        %v2009 = vperm.slane %v2007, 0
        %v2043 = vunpack.c.l.b16 %v1975
        %v2044 = vunpack.c.l.b16 %v1976
        %v2045 = vunpack.c.l.b16 %v1977
        %v2046 = vunpack.c.l.b16 %v1978
        %v2047 = vunpack.c.l.b16 %v1979
        %v2048 = vunpack.c.l.b16 %v1980
        %v2049 = vunpack.c.l.b16 %v1981
        %v2050 = vunpack.c.l.b16 %v1982
        %v2051 = vunpack.c.l.b16 %v1983
        %v2052 = vunpack.c.l.b16 %v1984
        %v2053 = vunpack.c.l.b16 %v1985
        %v2054 = vunpack.c.l.b16 %v1986
        %v2055 = vunpack.c.l.b16 %v1987
        %v2056 = vunpack.c.l.b16 %v1988
        %v2057 = vunpack.c.l.b16 %v1989
        %v2058 = vunpack.c.l.b16 %v1990
        %v2059 = vunpack.c.l.b16 %v1991
        %v2060 = vunpack.c.l.b16 %v1992
        %v2061 = vunpack.c.l.b16 %v1993
        %v2062 = vunpack.c.l.b16 %v1994
        %v2063 = vunpack.c.l.b16 %v1995
        %v2064 = vunpack.c.l.b16 %v1996
        %v2065 = vunpack.c.l.b16 %v1997
        %v2066 = vunpack.c.l.b16 %v1998
        %v2067 = vunpack.c.l.b16 %v1999
        %v2068 = vunpack.c.l.b16 %v2000
        %v2069 = vunpack.c.l.b16 %v2001
        %v2070 = vunpack.c.l.b16 %v2002
        %v2071 = vunpack.c.l.b16 %v2003
        %v2072 = vunpack.c.l.b16 %v2004
        %v2073 = vunpack.c.l.b16 %v2005
        %v2074 = vunpack.c.l.b16 %v2006
        %v2075 = vpack.c.b16 %v2044, %v2043
        %v2076 = vpack.c.b16 %v2046, %v2045
        %v2077 = vpack.c.b16 %v2048, %v2047
        %v2078 = vpack.c.b16 %v2050, %v2049
        %v2079 = vpack.c.b16 %v2052, %v2051
        %v2080 = vpack.c.b16 %v2054, %v2053
        %v2081 = vpack.c.b16 %v2056, %v2055
        %v2082 = vpack.c.b16 %v2058, %v2057
        %v2083 = vpack.c.b16 %v2060, %v2059
        %v2084 = vpack.c.b16 %v2062, %v2061
        %v2085 = vpack.c.b16 %v2064, %v2063
        %v2086 = vpack.c.b16 %v2066, %v2065
        %v2087 = vpack.c.b16 %v2068, %v2067
        %v2088 = vpack.c.b16 %v2070, %v2069
        %v2089 = vpack.c.b16 %v2072, %v2071
        %v2090 = vpack.c.b16 %v2074, %v2073
        %2107 = vmatpush.bf16.msra.mxu0 %v2082
        %2108 = vmatpush.bf16.msra.mxu0 %v2081
        %2109 = vmatpush.bf16.msra.mxu0 %v2080
        %2110 = vmatpush.bf16.msra.mxu0 %v2079
        %2111 = vmatpush.bf16.msra.mxu0 %v2078
        %2112 = vmatpush.bf16.msra.mxu0 %v2077
        %2113 = vmatpush.bf16.msra.mxu0 %v2076
        %2114 = vmatpush.bf16.msra.mxu0 %v2075
        %2115 = vmatmul.bf16.gmra.mxu0 %v1973
        %v2116 = vpop.f32.mrf.mxu0
        %v2117 = vadd.f32 %v2009, %v2116
        %v2118 = vpop.f32.mrf.mxu0
        %v2119 = vadd.f32 %v2009, %v2118
        %2120 = vdwg.mxu0
        %2121 = vmatpush.bf16.msra.mxu0 %v2090
        %2122 = vmatpush.bf16.msra.mxu0 %v2089
        %2123 = vmatpush.bf16.msra.mxu0 %v2088
        %2124 = vmatpush.bf16.msra.mxu0 %v2087
        %2125 = vmatpush.bf16.msra.mxu0 %v2086
        %2126 = vmatpush.bf16.msra.mxu0 %v2085
        %2127 = vmatpush.bf16.msra.mxu0 %v2084
        %2128 = vmatpush.bf16.msra.mxu0 %v2083
        %2129 = vmatmul.bf16.gmra.mxu0 %v1974
        %v2130 = vpop.f32.mrf.mxu0
        %v2131 = vadd.f32 %v2117, %v2130
        %v2132 = vpop.f32.mrf.mxu0
        %v2133 = vadd.f32 %v2119, %v2132
        %2134 = vdwg.mxu0
        %v2135 = vadd.f32 %v2131, %v1804
        %v2136 = vadd.f32 %v2133, %v1805
        %v2137 = vld [vmem:[%s16] sm:$0x1]
        %v2138 = vld [vmem:[%s17] sm:$0x1]
        %2139 = vadd.xlane.f32.xlu0 %v2135
        %v2140 = vpop.xlane.xlu0 %2139
        %2141 = vadd.xlane.f32.xlu0 %v2136
        %v2142 = vpop.xlane.xlu0 %2141
        %v2143 = vmul.f32 %v2140, %v1759
        %v2144 = vmul.f32 %v2142, %v1759
        %v2145 = vsub.f32 %v2135, %v2143
        %v2146 = vsub.f32 %v2136, %v2144
        %v2147 = vmul.f32 %v2145, %v2145
        %v2148 = vmul.f32 %v2146, %v2146
        %2149 = vadd.xlane.f32.xlu0 %v2147
        %v2150 = vpop.xlane.xlu0 %2149
        %2151 = vadd.xlane.f32.xlu0 %v2148
        %v2152 = vpop.xlane.xlu0 %2151
        %v2153 = vmul.f32 %v2150, %v1759
        %v2154 = vmul.f32 %v2152, %v1759
        %v2155 = vadd.f32 %v2153, 1e-12
        %v2156 = vadd.f32 %v2154, 1e-12
        %v2157 = vrsqrt.pop %v2155
        %v2158 = vmul.f32 %v2157, %v2155
        %v2159 = vmul.f32 %v2158, %v2157
        %v2160 = vmul.f32 0.5, %v2159
        %v2161 = vsub.f32 1.5, %v2160
        %v2162 = vmul.f32 %v2157, %v2161
        %vm2163 = vweird.f32 %v2155
        %vm2164 = vweird.f32 %v2157
        %vm2165 = vmor %vm2163, %vm2164
        %v2166 = vsel %vm2165, %v2157, %v2162
        %v2167 = vrsqrt.pop %v2156
        %v2168 = vmul.f32 %v2167, %v2156
        %v2169 = vmul.f32 %v2168, %v2167
        %v2170 = vmul.f32 0.5, %v2169
        %v2171 = vsub.f32 1.5, %v2170
        %v2172 = vmul.f32 %v2167, %v2171
        %vm2173 = vweird.f32 %v2156
        %vm2174 = vweird.f32 %v2167
        %vm2175 = vmor %vm2173, %vm2174
        %v2176 = vsel %vm2175, %v2167, %v2172
        %v2177 = vmul.f32 %v2145, %v2166
        %v2178 = vmul.f32 %v2146, %v2176
        %v2180 = vperm.slane %v2137, 0
        %v2182 = vmul.f32 %v2180, %v2177
        %v2183 = vmul.f32 %v2180, %v2178
        %v2185 = vperm.slane %v2138, 0
        %v2187 = vadd.f32 %v2182, %v2185
        %v2188 = vadd.f32 %v2183, %v2185
        %2189 = vst [vmem:[%s729] sm:$0xff] %v2187
        %2190 = vst [vmem:[%s729 + $0x8] sm:$0xff] %v2188
        %s2191 = sand.u32 %s437, 1
        %s2192 = scalar_lea.sflag [#allocation4], %s2191
        %s2193 = sand.u32 %s437, 1
        %s2194 = smul.addr %s2193, 16
        %s2195 = scalar_lea.vmem [#allocation16], %s2194
        // Predicated region
        $region125: #{tpu_custom_call.1} parent=91 // pred_check
          %p2196 = pneg %p447
        $region126: #{tpu_custom_call.1} parent=91 // pred_check_branch
          %2198 = sbr.rel (%p2196) target = $region128
        $region127: #{tpu_custom_call.1} parent=91 // pred_region
          %2200 = vsyncadd %s2192, 0
          %s2201 = smul.addr %s41, 2
          %s2202 = smul.addr %s2201, 8
          %s2203 = scalar_lea.hbm %s18, %s2202
          %s2204 = sshll.u32 %s2195, 4
          %s2205 = int_to_ptr.vmem [resolvable:$true] %s2204
          %s2206 = sshll.u32 %s2203, 4
          %s2207 = int_to_ptr.hbm [resolvable:$true] %s2206
          %2212 = dma.vmem_to_hbm [thread:$0]  %s2205, 256, %s2207, %s2192, 128, 128, 8
        $region128: #{tpu_custom_call.1} parent=91 // pred_fallthru
          _
      $region92: #{tpu_custom_call.1} parent=5 // pred_fallthru
        _
      %p2213 = scmp.le.s32.totalorder 2, %s36
      // Predicated region
      $region129: #{tpu_custom_call.1} parent=5 // pred_check
        %p2214 = pneg %p2213
      $region130: #{tpu_custom_call.1} parent=5 // pred_check_branch
        %2216 = sbr.rel (%p2214) target = $region132
      $region131: #{tpu_custom_call.1} parent=5 // pred_region
        %s2217 = ssub.s32 %s36, 2
        // Predicated region
        $region133: #{tpu_custom_call.1} parent=131 // pred_check
          %p2218 = pneg %p453
        $region134: #{tpu_custom_call.1} parent=131 // pred_check_branch
          %2220 = sbr.rel (%p2218) target = $region136
        $region135: #{tpu_custom_call.1} parent=131 // pred_region
          %s2221 = sand.u32 %s438, 1
          %s2222 = scalar_lea.sflag [#allocation4], %s2221
          %s2223 = sand.u32 %s438, 1
          %s2224 = smul.addr %s2223, 16
          %s2225 = scalar_lea.vmem [#allocation16], %s2224
          %2227 = dma.done %s2222, 256
        $region136: #{tpu_custom_call.1} parent=131 // pred_fallthru
          _
      $region132: #{tpu_custom_call.1} parent=5 // pred_fallthru
        _
    $region6: #{tpu_custom_call.1} parent=1 // loop_footer
      %s40 = sadd.s32 1, %s36
    $region7: #{tpu_custom_call.1} parent=1 // loop_footer_branch
      %35 = sbr.rel target = $region3
    $region8: #{tpu_custom_call.1} parent=1 // loop_exit
      _
    %2228 = vsyncpa [#allocation3], 1
    %s2229 = scalar_lea.sflag [#allocation3], 1
    %2230 = vsyncpa %s2229, 1
    %2231 = vsyncpa [#allocation6], 1
    %s2232 = scalar_lea.sflag [#allocation6], 1
    %2233 = vsyncpa %s2232, 1
    %2234 = vsyncpa [#allocation9], 1
    %2235 = vsyncpa [#allocation12], 1
    %2236 = vsyncpa [#allocation15], 1
    %2237 = vsyncpa [#allocation4], 1
    %s2238 = scalar_lea.sflag [#allocation4], 1
    %2239 = vsyncpa %s2238, 1

</llo_original>
